<compile_context>
chip_gen: v6e
topology: v6e:2x2x1
jax: 0.10.0
libtpu: 0.0.40
codegen_flags: <defaults>
</compile_context>

<pallas_src>
import functools

import numpy as np
import jax
import jax.numpy as jnp
from jax import lax
from jax.experimental import pallas as pl
from jax.experimental.pallas import tpu as pltpu

GROUPS = 8
STEM_OUT = 64
WIDTH = 32           # grouped-conv width (8 groups x 4 channels)
BLOCK_OUT = 128      # bottleneck output channels (n_features for the fc head)
NUM_CLASSES = 10
BN_EPS = 1e-5


# ----------------------------- Pallas kernels --------------------------------

def _gemm_bias_act_kernel(x_ref, w_ref, b_ref, o_ref, *, relu):
    # o = act(x @ w + b).  BN scale already folded into w, so the epilogue is a
    # single f32 bias add (+ optional ReLU).  bf16 MXU operands, f32 accumulate.
    acc = jnp.dot(x_ref[...], w_ref[...], preferred_element_type=jnp.float32)
    y = acc + b_ref[...]
    if relu:
        y = jnp.maximum(y, 0.0)
    o_ref[...] = y.astype(o_ref.dtype)


def gemm_bias_act(x, w_bf16, bias, relu=True):
    """(M,K) @ (K,N) + bias (+ReLU), bf16 in / bf16 out, f32 accumulate.

    Launch/DMA-latency bound at small sizes, so it runs as ONE whole-array
    block unless the x operand alone exceeds a few MiB; the tiled path accounts
    for double-buffered x/out tiles plus the (re-fetched) weight and bias.
    """
    M, K = x.shape
    Kw, N = w_bf16.shape
    assert K == Kw
    b2 = bias.reshape(1, N).astype(jnp.float32)
    kernel = functools.partial(_gemm_bias_act_kernel, relu=relu)
    out_shape = jax.ShapeDtypeStruct((M, N), jnp.bfloat16)

    x_bytes = M * K * x.dtype.itemsize
    if x_bytes <= (4 << 20) or M % 8 != 0:
        # Single whole-array block: no per-step overhead, no weight re-fetch.
        return pl.pallas_call(kernel, out_shape=out_shape)(x, w_bf16, b2)

    # Large-batch path: tile M.  VMEM need = 2x x tile + 2x out tile (bf16)
    # + 2x weight + 2x bias (pipelined), kept well under the scoped default.
    tm = M
    for cand in (2048, 1024, 512, 256, 128, 64, 32, 16, 8):
        if M % cand == 0:
            need = (2 * cand * K * x.dtype.itemsize + 2 * cand * N * 2
                    + 2 * K * N * 2 + 2 * N * 4)
            if need <= (24 << 20):
                tm = cand
                break
    if tm == M:
        return pl.pallas_call(kernel, out_shape=out_shape)(x, w_bf16, b2)
    # NOTE: plain "parallel"/"arbitrary" changes little; on v7x use CORE_PARALLEL
    # (or pl.core_map) if dual-TensorCore sharding of this axis is wanted.
    return pl.pallas_call(
        kernel,
        out_shape=out_shape,
        grid=(M // tm,),
        in_specs=[
            pl.BlockSpec((tm, K), lambda i: (i, 0)),
            pl.BlockSpec((K, N), lambda i: (0, 0)),
            pl.BlockSpec((1, N), lambda i: (0, 0)),
        ],
        out_specs=pl.BlockSpec((tm, N), lambda i: (i, 0)),
        compiler_params=pltpu.CompilerParams(
            dimension_semantics=("arbitrary",),
            vmem_limit_bytes=32 << 20),
    )(x, w_bf16, b2)


def _tail_kernel(xtap_ref, mask_ref, w1_ref, b1_ref, w2_ref, b2_ref,
                 w3d_ref, b3d_ref, wfc_ref, bfc_ref, o_ref, *, n_batch, hw):
    """Fused: c1 (per-tap) -> grouped 3x3 -> c3+downsample -> residual ReLU ->
    fc head -> global average pool.  One HBM output: (n_batch, num_classes)."""
    w1 = w1_ref[...]                                   # (64, 32) bf16
    b1 = b1_ref[...]                                   # (1, 32)  f32

    # c1 (1x1 conv, BN folded, ReLU) recomputed on each 3x3 neighborhood tap of
    # xpool, masked to zero at the conv padding, then immediately consumed by
    # the grouped 3x3 conv via its per-tap block-diagonal weight.  FLOPs are
    # trivial; this avoids any xpool/y1 HBM round trip or extra launch.
    acc = None
    for t in range(9):
        y1t = jnp.dot(xtap_ref[t], w1, preferred_element_type=jnp.float32)
        y1t = jnp.maximum(y1t + b1, 0.0) * mask_ref[t]          # (M, 32) f32
        c = jnp.dot(y1t.astype(jnp.bfloat16), w2_ref[t],
                    preferred_element_type=jnp.float32)
        acc = c if acc is None else acc + c
    y2 = jnp.maximum(acc + b2_ref[...], 0.0)                    # (M, 32) f32

    # c3 + downsample fused into ONE K=96 MXU pass + shared bias + residual ReLU.
    xpool = xtap_ref[4]                                          # centre tap == xpool
    zin = jnp.concatenate([y2.astype(jnp.bfloat16), xpool], axis=1)   # (M, 96)
    z = jnp.dot(zin, w3d_ref[...], preferred_element_type=jnp.float32)
    z = jnp.maximum(z + b3d_ref[...], 0.0)                       # (M, 128) f32

    # fc head first (lane-efficient M-row GEMM), then global average pool as a
    # per-image sublane reduction (mean and linear fc commute).
    zl = jnp.dot(z, wfc_ref[...], preferred_element_type=jnp.float32)  # (M, cls)
    inv = 1.0 / float(hw)
    for b in range(n_batch):
        row = jnp.sum(zl[b * hw:(b + 1) * hw, :], axis=0, keepdims=True) * inv
        o_ref[b:b + 1, :] = row + bfc_ref[...]


# ----------------------------- XLA glue (data movement / pool) ---------------

def _patches(x_nhwc, k, stride, pad):
    """One fused XLA window gather.  Output feature axis is CHANNEL-MAJOR:
    index = c * k * k + ti * k + tj  (weights are permuted to match)."""
    return lax.conv_general_dilated_patches(
        x_nhwc, (k, k), (stride, stride), [(pad, pad), (pad, pad)],
        dimension_numbers=("NHWC", "HWIO", "NHWC"))


def _tap_valid_mask(n, ho, wo):
    """(9, n*ho*wo, 1) f32: 1 where the 3x3/s1/pad1 neighbor is in-bounds."""
    vi = np.arange(ho)
    vj = np.arange(wo)
    m = np.zeros((9, n * ho * wo, 1), np.float32)
    for t in range(9):
        di, dj = t // 3 - 1, t % 3 - 1
        ok_i = ((vi + di >= 0) & (vi + di < ho)).astype(np.float32)
        ok_j = ((vj + dj >= 0) & (vj + dj < wo)).astype(np.float32)
        m[t, :, 0] = np.tile(np.outer(ok_i, ok_j).reshape(-1), n)
    return jnp.asarray(m)


# ----------------------------- parameters ------------------------------------

def _fold_bn(gamma, beta, mean, var):
    scale = gamma / jnp.sqrt(var + BN_EPS)
    return scale, beta - mean * scale


def _init_conv(key, cout, cin, kh, kw):
    fan_in = cin * kh * kw
    return jax.random.normal(key, (cout, cin, kh, kw), jnp.float32) / jnp.sqrt(fan_in)


def _init_bn(key, c):
    k1, k2, k3, k4 = jax.random.split(key, 4)
    gamma = 1.0 + 0.1 * jax.random.normal(k1, (c,), jnp.float32)
    beta = 0.1 * jax.random.normal(k2, (c,), jnp.float32)
    mean = 0.1 * jax.random.normal(k3, (c,), jnp.float32)
    var = jnp.abs(jax.random.normal(k4, (c,), jnp.float32)) + 0.5
    return gamma, beta, mean, var


def init_raw_params(key):
    ks = jax.random.split(key, 12)
    p = {}
    p['stem_w'] = _init_conv(ks[0], STEM_OUT, 3, 7, 7)
    p['stem_bn'] = _init_bn(ks[1], STEM_OUT)
    p['c1_w'] = _init_conv(ks[2], WIDTH, STEM_OUT, 1, 1)
    p['c1_bn'] = _init_bn(ks[3], WIDTH)
    p['c2_w'] = _init_conv(ks[4], WIDTH, WIDTH // GROUPS, 3, 3)     # grouped 3x3
    p['c2_bn'] = _init_bn(ks[5], WIDTH)
    p['c3_w'] = _init_conv(ks[6], BLOCK_OUT, WIDTH, 1, 1)
    p['c3_bn'] = _init_bn(ks[7], BLOCK_OUT)
    p['ds_w'] = _init_conv(ks[8], BLOCK_OUT, STEM_OUT, 1, 1)
    p['ds_bn'] = _init_bn(ks[9], BLOCK_OUT)
    # replaced head: nn.Linear(n_features=BLOCK_OUT, num_classes)
    p['fc_w'] = jax.random.normal(ks[10], (BLOCK_OUT, NUM_CLASSES),
                                  jnp.float32) / jnp.sqrt(BLOCK_OUT)
    p['fc_b'] = 0.01 * jax.random.normal(ks[11], (NUM_CLASSES,), jnp.float32)
    return p


def _conv_to_gemm_weight_cmajor(w_oihw, scale):
    """(Cout,Cin,kh,kw) -> (Cin*kh*kw, Cout) with CHANNEL-MAJOR K ordering
    (matches conv_general_dilated_patches features); BN scale folded; bf16."""
    cout = w_oihw.shape[0]
    wm = jnp.transpose(w_oihw, (1, 2, 3, 0)).reshape(-1, cout)
    return (wm * scale[None, :]).astype(jnp.bfloat16)


def prepare_params(raw):
    """One-time prep: fold eval-mode BN into GEMM weights/biases, build the
    per-tap block-diagonal grouped-conv weights, stack c3/downsample weights,
    and cast every MXU weight operand to bf16."""
    p = {}
    s, b = _fold_bn(*raw['stem_bn'])
    p['stem_w'] = _conv_to_gemm_weight_cmajor(raw['stem_w'], s)   # (147, 64)
    p['stem_b'] = b.reshape(1, STEM_OUT)

    s1, b1 = _fold_bn(*raw['c1_bn'])
    p['w1'] = _conv_to_gemm_weight_cmajor(raw['c1_w'], s1)        # (64, 32)
    p['b1'] = b1.reshape(1, WIDTH)

    # grouped 3x3 -> per-tap block-diagonal weights w2[t, cin, cout]
    s2, b2 = _fold_bn(*raw['c2_bn'])
    cg = WIDTH // GROUPS
    w2 = jnp.zeros((9, WIDTH, WIDTH), jnp.float32)
    for g in range(GROUPS):
        blk = raw['c2_w'][g * cg:(g + 1) * cg]                    # (cg_out, cg_in, 3, 3)
        blk = jnp.transpose(blk, (2, 3, 1, 0)).reshape(9, cg, cg)  # [t, ci_l, co_l]
        w2 = w2.at[:, g * cg:(g + 1) * cg, g * cg:(g + 1) * cg].set(blk)
    p['w2'] = (w2 * s2[None, None, :]).astype(jnp.bfloat16)        # (9, 32, 32)
    p['b2'] = b2.reshape(1, WIDTH)

    # c3 + downsample fused: stacked weight (96, 128) and summed bias
    s3, b3 = _fold_bn(*raw['c3_bn'])
    sd, bd = _fold_bn(*raw['ds_bn'])
    w3 = _conv_to_gemm_weight_cmajor(raw['c3_w'], s3)              # (32, 128)
    wd = _conv_to_gemm_weight_cmajor(raw['ds_w'], sd)              # (64, 128)
    p['w3d'] = jnp.concatenate([w3, wd], axis=0)                   # (96, 128) bf16
    p['b3d'] = (b3 + bd).reshape(1, BLOCK_OUT)

    p['fc_w'] = raw['fc_w'].astype(jnp.float32)                    # (128, 10)
    p['fc_b'] = raw['fc_b'].reshape(1, NUM_CLASSES).astype(jnp.float32)
    return p


# ----------------------------- forward ---------------------------------------

def resnext_forward(params, img_nchw):
    p = params
    # PyTorch NCHW -> NHWC (channels on lanes), bf16 everywhere off-chip.
    x = jnp.transpose(img_nchw, (0, 2, 3, 1)).astype(jnp.bfloat16)
    N = x.shape[0]

    # --- K1: stem 7x7/s2 conv + BN + ReLU as ONE whole-array GEMM ------------
    pat = _patches(x, 7, 2, 3)                                     # (N,Hs,Ws,147)
    Hs, Ws = pat.shape[1], pat.shape[2]
    pat = pat.reshape(N * Hs * Ws, 3 * 49)
    s = gemm_bias_act(pat, p['stem_w'], p['stem_b'], relu=True)    # (M1, 64) bf16

    # --- glue: 3x3/s2 max-pool (single reduce_window) + 3x3 neighborhoods ----
    s4 = s.reshape(N, Hs, Ws, STEM_OUT)
    xpool = lax.reduce_window(
        s4, jnp.array(-jnp.inf, s4.dtype), lax.max,
        (1, 3, 3, 1), (1, 2, 2, 1), ((0, 0), (1, 1), (1, 1), (0, 0)))
    Ho, Wo = xpool.shape[1], xpool.shape[2]
    M = N * Ho * Wo
    xt = _patches(xpool, 3, 1, 1)                                  # (N,Ho,Wo,64*9)
    xt = jnp.transpose(xt.reshape(M, STEM_OUT, 9), (2, 0, 1))      # (9, M, 64) bf16
    mask = _tap_valid_mask(N, Ho, Wo)                              # (9, M, 1) const

    # --- K2: c1 + grouped 3x3 + c3/downsample + residual + avgpool + fc ------
    logits = pl.pallas_call(
        functools.partial(_tail_kernel, n_batch=N, hw=Ho * Wo),
        out_shape=jax.ShapeDtypeStruct((N, NUM_CLASSES), jnp.float32),
    )(xt, mask, p['w1'], p['b1'], p['w2'], p['b2'],
      p['w3d'], p['b3d'], p['fc_w'], p['fc_b'])
    return logits


if __name__ == "__main__":
    key = jax.random.PRNGKey(0)
    k_img, k_par = jax.random.split(key)
    img = jax.random.normal(k_img, (2, 3, 32, 32), jnp.float32)   # NCHW like PyTorch
    raw = init_raw_params(k_par)
    params = prepare_params(raw)

    fwd = jax.jit(resnext_forward)
    out = fwd(params, img)
    jax.block_until_ready(out)
    assert out.shape == (2, NUM_CLASSES), out.shape
    assert bool(jnp.all(jnp.isfinite(out)))
    print("KERNEL_OK")
</pallas_src>

<mosaic_0001>
module attributes {stable_mosaic.version = 11 : i64} {
  func.func @_gemm_bias_act_kernel(%arg0: memref<512x147xbf16, #tpu.memory_space<vmem>>, %arg1: memref<147x64xbf16, #tpu.memory_space<vmem>>, %arg2: memref<1x64xf32, #tpu.memory_space<vmem>>, %arg3: memref<512x64xbf16, #tpu.memory_space<vmem>>) attributes {dimension_semantics = [], scalar_prefetch = 0 : i64, scratch_operands = 0 : i64, tpu.core_type = #tpu.core_type<tc>} {
    %c0 = arith.constant 0 : index
    %c0_0 = arith.constant 0 : index
    %0 = vector.load %arg0[%c0, %c0_0] : memref<512x147xbf16, #tpu.memory_space<vmem>>, vector<512x147xbf16>
    %c0_1 = arith.constant 0 : index
    %c0_2 = arith.constant 0 : index
    %1 = vector.load %arg1[%c0_1, %c0_2] : memref<147x64xbf16, #tpu.memory_space<vmem>>, vector<147x64xbf16>
    %cst = arith.constant dense<0.000000e+00> : vector<512x64xf32>
    %2 = tpu.matmul %0, %1, %cst {dimension_numbers = #tpu.dot_dimension_numbers<[1], [0], [0], [1], [0, 0, 1, 1], [], []>} : vector<512x147xbf16>, vector<147x64xbf16>, vector<512x64xf32> -> vector<512x64xf32>
    %c0_3 = arith.constant 0 : index
    %c0_4 = arith.constant 0 : index
    %3 = vector.load %arg2[%c0_3, %c0_4] : memref<1x64xf32, #tpu.memory_space<vmem>>, vector<1x64xf32>
    %4 = vector.broadcast %3 : vector<1x64xf32> to vector<512x64xf32>
    %5 = arith.addf %2, %4 : vector<512x64xf32>
    %cst_5 = arith.constant 0.000000e+00 : f32
    %6 = vector.broadcast %cst_5 : f32 to vector<512x64xf32>
    %7 = arith.maximumf %5, %6 : vector<512x64xf32>
    %8 = arith.truncf %7 : vector<512x64xf32> to vector<512x64xbf16>
    %c0_6 = arith.constant 0 : index
    %c0_7 = arith.constant 0 : index
    %9 = vector.load %arg3[%c0_6, %c0_7] : memref<512x64xbf16, #tpu.memory_space<vmem>>, vector<512x64xbf16>
    tpu.vector_store %arg3[%c0_6, %c0_7], %8 {strides = array<i32>} : memref<512x64xbf16, #tpu.memory_space<vmem>>, vector<512x64xbf16>,
    return
  }
}

module attributes {stable_mosaic.version = 11 : i64} {
  func.func @_tail_kernel(%arg0: memref<9x128x64xbf16, #tpu.memory_space<vmem>>, %arg1: memref<9x128x1xf32, #tpu.memory_space<vmem>>, %arg2: memref<64x32xbf16, #tpu.memory_space<vmem>>, %arg3: memref<1x32xf32, #tpu.memory_space<vmem>>, %arg4: memref<9x32x32xbf16, #tpu.memory_space<vmem>>, %arg5: memref<1x32xf32, #tpu.memory_space<vmem>>, %arg6: memref<96x128xbf16, #tpu.memory_space<vmem>>, %arg7: memref<1x128xf32, #tpu.memory_space<vmem>>, %arg8: memref<128x10xf32, #tpu.memory_space<vmem>>, %arg9: memref<1x10xf32, #tpu.memory_space<vmem>>, %arg10: memref<2x10xf32, #tpu.memory_space<vmem>>) attributes {dimension_semantics = [], scalar_prefetch = 0 : i64, scratch_operands = 0 : i64, tpu.core_type = #tpu.core_type<tc>} {
    %c0 = arith.constant 0 : index
    %c0_0 = arith.constant 0 : index
    %0 = vector.load %arg2[%c0, %c0_0] : memref<64x32xbf16, #tpu.memory_space<vmem>>, vector<64x32xbf16>
    %c0_1 = arith.constant 0 : index
    %c0_2 = arith.constant 0 : index
    %1 = vector.load %arg3[%c0_1, %c0_2] : memref<1x32xf32, #tpu.memory_space<vmem>>, vector<1x32xf32>
    %c0_3 = arith.constant 0 : index
    %c0_4 = arith.constant 0 : index
    %c0_5 = arith.constant 0 : index
    %2 = vector.load %arg0[%c0_3, %c0_4, %c0_5] : memref<9x128x64xbf16, #tpu.memory_space<vmem>>, vector<1x128x64xbf16>
    %3 = vector.shape_cast %2 : vector<1x128x64xbf16> to vector<128x64xbf16>
    %cst = arith.constant dense<0.000000e+00> : vector<128x32xf32>
    %4 = tpu.matmul %3, %0, %cst {dimension_numbers = #tpu.dot_dimension_numbers<[1], [0], [0], [1], [0, 0, 1, 1], [], []>} : vector<128x64xbf16>, vector<64x32xbf16>, vector<128x32xf32> -> vector<128x32xf32>
    %5 = vector.broadcast %1 : vector<1x32xf32> to vector<128x32xf32>
    %6 = arith.addf %4, %5 : vector<128x32xf32>
    %cst_6 = arith.constant 0.000000e+00 : f32
    %7 = vector.broadcast %cst_6 : f32 to vector<128x32xf32>
    %8 = arith.maximumf %6, %7 : vector<128x32xf32>
    %c0_7 = arith.constant 0 : index
    %c0_8 = arith.constant 0 : index
    %c0_9 = arith.constant 0 : index
    %9 = vector.load %arg1[%c0_7, %c0_8, %c0_9] : memref<9x128x1xf32, #tpu.memory_space<vmem>>, vector<1x128x1xf32>
    %10 = vector.shape_cast %9 : vector<1x128x1xf32> to vector<128x1xf32>
    %11 = vector.broadcast %10 : vector<128x1xf32> to vector<128x32xf32>
    %12 = arith.mulf %8, %11 : vector<128x32xf32>
    %13 = arith.truncf %12 : vector<128x32xf32> to vector<128x32xbf16>
    %c0_10 = arith.constant 0 : index
    %c0_11 = arith.constant 0 : index
    %c0_12 = arith.constant 0 : index
    %14 = vector.load %arg4[%c0_10, %c0_11, %c0_12] : memref<9x32x32xbf16, #tpu.memory_space<vmem>>, vector<1x32x32xbf16>
    %15 = vector.shape_cast %14 : vector<1x32x32xbf16> to vector<32x32xbf16>
    %cst_13 = arith.constant dense<0.000000e+00> : vector<128x32xf32>
    %16 = tpu.matmul %13, %15, %cst_13 {dimension_numbers = #tpu.dot_dimension_numbers<[1], [0], [0], [1], [0, 0, 1, 1], [], []>} : vector<128x32xbf16>, vector<32x32xbf16>, vector<128x32xf32> -> vector<128x32xf32>
    %c1 = arith.constant 1 : index
    %c0_14 = arith.constant 0 : index
    %c0_15 = arith.constant 0 : index
    %17 = vector.load %arg0[%c1, %c0_14, %c0_15] : memref<9x128x64xbf16, #tpu.memory_space<vmem>>, vector<1x128x64xbf16>
    %18 = vector.shape_cast %17 : vector<1x128x64xbf16> to vector<128x64xbf16>
    %cst_16 = arith.constant dense<0.000000e+00> : vector<128x32xf32>
    %19 = tpu.matmul %18, %0, %cst_16 {dimension_numbers = #tpu.dot_dimension_numbers<[1], [0], [0], [1], [0, 0, 1, 1], [], []>} : vector<128x64xbf16>, vector<64x32xbf16>, vector<128x32xf32> -> vector<128x32xf32>
    %20 = vector.broadcast %1 : vector<1x32xf32> to vector<128x32xf32>
    %21 = arith.addf %19, %20 : vector<128x32xf32>
    %cst_17 = arith.constant 0.000000e+00 : f32
    %22 = vector.broadcast %cst_17 : f32 to vector<128x32xf32>
    %23 = arith.maximumf %21, %22 : vector<128x32xf32>
    %c1_18 = arith.constant 1 : index
    %c0_19 = arith.constant 0 : index
    %c0_20 = arith.constant 0 : index
    %24 = vector.load %arg1[%c1_18, %c0_19, %c0_20] : memref<9x128x1xf32, #tpu.memory_space<vmem>>, vector<1x128x1xf32>
    %25 = vector.shape_cast %24 : vector<1x128x1xf32> to vector<128x1xf32>
    %26 = vector.broadcast %25 : vector<128x1xf32> to vector<128x32xf32>
    %27 = arith.mulf %23, %26 : vector<128x32xf32>
    %28 = arith.truncf %27 : vector<128x32xf32> to vector<128x32xbf16>
    %c1_21 = arith.constant 1 : index
    %c0_22 = arith.constant 0 : index
    %c0_23 = arith.constant 0 : index
    %29 = vector.load %arg4[%c1_21, %c0_22, %c0_23] : memref<9x32x32xbf16, #tpu.memory_space<vmem>>, vector<1x32x32xbf16>
    %30 = vector.shape_cast %29 : vector<1x32x32xbf16> to vector<32x32xbf16>
    %cst_24 = arith.constant dense<0.000000e+00> : vector<128x32xf32>
    %31 = tpu.matmul %28, %30, %cst_24 {dimension_numbers = #tpu.dot_dimension_numbers<[1], [0], [0], [1], [0, 0, 1, 1], [], []>} : vector<128x32xbf16>, vector<32x32xbf16>, vector<128x32xf32> -> vector<128x32xf32>
    %32 = arith.addf %16, %31 : vector<128x32xf32>
    %c2 = arith.constant 2 : index
    %c0_25 = arith.constant 0 : index
    %c0_26 = arith.constant 0 : index
    %33 = vector.load %arg0[%c2, %c0_25, %c0_26] : memref<9x128x64xbf16, #tpu.memory_space<vmem>>, vector<1x128x64xbf16>
    %34 = vector.shape_cast %33 : vector<1x128x64xbf16> to vector<128x64xbf16>
    %cst_27 = arith.constant dense<0.000000e+00> : vector<128x32xf32>
    %35 = tpu.matmul %34, %0, %cst_27 {dimension_numbers = #tpu.dot_dimension_numbers<[1], [0], [0], [1], [0, 0, 1, 1], [], []>} : vector<128x64xbf16>, vector<64x32xbf16>, vector<128x32xf32> -> vector<128x32xf32>
    %36 = vector.broadcast %1 : vector<1x32xf32> to vector<128x32xf32>
    %37 = arith.addf %35, %36 : vector<128x32xf32>
    %cst_28 = arith.constant 0.000000e+00 : f32
    %38 = vector.broadcast %cst_28 : f32 to vector<128x32xf32>
    %39 = arith.maximumf %37, %38 : vector<128x32xf32>
    %c2_29 = arith.constant 2 : index
    %c0_30 = arith.constant 0 : index
    %c0_31 = arith.constant 0 : index
    %40 = vector.load %arg1[%c2_29, %c0_30, %c0_31] : memref<9x128x1xf32, #tpu.memory_space<vmem>>, vector<1x128x1xf32>
    %41 = vector.shape_cast %40 : vector<1x128x1xf32> to vector<128x1xf32>
    %42 = vector.broadcast %41 : vector<128x1xf32> to vector<128x32xf32>
    %43 = arith.mulf %39, %42 : vector<128x32xf32>
    %44 = arith.truncf %43 : vector<128x32xf32> to vector<128x32xbf16>
    %c2_32 = arith.constant 2 : index
    %c0_33 = arith.constant 0 : index
    %c0_34 = arith.constant 0 : index
    %45 = vector.load %arg4[%c2_32, %c0_33, %c0_34] : memref<9x32x32xbf16, #tpu.memory_space<vmem>>, vector<1x32x32xbf16>
    %46 = vector.shape_cast %45 : vector<1x32x32xbf16> to vector<32x32xbf16>
    %cst_35 = arith.constant dense<0.000000e+00> : vector<128x32xf32>
    %47 = tpu.matmul %44, %46, %cst_35 {dimension_numbers = #tpu.dot_dimension_numbers<[1], [0], [0], [1], [0, 0, 1, 1], [], []>} : vector<128x32xbf16>, vector<32x32xbf16>, vector<128x32xf32> -> vector<128x32xf32>
    %48 = arith.addf %32, %47 : vector<128x32xf32>
    %c3 = arith.constant 3 : index
    %c0_36 = arith.constant 0 : index
    %c0_37 = arith.constant 0 : index
    %49 = vector.load %arg0[%c3, %c0_36, %c0_37] : memref<9x128x64xbf16, #tpu.memory_space<vmem>>, vector<1x128x64xbf16>
    %50 = vector.shape_cast %49 : vector<1x128x64xbf16> to vector<128x64xbf16>
    %cst_38 = arith.constant dense<0.000000e+00> : vector<128x32xf32>
    %51 = tpu.matmul %50, %0, %cst_38 {dimension_numbers = #tpu.dot_dimension_numbers<[1], [0], [0], [1], [0, 0, 1, 1], [], []>} : vector<128x64xbf16>, vector<64x32xbf16>, vector<128x32xf32> -> vector<128x32xf32>
    %52 = vector.broadcast %1 : vector<1x32xf32> to vector<128x32xf32>
    %53 = arith.addf %51, %52 : vector<128x32xf32>
    %cst_39 = arith.constant 0.000000e+00 : f32
    %54 = vector.broadcast %cst_39 : f32 to vector<128x32xf32>
    %55 = arith.maximumf %53, %54 : vector<128x32xf32>
    %c3_40 = arith.constant 3 : index
    %c0_41 = arith.constant 0 : index
    %c0_42 = arith.constant 0 : index
    %56 = vector.load %arg1[%c3_40, %c0_41, %c0_42] : memref<9x128x1xf32, #tpu.memory_space<vmem>>, vector<1x128x1xf32>
    %57 = vector.shape_cast %56 : vector<1x128x1xf32> to vector<128x1xf32>
    %58 = vector.broadcast %57 : vector<128x1xf32> to vector<128x32xf32>
    %59 = arith.mulf %55, %58 : vector<128x32xf32>
    %60 = arith.truncf %59 : vector<128x32xf32> to vector<128x32xbf16>
    %c3_43 = arith.constant 3 : index
    %c0_44 = arith.constant 0 : index
    %c0_45 = arith.constant 0 : index
    %61 = vector.load %arg4[%c3_43, %c0_44, %c0_45] : memref<9x32x32xbf16, #tpu.memory_space<vmem>>, vector<1x32x32xbf16>
    %62 = vector.shape_cast %61 : vector<1x32x32xbf16> to vector<32x32xbf16>
    %cst_46 = arith.constant dense<0.000000e+00> : vector<128x32xf32>
    %63 = tpu.matmul %60, %62, %cst_46 {dimension_numbers = #tpu.dot_dimension_numbers<[1], [0], [0], [1], [0, 0, 1, 1], [], []>} : vector<128x32xbf16>, vector<32x32xbf16>, vector<128x32xf32> -> vector<128x32xf32>
    %64 = arith.addf %48, %63 : vector<128x32xf32>
    %c4 = arith.constant 4 : index
    %c0_47 = arith.constant 0 : index
    %c0_48 = arith.constant 0 : index
    %65 = vector.load %arg0[%c4, %c0_47, %c0_48] : memref<9x128x64xbf16, #tpu.memory_space<vmem>>, vector<1x128x64xbf16>
    %66 = vector.shape_cast %65 : vector<1x128x64xbf16> to vector<128x64xbf16>
    %cst_49 = arith.constant dense<0.000000e+00> : vector<128x32xf32>
    %67 = tpu.matmul %66, %0, %cst_49 {dimension_numbers = #tpu.dot_dimension_numbers<[1], [0], [0], [1], [0, 0, 1, 1], [], []>} : vector<128x64xbf16>, vector<64x32xbf16>, vector<128x32xf32> -> vector<128x32xf32>
    %68 = vector.broadcast %1 : vector<1x32xf32> to vector<128x32xf32>
    %69 = arith.addf %67, %68 : vector<128x32xf32>
    %cst_50 = arith.constant 0.000000e+00 : f32
    %70 = vector.broadcast %cst_50 : f32 to vector<128x32xf32>
    %71 = arith.maximumf %69, %70 : vector<128x32xf32>
    %c4_51 = arith.constant 4 : index
    %c0_52 = arith.constant 0 : index
    %c0_53 = arith.constant 0 : index
    %72 = vector.load %arg1[%c4_51, %c0_52, %c0_53] : memref<9x128x1xf32, #tpu.memory_space<vmem>>, vector<1x128x1xf32>
    %73 = vector.shape_cast %72 : vector<1x128x1xf32> to vector<128x1xf32>
    %74 = vector.broadcast %73 : vector<128x1xf32> to vector<128x32xf32>
    %75 = arith.mulf %71, %74 : vector<128x32xf32>
    %76 = arith.truncf %75 : vector<128x32xf32> to vector<128x32xbf16>
    %c4_54 = arith.constant 4 : index
    %c0_55 = arith.constant 0 : index
    %c0_56 = arith.constant 0 : index
    %77 = vector.load %arg4[%c4_54, %c0_55, %c0_56] : memref<9x32x32xbf16, #tpu.memory_space<vmem>>, vector<1x32x32xbf16>
    %78 = vector.shape_cast %77 : vector<1x32x32xbf16> to vector<32x32xbf16>
    %cst_57 = arith.constant dense<0.000000e+00> : vector<128x32xf32>
    %79 = tpu.matmul %76, %78, %cst_57 {dimension_numbers = #tpu.dot_dimension_numbers<[1], [0], [0], [1], [0, 0, 1, 1], [], []>} : vector<128x32xbf16>, vector<32x32xbf16>, vector<128x32xf32> -> vector<128x32xf32>
    %80 = arith.addf %64, %79 : vector<128x32xf32>
    %c5 = arith.constant 5 : index
    %c0_58 = arith.constant 0 : index
    %c0_59 = arith.constant 0 : index
    %81 = vector.load %arg0[%c5, %c0_58, %c0_59] : memref<9x128x64xbf16, #tpu.memory_space<vmem>>, vector<1x128x64xbf16>
    %82 = vector.shape_cast %81 : vector<1x128x64xbf16> to vector<128x64xbf16>
    %cst_60 = arith.constant dense<0.000000e+00> : vector<128x32xf32>
    %83 = tpu.matmul %82, %0, %cst_60 {dimension_numbers = #tpu.dot_dimension_numbers<[1], [0], [0], [1], [0, 0, 1, 1], [], []>} : vector<128x64xbf16>, vector<64x32xbf16>, vector<128x32xf32> -> vector<128x32xf32>
    %84 = vector.broadcast %1 : vector<1x32xf32> to vector<128x32xf32>
    %85 = arith.addf %83, %84 : vector<128x32xf32>
    %cst_61 = arith.constant 0.000000e+00 : f32
    %86 = vector.broadcast %cst_61 : f32 to vector<128x32xf32>
    %87 = arith.maximumf %85, %86 : vector<128x32xf32>
    %c5_62 = arith.constant 5 : index
    %c0_63 = arith.constant 0 : index
    %c0_64 = arith.constant 0 : index
    %88 = vector.load %arg1[%c5_62, %c0_63, %c0_64] : memref<9x128x1xf32, #tpu.memory_space<vmem>>, vector<1x128x1xf32>
    %89 = vector.shape_cast %88 : vector<1x128x1xf32> to vector<128x1xf32>
    %90 = vector.broadcast %89 : vector<128x1xf32> to vector<128x32xf32>
    %91 = arith.mulf %87, %90 : vector<128x32xf32>
    %92 = arith.truncf %91 : vector<128x32xf32> to vector<128x32xbf16>
    %c5_65 = arith.constant 5 : index
    %c0_66 = arith.constant 0 : index
    %c0_67 = arith.constant 0 : index
    %93 = vector.load %arg4[%c5_65, %c0_66, %c0_67] : memref<9x32x32xbf16, #tpu.memory_space<vmem>>, vector<1x32x32xbf16>
    %94 = vector.shape_cast %93 : vector<1x32x32xbf16> to vector<32x32xbf16>
    %cst_68 = arith.constant dense<0.000000e+00> : vector<128x32xf32>
    %95 = tpu.matmul %92, %94, %cst_68 {dimension_numbers = #tpu.dot_dimension_numbers<[1], [0], [0], [1], [0, 0, 1, 1], [], []>} : vector<128x32xbf16>, vector<32x32xbf16>, vector<128x32xf32> -> vector<128x32xf32>
    %96 = arith.addf %80, %95 : vector<128x32xf32>
    %c6 = arith.constant 6 : index
    %c0_69 = arith.constant 0 : index
    %c0_70 = arith.constant 0 : index
    %97 = vector.load %arg0[%c6, %c0_69, %c0_70] : memref<9x128x64xbf16, #tpu.memory_space<vmem>>, vector<1x128x64xbf16>
    %98 = vector.shape_cast %97 : vector<1x128x64xbf16> to vector<128x64xbf16>
    %cst_71 = arith.constant dense<0.000000e+00> : vector<128x32xf32>
    %99 = tpu.matmul %98, %0, %cst_71 {dimension_numbers = #tpu.dot_dimension_numbers<[1], [0], [0], [1], [0, 0, 1, 1], [], []>} : vector<128x64xbf16>, vector<64x32xbf16>, vector<128x32xf32> -> vector<128x32xf32>
    %100 = vector.broadcast %1 : vector<1x32xf32> to vector<128x32xf32>
    %101 = arith.addf %99, %100 : vector<128x32xf32>
    %cst_72 = arith.constant 0.000000e+00 : f32
    %102 = vector.broadcast %cst_72 : f32 to vector<128x32xf32>
    %103 = arith.maximumf %101, %102 : vector<128x32xf32>
    %c6_73 = arith.constant 6 : index
    %c0_74 = arith.constant 0 : index
    %c0_75 = arith.constant 0 : index
    %104 = vector.load %arg1[%c6_73, %c0_74, %c0_75] : memref<9x128x1xf32, #tpu.memory_space<vmem>>, vector<1x128x1xf32>
    %105 = vector.shape_cast %104 : vector<1x128x1xf32> to vector<128x1xf32>
    %106 = vector.broadcast %105 : vector<128x1xf32> to vector<128x32xf32>
    %107 = arith.mulf %103, %106 : vector<128x32xf32>
    %108 = arith.truncf %107 : vector<128x32xf32> to vector<128x32xbf16>
    %c6_76 = arith.constant 6 : index
    %c0_77 = arith.constant 0 : index
    %c0_78 = arith.constant 0 : index
    %109 = vector.load %arg4[%c6_76, %c0_77, %c0_78] : memref<9x32x32xbf16, #tpu.memory_space<vmem>>, vector<1x32x32xbf16>
    %110 = vector.shape_cast %109 : vector<1x32x32xbf16> to vector<32x32xbf16>
    %cst_79 = arith.constant dense<0.000000e+00> : vector<128x32xf32>
    %111 = tpu.matmul %108, %110, %cst_79 {dimension_numbers = #tpu.dot_dimension_numbers<[1], [0], [0], [1], [0, 0, 1, 1], [], []>} : vector<128x32xbf16>, vector<32x32xbf16>, vector<128x32xf32> -> vector<128x32xf32>
    %112 = arith.addf %96, %111 : vector<128x32xf32>
    %c7 = arith.constant 7 : index
    %c0_80 = arith.constant 0 : index
    %c0_81 = arith.constant 0 : index
    %113 = vector.load %arg0[%c7, %c0_80, %c0_81] : memref<9x128x64xbf16, #tpu.memory_space<vmem>>, vector<1x128x64xbf16>
    %114 = vector.shape_cast %113 : vector<1x128x64xbf16> to vector<128x64xbf16>
    %cst_82 = arith.constant dense<0.000000e+00> : vector<128x32xf32>
    %115 = tpu.matmul %114, %0, %cst_82 {dimension_numbers = #tpu.dot_dimension_numbers<[1], [0], [0], [1], [0, 0, 1, 1], [], []>} : vector<128x64xbf16>, vector<64x32xbf16>, vector<128x32xf32> -> vector<128x32xf32>
    %116 = vector.broadcast %1 : vector<1x32xf32> to vector<128x32xf32>
    %117 = arith.addf %115, %116 : vector<128x32xf32>
    %cst_83 = arith.constant 0.000000e+00 : f32
    %118 = vector.broadcast %cst_83 : f32 to vector<128x32xf32>
    %119 = arith.maximumf %117, %118 : vector<128x32xf32>
    %c7_84 = arith.constant 7 : index
    %c0_85 = arith.constant 0 : index
    %c0_86 = arith.constant 0 : index
    %120 = vector.load %arg1[%c7_84, %c0_85, %c0_86] : memref<9x128x1xf32, #tpu.memory_space<vmem>>, vector<1x128x1xf32>
    %121 = vector.shape_cast %120 : vector<1x128x1xf32> to vector<128x1xf32>
    %122 = vector.broadcast %121 : vector<128x1xf32> to vector<128x32xf32>
    %123 = arith.mulf %119, %122 : vector<128x32xf32>
    %124 = arith.truncf %123 : vector<128x32xf32> to vector<128x32xbf16>
    %c7_87 = arith.constant 7 : index
    %c0_88 = arith.constant 0 : index
    %c0_89 = arith.constant 0 : index
    %125 = vector.load %arg4[%c7_87, %c0_88, %c0_89] : memref<9x32x32xbf16, #tpu.memory_space<vmem>>, vector<1x32x32xbf16>
    %126 = vector.shape_cast %125 : vector<1x32x32xbf16> to vector<32x32xbf16>
    %cst_90 = arith.constant dense<0.000000e+00> : vector<128x32xf32>
    %127 = tpu.matmul %124, %126, %cst_90 {dimension_numbers = #tpu.dot_dimension_numbers<[1], [0], [0], [1], [0, 0, 1, 1], [], []>} : vector<128x32xbf16>, vector<32x32xbf16>, vector<128x32xf32> -> vector<128x32xf32>
    %128 = arith.addf %112, %127 : vector<128x32xf32>
    %c8 = arith.constant 8 : index
    %c0_91 = arith.constant 0 : index
    %c0_92 = arith.constant 0 : index
    %129 = vector.load %arg0[%c8, %c0_91, %c0_92] : memref<9x128x64xbf16, #tpu.memory_space<vmem>>, vector<1x128x64xbf16>
    %130 = vector.shape_cast %129 : vector<1x128x64xbf16> to vector<128x64xbf16>
    %cst_93 = arith.constant dense<0.000000e+00> : vector<128x32xf32>
    %131 = tpu.matmul %130, %0, %cst_93 {dimension_numbers = #tpu.dot_dimension_numbers<[1], [0], [0], [1], [0, 0, 1, 1], [], []>} : vector<128x64xbf16>, vector<64x32xbf16>, vector<128x32xf32> -> vector<128x32xf32>
    %132 = vector.broadcast %1 : vector<1x32xf32> to vector<128x32xf32>
    %133 = arith.addf %131, %132 : vector<128x32xf32>
    %cst_94 = arith.constant 0.000000e+00 : f32
    %134 = vector.broadcast %cst_94 : f32 to vector<128x32xf32>
    %135 = arith.maximumf %133, %134 : vector<128x32xf32>
    %c8_95 = arith.constant 8 : index
    %c0_96 = arith.constant 0 : index
    %c0_97 = arith.constant 0 : index
    %136 = vector.load %arg1[%c8_95, %c0_96, %c0_97] : memref<9x128x1xf32, #tpu.memory_space<vmem>>, vector<1x128x1xf32>
    %137 = vector.shape_cast %136 : vector<1x128x1xf32> to vector<128x1xf32>
    %138 = vector.broadcast %137 : vector<128x1xf32> to vector<128x32xf32>
    %139 = arith.mulf %135, %138 : vector<128x32xf32>
    %140 = arith.truncf %139 : vector<128x32xf32> to vector<128x32xbf16>
    %c8_98 = arith.constant 8 : index
    %c0_99 = arith.constant 0 : index
    %c0_100 = arith.constant 0 : index
    %141 = vector.load %arg4[%c8_98, %c0_99, %c0_100] : memref<9x32x32xbf16, #tpu.memory_space<vmem>>, vector<1x32x32xbf16>
    %142 = vector.shape_cast %141 : vector<1x32x32xbf16> to vector<32x32xbf16>
    %cst_101 = arith.constant dense<0.000000e+00> : vector<128x32xf32>
    %143 = tpu.matmul %140, %142, %cst_101 {dimension_numbers = #tpu.dot_dimension_numbers<[1], [0], [0], [1], [0, 0, 1, 1], [], []>} : vector<128x32xbf16>, vector<32x32xbf16>, vector<128x32xf32> -> vector<128x32xf32>
    %144 = arith.addf %128, %143 : vector<128x32xf32>
    %c0_102 = arith.constant 0 : index
    %c0_103 = arith.constant 0 : index
    %145 = vector.load %arg5[%c0_102, %c0_103] : memref<1x32xf32, #tpu.memory_space<vmem>>, vector<1x32xf32>
    %146 = vector.broadcast %145 : vector<1x32xf32> to vector<128x32xf32>
    %147 = arith.addf %144, %146 : vector<128x32xf32>
    %cst_104 = arith.constant 0.000000e+00 : f32
    %148 = vector.broadcast %cst_104 : f32 to vector<128x32xf32>
    %149 = arith.maximumf %147, %148 : vector<128x32xf32>
    %c4_105 = arith.constant 4 : index
    %c0_106 = arith.constant 0 : index
    %c0_107 = arith.constant 0 : index
    %150 = vector.load %arg0[%c4_105, %c0_106, %c0_107] : memref<9x128x64xbf16, #tpu.memory_space<vmem>>, vector<1x128x64xbf16>
    %151 = vector.shape_cast %150 : vector<1x128x64xbf16> to vector<128x64xbf16>
    %152 = arith.truncf %149 : vector<128x32xf32> to vector<128x32xbf16>
    %153 = tpu.concatenate %152, %151 in 1 : vector<128x32xbf16>, vector<128x64xbf16> -> vector<128x96xbf16>
    %c0_108 = arith.constant 0 : index
    %c0_109 = arith.constant 0 : index
    %154 = vector.load %arg6[%c0_108, %c0_109] : memref<96x128xbf16, #tpu.memory_space<vmem>>, vector<96x128xbf16>
    %cst_110 = arith.constant dense<0.000000e+00> : vector<128x128xf32>
    %155 = tpu.matmul %153, %154, %cst_110 {dimension_numbers = #tpu.dot_dimension_numbers<[1], [0], [0], [1], [0, 0, 1, 1], [], []>} : vector<128x96xbf16>, vector<96x128xbf16>, vector<128x128xf32> -> vector<128x128xf32>
    %c0_111 = arith.constant 0 : index
    %c0_112 = arith.constant 0 : index
    %156 = vector.load %arg7[%c0_111, %c0_112] : memref<1x128xf32, #tpu.memory_space<vmem>>, vector<1x128xf32>
    %157 = vector.broadcast %156 : vector<1x128xf32> to vector<128x128xf32>
    %158 = arith.addf %155, %157 : vector<128x128xf32>
    %cst_113 = arith.constant 0.000000e+00 : f32
    %159 = vector.broadcast %cst_113 : f32 to vector<128x128xf32>
    %160 = arith.maximumf %158, %159 : vector<128x128xf32>
    %c0_114 = arith.constant 0 : index
    %c0_115 = arith.constant 0 : index
    %161 = vector.load %arg8[%c0_114, %c0_115] : memref<128x10xf32, #tpu.memory_space<vmem>>, vector<128x10xf32>
    %cst_116 = arith.constant dense<0.000000e+00> : vector<128x10xf32>
    %162 = tpu.matmul %160, %161, %cst_116 {dimension_numbers = #tpu.dot_dimension_numbers<[1], [0], [0], [1], [0, 0, 1, 1], [], []>} : vector<128x128xf32>, vector<128x10xf32>, vector<128x10xf32> -> vector<128x10xf32>
    %163 = vector.extract_strided_slice %162 {offsets = [0, 0], sizes = [64, 10], strides = [1, 1]} : vector<128x10xf32> to vector<64x10xf32>
    %cst_117 = arith.constant dense<0.000000e+00> : vector<10xf32>
    %164 = vector.multi_reduction <add>, %163, %cst_117 [0] : vector<64x10xf32> to vector<10xf32>
    %165 = vector.shape_cast %164 : vector<10xf32> to vector<1x10xf32>
    %cst_118 = arith.constant 1.562500e-02 : f32
    %166 = vector.broadcast %cst_118 : f32 to vector<1x10xf32>
    %167 = arith.mulf %165, %166 : vector<1x10xf32>
    %c0_119 = arith.constant 0 : index
    %c0_120 = arith.constant 0 : index
    %168 = vector.load %arg9[%c0_119, %c0_120] : memref<1x10xf32, #tpu.memory_space<vmem>>, vector<1x10xf32>
    %169 = arith.addf %167, %168 : vector<1x10xf32>
    %c0_121 = arith.constant 0 : index
    %c0_122 = arith.constant 0 : index
    %170 = vector.load %arg10[%c0_121, %c0_122] : memref<2x10xf32, #tpu.memory_space<vmem>>, vector<1x10xf32>
    tpu.vector_store %arg10[%c0_121, %c0_122], %169 {strides = array<i32>} : memref<2x10xf32, #tpu.memory_space<vmem>>, vector<1x10xf32>,
    %171 = vector.extract_strided_slice %162 {offsets = [64, 0], sizes = [64, 10], strides = [1, 1]} : vector<128x10xf32> to vector<64x10xf32>
    %cst_123 = arith.constant dense<0.000000e+00> : vector<10xf32>
    %172 = vector.multi_reduction <add>, %171, %cst_123 [0] : vector<64x10xf32> to vector<10xf32>
    %173 = vector.shape_cast %172 : vector<10xf32> to vector<1x10xf32>
    %cst_124 = arith.constant 1.562500e-02 : f32
    %174 = vector.broadcast %cst_124 : f32 to vector<1x10xf32>
    %175 = arith.mulf %173, %174 : vector<1x10xf32>
    %c0_125 = arith.constant 0 : index
    %c0_126 = arith.constant 0 : index
    %176 = vector.load %arg9[%c0_125, %c0_126] : memref<1x10xf32, #tpu.memory_space<vmem>>, vector<1x10xf32>
    %177 = arith.addf %175, %176 : vector<1x10xf32>
    %c1_127 = arith.constant 1 : index
    %c0_128 = arith.constant 0 : index
    %178 = vector.load %arg10[%c1_127, %c0_128] : memref<2x10xf32, #tpu.memory_space<vmem>>, vector<1x10xf32>
    tpu.vector_store %arg10[%c1_127, %c0_128], %177 {strides = array<i32>} : memref<2x10xf32, #tpu.memory_space<vmem>>, vector<1x10xf32>,
    return
  }
}

</mosaic_0001>

<llo_original>
// kernel: resnext_forward.2
$region0: #{resnext_forward.2}
  #allocation0 [shape = 'u32[]', space=smem, size = 0x4, offset = 0x4, fixed_abs, tag = 'smem constant byte address 0x4 - core index']
  #allocation1 [shape = 'u32[144,128]{1,0:T(1,128)}', space=vmem, size = 0x12000, scoped, tag = 'internal scratch']
  %s0 = inlined_call_operand.vmem [shape: bf16[512,147], index: 0, kind: input, shape index: {}]
  %s1 = inlined_call_operand.vmem [shape: bf16[147,64], index: 1, kind: input, shape index: {}]
  %s2 = inlined_call_operand.vmem [shape: f32[1,64], index: 2, kind: input, shape index: {}]
  %s3 = inlined_call_operand.vmem [shape: bf16[512,64], index: 3, kind: output, shape index: {}]
  %s4 = sld [smem:[#allocation0]]
  $region22: #{resnext_forward.2} parent=0
    _
  %s6 = ssub.s32 1, %s4
  %s7 = scalar_select 0, %s6, %s4
  // Predicated region
  $region2: #{resnext_forward.2} parent=0 // pred_check
    _
  $region3: #{resnext_forward.2} parent=0 // pred_check_branch
    %9 = sbr.rel (0) target = $region5
  $region4: #{resnext_forward.2} parent=0 // pred_region
    _
  $region5: #{resnext_forward.2} parent=0 // pred_fallthru
    _
  // Predicated region
  $region6: #{resnext_forward.2} parent=0 // pred_check
    _
  $region7: #{resnext_forward.2} parent=0 // pred_check_branch
    %11 = sbr.rel (0) target = $region9
  $region8: #{resnext_forward.2} parent=0 // pred_region
    _
  $region9: #{resnext_forward.2} parent=0 // pred_fallthru
    _
  // Predicated region
  $region10: #{resnext_forward.2} parent=0 // pred_check
    _
  $region11: #{resnext_forward.2} parent=0 // pred_check_branch
    %13 = sbr.rel (0) target = $region13
  $region12: #{resnext_forward.2} parent=0 // pred_region
    _
  $region13: #{resnext_forward.2} parent=0 // pred_fallthru
    _
  %v15 = vld [vmem:[%s0] sm:$0xff]
  %v16 = vld [vmem:[%s0 + $0x8] sm:$0xff]
  %v17 = vld [vmem:[%s0 + $0x10] sm:$0xff]
  %v18 = vld [vmem:[%s0 + $0x18] sm:$0xff]
  %v19 = vld [vmem:[%s0 + $0x20] sm:$0xff]
  %v20 = vld [vmem:[%s0 + $0x28] sm:$0xff]
  %v21 = vld [vmem:[%s0 + $0x30] sm:$0xff]
  %v22 = vld [vmem:[%s0 + $0x38] sm:$0xff]
  %v23 = vld [vmem:[%s0 + $0x40] sm:$0xff]
  %v24 = vld [vmem:[%s0 + $0x48] sm:$0xff]
  %v25 = vld [vmem:[%s0 + $0x50] sm:$0xff]
  %v26 = vld [vmem:[%s0 + $0x58] sm:$0xff]
  %v27 = vld [vmem:[%s0 + $0x60] sm:$0xff]
  %v28 = vld [vmem:[%s0 + $0x68] sm:$0xff]
  %v29 = vld [vmem:[%s0 + $0x70] sm:$0xff]
  %v30 = vld [vmem:[%s0 + $0x78] sm:$0xff]
  %v31 = vld [vmem:[%s0 + $0x80] sm:$0xff]
  %v32 = vld [vmem:[%s0 + $0x88] sm:$0xff]
  %v33 = vld [vmem:[%s0 + $0x90] sm:$0xff]
  %v34 = vld [vmem:[%s0 + $0x98] sm:$0xff]
  %v35 = vld [vmem:[%s0 + $0xa0] sm:$0xff]
  %v36 = vld [vmem:[%s0 + $0xa8] sm:$0xff]
  %v37 = vld [vmem:[%s0 + $0xb0] sm:$0xff]
  %v38 = vld [vmem:[%s0 + $0xb8] sm:$0xff]
  %v39 = vld [vmem:[%s0 + $0xc0] sm:$0xff]
  %v40 = vld [vmem:[%s0 + $0xc8] sm:$0xff]
  %v41 = vld [vmem:[%s0 + $0xd0] sm:$0xff]
  %v42 = vld [vmem:[%s0 + $0xd8] sm:$0xff]
  %v43 = vld [vmem:[%s0 + $0xe0] sm:$0xff]
  %v44 = vld [vmem:[%s0 + $0xe8] sm:$0xff]
  %v45 = vld [vmem:[%s0 + $0xf0] sm:$0xff]
  %v46 = vld [vmem:[%s0 + $0xf8] sm:$0xff]
  %v47 = vld [vmem:[%s0 + $0x100] sm:$0xff]
  %v48 = vld [vmem:[%s0 + $0x108] sm:$0xff]
  %v49 = vld [vmem:[%s0 + $0x110] sm:$0xff]
  %v50 = vld [vmem:[%s0 + $0x118] sm:$0xff]
  %v51 = vld [vmem:[%s0 + $0x120] sm:$0xff]
  %v52 = vld [vmem:[%s0 + $0x128] sm:$0xff]
  %v53 = vld [vmem:[%s0 + $0x130] sm:$0xff]
  %v54 = vld [vmem:[%s0 + $0x138] sm:$0xff]
  %v55 = vld [vmem:[%s0 + $0x140] sm:$0xff]
  %v56 = vld [vmem:[%s0 + $0x148] sm:$0xff]
  %v57 = vld [vmem:[%s0 + $0x150] sm:$0xff]
  %v58 = vld [vmem:[%s0 + $0x158] sm:$0xff]
  %v59 = vld [vmem:[%s0 + $0x160] sm:$0xff]
  %v60 = vld [vmem:[%s0 + $0x168] sm:$0xff]
  %v61 = vld [vmem:[%s0 + $0x170] sm:$0xff]
  %v62 = vld [vmem:[%s0 + $0x178] sm:$0xff]
  %v63 = vld [vmem:[%s0 + $0x180] sm:$0xff]
  %v64 = vld [vmem:[%s0 + $0x188] sm:$0xff]
  %v65 = vld [vmem:[%s0 + $0x190] sm:$0xff]
  %v66 = vld [vmem:[%s0 + $0x198] sm:$0xff]
  %v67 = vld [vmem:[%s0 + $0x1a0] sm:$0xff]
  %v68 = vld [vmem:[%s0 + $0x1a8] sm:$0xff]
  %v69 = vld [vmem:[%s0 + $0x1b0] sm:$0xff]
  %v70 = vld [vmem:[%s0 + $0x1b8] sm:$0xff]
  %v71 = vld [vmem:[%s0 + $0x1c0] sm:$0xff]
  %v72 = vld [vmem:[%s0 + $0x1c8] sm:$0xff]
  %v73 = vld [vmem:[%s0 + $0x1d0] sm:$0xff]
  %v74 = vld [vmem:[%s0 + $0x1d8] sm:$0xff]
  %v75 = vld [vmem:[%s0 + $0x1e0] sm:$0xff]
  %v76 = vld [vmem:[%s0 + $0x1e8] sm:$0xff]
  %v77 = vld [vmem:[%s0 + $0x1f0] sm:$0xff]
  %v78 = vld [vmem:[%s0 + $0x1f8] sm:$0xff]
  %v79 = vld [vmem:[%s1] sm:$0xf]
  %v80 = vld [vmem:[%s1 + $0x4] sm:$0xf]
  %v81 = vld [vmem:[%s1 + $0x8] sm:$0xf]
  %v82 = vld [vmem:[%s1 + $0xc] sm:$0xf]
  %v83 = vld [vmem:[%s1 + $0x10] sm:$0xf]
  %v84 = vld [vmem:[%s1 + $0x14] sm:$0xf]
  %v85 = vld [vmem:[%s1 + $0x18] sm:$0xf]
  %v86 = vld [vmem:[%s1 + $0x1c] sm:$0xf]
  %v87 = vld [vmem:[%s1 + $0x20] sm:$0xf]
  %v88 = vld [vmem:[%s1 + $0x24] sm:$0xf]
  %v89 = vld [vmem:[%s1 + $0x28] sm:$0xf]
  %v90 = vld [vmem:[%s1 + $0x2c] sm:$0xf]
  %v91 = vld [vmem:[%s1 + $0x30] sm:$0xf]
  %v92 = vld [vmem:[%s1 + $0x34] sm:$0xf]
  %v93 = vld [vmem:[%s1 + $0x38] sm:$0xf]
  %v94 = vld [vmem:[%s1 + $0x3c] sm:$0xf]
  %v95 = vld [vmem:[%s1 + $0x40] sm:$0xf]
  %v96 = vld [vmem:[%s1 + $0x44] sm:$0xf]
  %v97 = vld [vmem:[%s1 + $0x48] sm:$0x3]
  %v98 = vld [vmem:[%s2] sm:$0x1]
  %v100 = vlaneseq
  %v101 = vshrl.u32 %v100, 7
  %v102 = vsub.s32 0, %v101
  %v103 = vrot.slane %v98, %v102
  %v169 = vunpack.c.l.b16 %v15
  %v170 = vunpack.c.h.b16 %v15
  %v171 = vunpack.c.l.b16 %v16
  %v172 = vunpack.c.h.b16 %v16
  %v173 = vunpack.c.l.b16 %v17
  %v174 = vunpack.c.h.b16 %v17
  %v175 = vunpack.c.l.b16 %v18
  %v176 = vunpack.c.h.b16 %v18
  %v177 = vunpack.c.l.b16 %v19
  %v178 = vunpack.c.h.b16 %v19
  %v179 = vunpack.c.l.b16 %v20
  %v180 = vunpack.c.h.b16 %v20
  %v181 = vunpack.c.l.b16 %v21
  %v182 = vunpack.c.h.b16 %v21
  %v183 = vunpack.c.l.b16 %v22
  %v184 = vunpack.c.h.b16 %v22
  %v185 = vunpack.c.l.b16 %v23
  %v186 = vunpack.c.h.b16 %v23
  %v187 = vunpack.c.l.b16 %v24
  %v188 = vunpack.c.h.b16 %v24
  %v189 = vunpack.c.l.b16 %v25
  %v190 = vunpack.c.h.b16 %v25
  %v191 = vunpack.c.l.b16 %v26
  %v192 = vunpack.c.h.b16 %v26
  %v193 = vunpack.c.l.b16 %v27
  %v194 = vunpack.c.h.b16 %v27
  %v195 = vunpack.c.l.b16 %v28
  %v196 = vunpack.c.h.b16 %v28
  %v197 = vunpack.c.l.b16 %v29
  %v198 = vunpack.c.h.b16 %v29
  %v199 = vunpack.c.l.b16 %v30
  %v200 = vunpack.c.h.b16 %v30
  %v201 = vunpack.c.l.b16 %v31
  %v202 = vunpack.c.h.b16 %v31
  %v203 = vunpack.c.l.b16 %v32
  %v204 = vunpack.c.h.b16 %v32
  %v205 = vunpack.c.l.b16 %v33
  %v206 = vunpack.c.h.b16 %v33
  %v207 = vunpack.c.l.b16 %v34
  %v208 = vunpack.c.h.b16 %v34
  %v209 = vunpack.c.l.b16 %v35
  %v210 = vunpack.c.h.b16 %v35
  %v211 = vunpack.c.l.b16 %v36
  %v212 = vunpack.c.h.b16 %v36
  %v213 = vunpack.c.l.b16 %v37
  %v214 = vunpack.c.h.b16 %v37
  %v215 = vunpack.c.l.b16 %v38
  %v216 = vunpack.c.h.b16 %v38
  %v217 = vunpack.c.l.b16 %v39
  %v218 = vunpack.c.h.b16 %v39
  %v219 = vunpack.c.l.b16 %v40
  %v220 = vunpack.c.h.b16 %v40
  %v221 = vunpack.c.l.b16 %v41
  %v222 = vunpack.c.h.b16 %v41
  %v223 = vunpack.c.l.b16 %v42
  %v224 = vunpack.c.h.b16 %v42
  %v225 = vunpack.c.l.b16 %v43
  %v226 = vunpack.c.h.b16 %v43
  %v227 = vunpack.c.l.b16 %v44
  %v228 = vunpack.c.h.b16 %v44
  %v229 = vunpack.c.l.b16 %v45
  %v230 = vunpack.c.h.b16 %v45
  %v231 = vunpack.c.l.b16 %v46
  %v232 = vunpack.c.h.b16 %v46
  %v233 = vunpack.c.l.b16 %v47
  %v234 = vunpack.c.h.b16 %v47
  %v235 = vunpack.c.l.b16 %v48
  %v236 = vunpack.c.h.b16 %v48
  %v237 = vunpack.c.l.b16 %v49
  %v238 = vunpack.c.h.b16 %v49
  %v239 = vunpack.c.l.b16 %v50
  %v240 = vunpack.c.h.b16 %v50
  %v241 = vunpack.c.l.b16 %v51
  %v242 = vunpack.c.h.b16 %v51
  %v243 = vunpack.c.l.b16 %v52
  %v244 = vunpack.c.h.b16 %v52
  %v245 = vunpack.c.l.b16 %v53
  %v246 = vunpack.c.h.b16 %v53
  %v247 = vunpack.c.l.b16 %v54
  %v248 = vunpack.c.h.b16 %v54
  %v249 = vunpack.c.l.b16 %v55
  %v250 = vunpack.c.h.b16 %v55
  %v251 = vunpack.c.l.b16 %v56
  %v252 = vunpack.c.h.b16 %v56
  %v253 = vunpack.c.l.b16 %v57
  %v254 = vunpack.c.h.b16 %v57
  %v255 = vunpack.c.l.b16 %v58
  %v256 = vunpack.c.h.b16 %v58
  %v257 = vunpack.c.l.b16 %v59
  %v258 = vunpack.c.h.b16 %v59
  %v259 = vunpack.c.l.b16 %v60
  %v260 = vunpack.c.h.b16 %v60
  %v261 = vunpack.c.l.b16 %v61
  %v262 = vunpack.c.h.b16 %v61
  %v263 = vunpack.c.l.b16 %v62
  %v264 = vunpack.c.h.b16 %v62
  %v265 = vunpack.c.l.b16 %v63
  %v266 = vunpack.c.h.b16 %v63
  %v267 = vunpack.c.l.b16 %v64
  %v268 = vunpack.c.h.b16 %v64
  %v269 = vunpack.c.l.b16 %v65
  %v270 = vunpack.c.h.b16 %v65
  %v271 = vunpack.c.l.b16 %v66
  %v272 = vunpack.c.h.b16 %v66
  %v273 = vunpack.c.l.b16 %v67
  %v274 = vunpack.c.h.b16 %v67
  %v275 = vunpack.c.l.b16 %v68
  %v276 = vunpack.c.h.b16 %v68
  %v277 = vunpack.c.l.b16 %v69
  %v278 = vunpack.c.h.b16 %v69
  %v279 = vunpack.c.l.b16 %v70
  %v280 = vunpack.c.h.b16 %v70
  %v281 = vunpack.c.l.b16 %v71
  %v282 = vunpack.c.h.b16 %v71
  %v283 = vunpack.c.l.b16 %v72
  %v284 = vunpack.c.h.b16 %v72
  %v285 = vunpack.c.l.b16 %v73
  %v286 = vunpack.c.h.b16 %v73
  %v287 = vunpack.c.l.b16 %v74
  %v288 = vunpack.c.h.b16 %v74
  %v289 = vunpack.c.l.b16 %v75
  %v290 = vunpack.c.h.b16 %v75
  %v291 = vunpack.c.l.b16 %v76
  %v292 = vunpack.c.h.b16 %v76
  %v293 = vunpack.c.l.b16 %v77
  %v294 = vunpack.c.h.b16 %v77
  %v295 = vunpack.c.l.b16 %v78
  %v296 = vunpack.c.h.b16 %v78
  %v297 = vpack.c.b16 %v171, %v169
  %v298 = vpack.c.b16 %v172, %v170
  %v299 = vpack.c.b16 %v175, %v173
  %v300 = vpack.c.b16 %v176, %v174
  %v301 = vpack.c.b16 %v179, %v177
  %v302 = vpack.c.b16 %v180, %v178
  %v303 = vpack.c.b16 %v183, %v181
  %v304 = vpack.c.b16 %v184, %v182
  %v305 = vpack.c.b16 %v187, %v185
  %v306 = vpack.c.b16 %v188, %v186
  %v307 = vpack.c.b16 %v191, %v189
  %v308 = vpack.c.b16 %v192, %v190
  %v309 = vpack.c.b16 %v195, %v193
  %v310 = vpack.c.b16 %v196, %v194
  %v311 = vpack.c.b16 %v199, %v197
  %v312 = vpack.c.b16 %v200, %v198
  %v313 = vpack.c.b16 %v203, %v201
  %v314 = vpack.c.b16 %v204, %v202
  %v315 = vpack.c.b16 %v207, %v205
  %v316 = vpack.c.b16 %v208, %v206
  %v317 = vpack.c.b16 %v211, %v209
  %v318 = vpack.c.b16 %v212, %v210
  %v319 = vpack.c.b16 %v215, %v213
  %v320 = vpack.c.b16 %v216, %v214
  %v321 = vpack.c.b16 %v219, %v217
  %v322 = vpack.c.b16 %v220, %v218
  %v323 = vpack.c.b16 %v223, %v221
  %v324 = vpack.c.b16 %v224, %v222
  %v325 = vpack.c.b16 %v227, %v225
  %v326 = vpack.c.b16 %v228, %v226
  %v327 = vpack.c.b16 %v231, %v229
  %v328 = vpack.c.b16 %v232, %v230
  %v329 = vpack.c.b16 %v235, %v233
  %v330 = vpack.c.b16 %v236, %v234
  %v331 = vpack.c.b16 %v239, %v237
  %v332 = vpack.c.b16 %v240, %v238
  %v333 = vpack.c.b16 %v243, %v241
  %v334 = vpack.c.b16 %v244, %v242
  %v335 = vpack.c.b16 %v247, %v245
  %v336 = vpack.c.b16 %v248, %v246
  %v337 = vpack.c.b16 %v251, %v249
  %v338 = vpack.c.b16 %v252, %v250
  %v339 = vpack.c.b16 %v255, %v253
  %v340 = vpack.c.b16 %v256, %v254
  %v341 = vpack.c.b16 %v259, %v257
  %v342 = vpack.c.b16 %v260, %v258
  %v343 = vpack.c.b16 %v263, %v261
  %v344 = vpack.c.b16 %v264, %v262
  %v345 = vpack.c.b16 %v267, %v265
  %v346 = vpack.c.b16 %v268, %v266
  %v347 = vpack.c.b16 %v271, %v269
  %v348 = vpack.c.b16 %v272, %v270
  %v349 = vpack.c.b16 %v275, %v273
  %v350 = vpack.c.b16 %v276, %v274
  %v351 = vpack.c.b16 %v279, %v277
  %v352 = vpack.c.b16 %v280, %v278
  %v353 = vpack.c.b16 %v283, %v281
  %v354 = vpack.c.b16 %v284, %v282
  %v355 = vpack.c.b16 %v287, %v285
  %v356 = vpack.c.b16 %v288, %v286
  %v357 = vpack.c.b16 %v291, %v289
  %v358 = vpack.c.b16 %v292, %v290
  %v359 = vpack.c.b16 %v295, %v293
  %v360 = vpack.c.b16 %v296, %v294
  %v412 = vunpack.c.l.b16 %v79
  %v413 = vunpack.c.l.b16 %v80
  %v414 = vunpack.c.l.b16 %v81
  %v415 = vunpack.c.l.b16 %v82
  %v416 = vunpack.c.l.b16 %v83
  %v417 = vunpack.c.l.b16 %v84
  %v418 = vunpack.c.l.b16 %v85
  %v419 = vunpack.c.l.b16 %v86
  %v420 = vunpack.c.l.b16 %v87
  %v421 = vunpack.c.l.b16 %v88
  %v422 = vunpack.c.l.b16 %v89
  %v423 = vunpack.c.l.b16 %v90
  %v424 = vunpack.c.l.b16 %v91
  %v425 = vunpack.c.l.b16 %v92
  %v426 = vunpack.c.l.b16 %v93
  %v427 = vunpack.c.l.b16 %v94
  %v428 = vunpack.c.l.b16 %v95
  %v429 = vunpack.c.l.b16 %v96
  %v430 = vunpack.c.l.b16 %v97
  %v431 = vpack.c.b16 %v413, %v412
  %v432 = vpack.c.b16 %v415, %v414
  %v433 = vpack.c.b16 %v417, %v416
  %v434 = vpack.c.b16 %v419, %v418
  %v435 = vpack.c.b16 %v421, %v420
  %v436 = vpack.c.b16 %v423, %v422
  %v437 = vpack.c.b16 %v425, %v424
  %v438 = vpack.c.b16 %v427, %v426
  %v439 = vpack.c.b16 %v429, %v428
  %v440 = vpack.c.b16 %v430, %v430
  %vm450 = vcmask 154624
  %v452 = vsel %vm450, %v298, 0
  %v455 = vsel %vm450, %v300, 0
  %v458 = vsel %vm450, %v302, 0
  %v461 = vsel %vm450, %v304, 0
  %v464 = vsel %vm450, %v306, 0
  %v467 = vsel %vm450, %v308, 0
  %v470 = vsel %vm450, %v310, 0
  %v473 = vsel %vm450, %v312, 0
  %v476 = vsel %vm450, %v314, 0
  %v479 = vsel %vm450, %v316, 0
  %v482 = vsel %vm450, %v318, 0
  %v485 = vsel %vm450, %v320, 0
  %v488 = vsel %vm450, %v322, 0
  %v491 = vsel %vm450, %v324, 0
  %v494 = vsel %vm450, %v326, 0
  %v497 = vsel %vm450, %v328, 0
  %v500 = vsel %vm450, %v330, 0
  %v503 = vsel %vm450, %v332, 0
  %v506 = vsel %vm450, %v334, 0
  %v509 = vsel %vm450, %v336, 0
  %v512 = vsel %vm450, %v338, 0
  %v515 = vsel %vm450, %v340, 0
  %v518 = vsel %vm450, %v342, 0
  %v521 = vsel %vm450, %v344, 0
  %v524 = vsel %vm450, %v346, 0
  %v527 = vsel %vm450, %v348, 0
  %v530 = vsel %vm450, %v350, 0
  %v533 = vsel %vm450, %v352, 0
  %v536 = vsel %vm450, %v354, 0
  %v539 = vsel %vm450, %v356, 0
  %v542 = vsel %vm450, %v358, 0
  %v545 = vsel %vm450, %v360, 0
  %vm547 = vcmask 1040384
  %vm548 = vcmask 1041408
  %v549 = vsel %vm547, 4294967295, 65535
  %v550 = vsel %vm548, %v549, 0
  %v552 = vand.u32 %v440, %v550
  %554 = vmatprep.subr.bf16.mxu0 0
  %555 = vmatpush1.bf16.msra.mxu0 %v438
  %556 = vmatprep.subr.bf16.mxu0 0
  %557 = vmatpush1.bf16.msra.mxu0 %v437
  %558 = vmatprep.subr.bf16.mxu0 0
  %559 = vmatpush1.bf16.msra.mxu0 %v436
  %560 = vmatprep.subr.bf16.mxu0 0
  %561 = vmatpush1.bf16.msra.mxu0 %v435
  %562 = vmatprep.subr.bf16.mxu0 0
  %563 = vmatpush1.bf16.msra.mxu0 %v434
  %564 = vmatprep.subr.bf16.mxu0 0
  %565 = vmatpush1.bf16.msra.mxu0 %v433
  %566 = vmatprep.subr.bf16.mxu0 0
  %567 = vmatpush1.bf16.msra.mxu0 %v432
  %568 = vmatprep.subr.bf16.mxu0 0
  %569 = vmatpush1.bf16.msra.mxu0 %v431
  %570 = vmatprep.subr.bf16.mxu0 0
  %571 = vmatpush2.bf16.msra.mxu0 0
  %572 = vmatprep.subr.bf16.mxu0 0
  %573 = vmatpush2.bf16.msra.mxu0 0
  %574 = vmatprep.subr.bf16.mxu0 0
  %575 = vmatpush2.bf16.msra.mxu0 0
  %576 = vmatprep.subr.bf16.mxu0 0
  %577 = vmatpush2.bf16.msra.mxu0 0
  %578 = vmatprep.subr.bf16.mxu0 0
  %579 = vmatpush2.bf16.msra.mxu0 0
  %580 = vmatprep.subr.bf16.mxu0 0
  %581 = vmatpush2.bf16.msra.mxu0 0
  %582 = vmatprep.subr.bf16.mxu0 0
  %583 = vmatpush2.bf16.msra.mxu0 %v552
  %584 = vmatprep.subr.bf16.mxu0 0
  %585 = vmatpush2.bf16.msra.mxu0 %v439
  %586 = vmatprep.mubr.bf16.mxu0 %v452
  %587 = vmatmul.mubr.bf16.gmra.mxu0 %v297
  %v588 = vpop.f32.mrf.mxu0
  %v589 = vadd.f32 %v103, %v588
  %v590 = vpop.f32.mrf.mxu0
  %v591 = vpop.f32.mrf.mxu0
  %v592 = vadd.f32 %v103, %v591
  %v593 = vpop.f32.mrf.mxu0
  %594 = vmatprep.mubr.bf16.mxu0 %v455
  %595 = vmatmul.mubr.bf16.gmra.mxu0 %v299
  %v596 = vpop.f32.mrf.mxu0
  %v597 = vadd.f32 %v103, %v596
  %v598 = vpop.f32.mrf.mxu0
  %v599 = vpop.f32.mrf.mxu0
  %v600 = vadd.f32 %v103, %v599
  %v601 = vpop.f32.mrf.mxu0
  %602 = vmatprep.mubr.bf16.mxu0 %v458
  %603 = vmatmul.mubr.bf16.gmra.mxu0 %v301
  %v604 = vpop.f32.mrf.mxu0
  %v605 = vadd.f32 %v103, %v604
  %v606 = vpop.f32.mrf.mxu0
  %v607 = vpop.f32.mrf.mxu0
  %v608 = vadd.f32 %v103, %v607
  %v609 = vpop.f32.mrf.mxu0
  %610 = vmatprep.mubr.bf16.mxu0 %v461
  %611 = vmatmul.mubr.bf16.gmra.mxu0 %v303
  %v612 = vpop.f32.mrf.mxu0
  %v613 = vadd.f32 %v103, %v612
  %v614 = vpop.f32.mrf.mxu0
  %v615 = vpop.f32.mrf.mxu0
  %v616 = vadd.f32 %v103, %v615
  %v617 = vpop.f32.mrf.mxu0
  %618 = vmatprep.mubr.bf16.mxu0 %v464
  %619 = vmatmul.mubr.bf16.gmra.mxu0 %v305
  %v620 = vpop.f32.mrf.mxu0
  %v621 = vadd.f32 %v103, %v620
  %v622 = vpop.f32.mrf.mxu0
  %v623 = vpop.f32.mrf.mxu0
  %v624 = vadd.f32 %v103, %v623
  %v625 = vpop.f32.mrf.mxu0
  %626 = vmatprep.mubr.bf16.mxu0 %v467
  %627 = vmatmul.mubr.bf16.gmra.mxu0 %v307
  %v628 = vpop.f32.mrf.mxu0
  %v629 = vadd.f32 %v103, %v628
  %v630 = vpop.f32.mrf.mxu0
  %v631 = vpop.f32.mrf.mxu0
  %v632 = vadd.f32 %v103, %v631
  %v633 = vpop.f32.mrf.mxu0
  %634 = vmatprep.mubr.bf16.mxu0 %v470
  %635 = vmatmul.mubr.bf16.gmra.mxu0 %v309
  %v636 = vpop.f32.mrf.mxu0
  %v637 = vadd.f32 %v103, %v636
  %v638 = vpop.f32.mrf.mxu0
  %v639 = vpop.f32.mrf.mxu0
  %v640 = vadd.f32 %v103, %v639
  %v641 = vpop.f32.mrf.mxu0
  %642 = vmatprep.mubr.bf16.mxu0 %v473
  %643 = vmatmul.mubr.bf16.gmra.mxu0 %v311
  %v644 = vpop.f32.mrf.mxu0
  %v645 = vadd.f32 %v103, %v644
  %v646 = vpop.f32.mrf.mxu0
  %v647 = vpop.f32.mrf.mxu0
  %v648 = vadd.f32 %v103, %v647
  %v649 = vpop.f32.mrf.mxu0
  %650 = vmatprep.mubr.bf16.mxu0 %v476
  %651 = vmatmul.mubr.bf16.gmra.mxu0 %v313
  %v652 = vpop.f32.mrf.mxu0
  %v653 = vadd.f32 %v103, %v652
  %v654 = vpop.f32.mrf.mxu0
  %v655 = vpop.f32.mrf.mxu0
  %v656 = vadd.f32 %v103, %v655
  %v657 = vpop.f32.mrf.mxu0
  %658 = vmatprep.mubr.bf16.mxu0 %v479
  %659 = vmatmul.mubr.bf16.gmra.mxu0 %v315
  %v660 = vpop.f32.mrf.mxu0
  %v661 = vadd.f32 %v103, %v660
  %v662 = vpop.f32.mrf.mxu0
  %v663 = vpop.f32.mrf.mxu0
  %v664 = vadd.f32 %v103, %v663
  %v665 = vpop.f32.mrf.mxu0
  %666 = vmatprep.mubr.bf16.mxu0 %v482
  %667 = vmatmul.mubr.bf16.gmra.mxu0 %v317
  %v668 = vpop.f32.mrf.mxu0
  %v669 = vadd.f32 %v103, %v668
  %v670 = vpop.f32.mrf.mxu0
  %v671 = vpop.f32.mrf.mxu0
  %v672 = vadd.f32 %v103, %v671
  %v673 = vpop.f32.mrf.mxu0
  %674 = vmatprep.mubr.bf16.mxu0 %v485
  %675 = vmatmul.mubr.bf16.gmra.mxu0 %v319
  %v676 = vpop.f32.mrf.mxu0
  %v677 = vadd.f32 %v103, %v676
  %v678 = vpop.f32.mrf.mxu0
  %v679 = vpop.f32.mrf.mxu0
  %v680 = vadd.f32 %v103, %v679
  %v681 = vpop.f32.mrf.mxu0
  %682 = vmatprep.mubr.bf16.mxu0 %v488
  %683 = vmatmul.mubr.bf16.gmra.mxu0 %v321
  %v684 = vpop.f32.mrf.mxu0
  %v685 = vadd.f32 %v103, %v684
  %v686 = vpop.f32.mrf.mxu0
  %v687 = vpop.f32.mrf.mxu0
  %v688 = vadd.f32 %v103, %v687
  %v689 = vpop.f32.mrf.mxu0
  %690 = vmatprep.mubr.bf16.mxu0 %v491
  %691 = vmatmul.mubr.bf16.gmra.mxu0 %v323
  %v692 = vpop.f32.mrf.mxu0
  %v693 = vadd.f32 %v103, %v692
  %v694 = vpop.f32.mrf.mxu0
  %v695 = vpop.f32.mrf.mxu0
  %v696 = vadd.f32 %v103, %v695
  %v697 = vpop.f32.mrf.mxu0
  %698 = vmatprep.mubr.bf16.mxu0 %v494
  %699 = vmatmul.mubr.bf16.gmra.mxu0 %v325
  %v700 = vpop.f32.mrf.mxu0
  %v701 = vadd.f32 %v103, %v700
  %v702 = vpop.f32.mrf.mxu0
  %v703 = vpop.f32.mrf.mxu0
  %v704 = vadd.f32 %v103, %v703
  %v705 = vpop.f32.mrf.mxu0
  %706 = vmatprep.mubr.bf16.mxu0 %v497
  %707 = vmatmul.mubr.bf16.gmra.mxu0 %v327
  %v708 = vpop.f32.mrf.mxu0
  %v709 = vadd.f32 %v103, %v708
  %v710 = vpop.f32.mrf.mxu0
  %v711 = vpop.f32.mrf.mxu0
  %v712 = vadd.f32 %v103, %v711
  %v713 = vpop.f32.mrf.mxu0
  %714 = vmatprep.mubr.bf16.mxu0 %v500
  %715 = vmatmul.mubr.bf16.gmra.mxu0 %v329
  %v716 = vpop.f32.mrf.mxu0
  %v717 = vadd.f32 %v103, %v716
  %v718 = vpop.f32.mrf.mxu0
  %v719 = vpop.f32.mrf.mxu0
  %v720 = vadd.f32 %v103, %v719
  %v721 = vpop.f32.mrf.mxu0
  %722 = vmatprep.mubr.bf16.mxu0 %v503
  %723 = vmatmul.mubr.bf16.gmra.mxu0 %v331
  %v724 = vpop.f32.mrf.mxu0
  %v725 = vadd.f32 %v103, %v724
  %v726 = vpop.f32.mrf.mxu0
  %v727 = vpop.f32.mrf.mxu0
  %v728 = vadd.f32 %v103, %v727
  %v729 = vpop.f32.mrf.mxu0
  %730 = vmatprep.mubr.bf16.mxu0 %v506
  %731 = vmatmul.mubr.bf16.gmra.mxu0 %v333
  %v732 = vpop.f32.mrf.mxu0
  %v733 = vadd.f32 %v103, %v732
  %v734 = vpop.f32.mrf.mxu0
  %v735 = vpop.f32.mrf.mxu0
  %v736 = vadd.f32 %v103, %v735
  %v737 = vpop.f32.mrf.mxu0
  %738 = vmatprep.mubr.bf16.mxu0 %v509
  %739 = vmatmul.mubr.bf16.gmra.mxu0 %v335
  %v740 = vpop.f32.mrf.mxu0
  %v741 = vadd.f32 %v103, %v740
  %v742 = vpop.f32.mrf.mxu0
  %v743 = vpop.f32.mrf.mxu0
  %v744 = vadd.f32 %v103, %v743
  %v745 = vpop.f32.mrf.mxu0
  %746 = vmatprep.mubr.bf16.mxu0 %v512
  %747 = vmatmul.mubr.bf16.gmra.mxu0 %v337
  %v748 = vpop.f32.mrf.mxu0
  %v749 = vadd.f32 %v103, %v748
  %v750 = vpop.f32.mrf.mxu0
  %v751 = vpop.f32.mrf.mxu0
  %v752 = vadd.f32 %v103, %v751
  %v753 = vpop.f32.mrf.mxu0
  %754 = vmatprep.mubr.bf16.mxu0 %v515
  %755 = vmatmul.mubr.bf16.gmra.mxu0 %v339
  %v756 = vpop.f32.mrf.mxu0
  %v757 = vadd.f32 %v103, %v756
  %v758 = vpop.f32.mrf.mxu0
  %v759 = vpop.f32.mrf.mxu0
  %v760 = vadd.f32 %v103, %v759
  %v761 = vpop.f32.mrf.mxu0
  %762 = vmatprep.mubr.bf16.mxu0 %v518
  %763 = vmatmul.mubr.bf16.gmra.mxu0 %v341
  %v764 = vpop.f32.mrf.mxu0
  %v765 = vadd.f32 %v103, %v764
  %v766 = vpop.f32.mrf.mxu0
  %v767 = vpop.f32.mrf.mxu0
  %v768 = vadd.f32 %v103, %v767
  %v769 = vpop.f32.mrf.mxu0
  %770 = vmatprep.mubr.bf16.mxu0 %v521
  %771 = vmatmul.mubr.bf16.gmra.mxu0 %v343
  %v772 = vpop.f32.mrf.mxu0
  %v773 = vadd.f32 %v103, %v772
  %v774 = vpop.f32.mrf.mxu0
  %v775 = vpop.f32.mrf.mxu0
  %v776 = vadd.f32 %v103, %v775
  %v777 = vpop.f32.mrf.mxu0
  %778 = vmatprep.mubr.bf16.mxu0 %v524
  %779 = vmatmul.mubr.bf16.gmra.mxu0 %v345
  %v780 = vpop.f32.mrf.mxu0
  %v781 = vadd.f32 %v103, %v780
  %v782 = vpop.f32.mrf.mxu0
  %v783 = vpop.f32.mrf.mxu0
  %v784 = vadd.f32 %v103, %v783
  %v785 = vpop.f32.mrf.mxu0
  %786 = vmatprep.mubr.bf16.mxu0 %v527
  %787 = vmatmul.mubr.bf16.gmra.mxu0 %v347
  %v788 = vpop.f32.mrf.mxu0
  %v789 = vadd.f32 %v103, %v788
  %v790 = vpop.f32.mrf.mxu0
  %v791 = vpop.f32.mrf.mxu0
  %v792 = vadd.f32 %v103, %v791
  %v793 = vpop.f32.mrf.mxu0
  %794 = vmatprep.mubr.bf16.mxu0 %v530
  %795 = vmatmul.mubr.bf16.gmra.mxu0 %v349
  %v796 = vpop.f32.mrf.mxu0
  %v797 = vadd.f32 %v103, %v796
  %v798 = vpop.f32.mrf.mxu0
  %v799 = vpop.f32.mrf.mxu0
  %v800 = vadd.f32 %v103, %v799
  %v801 = vpop.f32.mrf.mxu0
  %802 = vmatprep.mubr.bf16.mxu0 %v533
  %803 = vmatmul.mubr.bf16.gmra.mxu0 %v351
  %v804 = vpop.f32.mrf.mxu0
  %v805 = vadd.f32 %v103, %v804
  %v806 = vpop.f32.mrf.mxu0
  %v807 = vpop.f32.mrf.mxu0
  %v808 = vadd.f32 %v103, %v807
  %v809 = vpop.f32.mrf.mxu0
  %810 = vmatprep.mubr.bf16.mxu0 %v536
  %811 = vmatmul.mubr.bf16.gmra.mxu0 %v353
  %v812 = vpop.f32.mrf.mxu0
  %v813 = vadd.f32 %v103, %v812
  %v814 = vpop.f32.mrf.mxu0
  %v815 = vpop.f32.mrf.mxu0
  %v816 = vadd.f32 %v103, %v815
  %v817 = vpop.f32.mrf.mxu0
  %818 = vmatprep.mubr.bf16.mxu0 %v539
  %819 = vmatmul.mubr.bf16.gmra.mxu0 %v355
  %v820 = vpop.f32.mrf.mxu0
  %v821 = vadd.f32 %v103, %v820
  %v822 = vpop.f32.mrf.mxu0
  %v823 = vpop.f32.mrf.mxu0
  %v824 = vadd.f32 %v103, %v823
  %v825 = vpop.f32.mrf.mxu0
  %826 = vmatprep.mubr.bf16.mxu0 %v542
  %827 = vmatmul.mubr.bf16.gmra.mxu0 %v357
  %v828 = vpop.f32.mrf.mxu0
  %v829 = vadd.f32 %v103, %v828
  %v830 = vpop.f32.mrf.mxu0
  %v831 = vpop.f32.mrf.mxu0
  %v832 = vadd.f32 %v103, %v831
  %v833 = vpop.f32.mrf.mxu0
  %834 = vmatprep.mubr.bf16.mxu0 %v545
  %835 = vmatmul.mubr.bf16.gmra.mxu0 %v359
  %v836 = vpop.f32.mrf.mxu0
  %v837 = vadd.f32 %v103, %v836
  %v838 = vpop.f32.mrf.mxu0
  %v839 = vpop.f32.mrf.mxu0
  %v840 = vadd.f32 %v103, %v839
  %v841 = vpop.f32.mrf.mxu0
  %842 = vdwg.mxu0
  %v843 = vmax.f32 %v589, 0.0
  %v844 = vmax.f32 %v592, 0.0
  %v845 = vmax.f32 %v597, 0.0
  %v846 = vmax.f32 %v600, 0.0
  %v847 = vmax.f32 %v605, 0.0
  %v848 = vmax.f32 %v608, 0.0
  %v849 = vmax.f32 %v613, 0.0
  %v850 = vmax.f32 %v616, 0.0
  %v851 = vmax.f32 %v621, 0.0
  %v852 = vmax.f32 %v624, 0.0
  %v853 = vmax.f32 %v629, 0.0
  %v854 = vmax.f32 %v632, 0.0
  %v855 = vmax.f32 %v637, 0.0
  %v856 = vmax.f32 %v640, 0.0
  %v857 = vmax.f32 %v645, 0.0
  %v858 = vmax.f32 %v648, 0.0
  %v859 = vmax.f32 %v653, 0.0
  %v860 = vmax.f32 %v656, 0.0
  %v861 = vmax.f32 %v661, 0.0
  %v862 = vmax.f32 %v664, 0.0
  %v863 = vmax.f32 %v669, 0.0
  %v864 = vmax.f32 %v672, 0.0
  %v865 = vmax.f32 %v677, 0.0
  %v866 = vmax.f32 %v680, 0.0
  %v867 = vmax.f32 %v685, 0.0
  %v868 = vmax.f32 %v688, 0.0
  %v869 = vmax.f32 %v693, 0.0
  %v870 = vmax.f32 %v696, 0.0
  %v871 = vmax.f32 %v701, 0.0
  %v872 = vmax.f32 %v704, 0.0
  %v873 = vmax.f32 %v709, 0.0
  %v874 = vmax.f32 %v712, 0.0
  %v875 = vmax.f32 %v717, 0.0
  %v876 = vmax.f32 %v720, 0.0
  %v877 = vmax.f32 %v725, 0.0
  %v878 = vmax.f32 %v728, 0.0
  %v879 = vmax.f32 %v733, 0.0
  %v880 = vmax.f32 %v736, 0.0
  %v881 = vmax.f32 %v741, 0.0
  %v882 = vmax.f32 %v744, 0.0
  %v883 = vmax.f32 %v749, 0.0
  %v884 = vmax.f32 %v752, 0.0
  %v885 = vmax.f32 %v757, 0.0
  %v886 = vmax.f32 %v760, 0.0
  %v887 = vmax.f32 %v765, 0.0
  %v888 = vmax.f32 %v768, 0.0
  %v889 = vmax.f32 %v773, 0.0
  %v890 = vmax.f32 %v776, 0.0
  %v891 = vmax.f32 %v781, 0.0
  %v892 = vmax.f32 %v784, 0.0
  %v893 = vmax.f32 %v789, 0.0
  %v894 = vmax.f32 %v792, 0.0
  %v895 = vmax.f32 %v797, 0.0
  %v896 = vmax.f32 %v800, 0.0
  %v897 = vmax.f32 %v805, 0.0
  %v898 = vmax.f32 %v808, 0.0
  %v899 = vmax.f32 %v813, 0.0
  %v900 = vmax.f32 %v816, 0.0
  %v901 = vmax.f32 %v821, 0.0
  %v902 = vmax.f32 %v824, 0.0
  %v903 = vmax.f32 %v829, 0.0
  %v904 = vmax.f32 %v832, 0.0
  %v905 = vmax.f32 %v837, 0.0
  %v906 = vmax.f32 %v840, 0.0
  %v907 = vpack.c.bf16 %v844, %v843
  %v908 = vpack.c.bf16 %v846, %v845
  %v909 = vpack.c.bf16 %v848, %v847
  %v910 = vpack.c.bf16 %v850, %v849
  %v911 = vpack.c.bf16 %v852, %v851
  %v912 = vpack.c.bf16 %v854, %v853
  %v913 = vpack.c.bf16 %v856, %v855
  %v914 = vpack.c.bf16 %v858, %v857
  %v915 = vpack.c.bf16 %v860, %v859
  %v916 = vpack.c.bf16 %v862, %v861
  %v917 = vpack.c.bf16 %v864, %v863
  %v918 = vpack.c.bf16 %v866, %v865
  %v919 = vpack.c.bf16 %v868, %v867
  %v920 = vpack.c.bf16 %v870, %v869
  %v921 = vpack.c.bf16 %v872, %v871
  %v922 = vpack.c.bf16 %v874, %v873
  %v923 = vpack.c.bf16 %v876, %v875
  %v924 = vpack.c.bf16 %v878, %v877
  %v925 = vpack.c.bf16 %v880, %v879
  %v926 = vpack.c.bf16 %v882, %v881
  %v927 = vpack.c.bf16 %v884, %v883
  %v928 = vpack.c.bf16 %v886, %v885
  %v929 = vpack.c.bf16 %v888, %v887
  %v930 = vpack.c.bf16 %v890, %v889
  %v931 = vpack.c.bf16 %v892, %v891
  %v932 = vpack.c.bf16 %v894, %v893
  %v933 = vpack.c.bf16 %v896, %v895
  %v934 = vpack.c.bf16 %v898, %v897
  %v935 = vpack.c.bf16 %v900, %v899
  %v936 = vpack.c.bf16 %v902, %v901
  %v937 = vpack.c.bf16 %v904, %v903
  %v938 = vpack.c.bf16 %v906, %v905
  %v971 = vunpack.c.l.b16 %v907
  %v972 = vunpack.c.h.b16 %v907
  %v973 = vunpack.c.l.b16 %v908
  %v974 = vunpack.c.h.b16 %v908
  %v975 = vunpack.c.l.b16 %v909
  %v976 = vunpack.c.h.b16 %v909
  %v977 = vunpack.c.l.b16 %v910
  %v978 = vunpack.c.h.b16 %v910
  %v979 = vunpack.c.l.b16 %v911
  %v980 = vunpack.c.h.b16 %v911
  %v981 = vunpack.c.l.b16 %v912
  %v982 = vunpack.c.h.b16 %v912
  %v983 = vunpack.c.l.b16 %v913
  %v984 = vunpack.c.h.b16 %v913
  %v985 = vunpack.c.l.b16 %v914
  %v986 = vunpack.c.h.b16 %v914
  %v987 = vunpack.c.l.b16 %v915
  %v988 = vunpack.c.h.b16 %v915
  %v989 = vunpack.c.l.b16 %v916
  %v990 = vunpack.c.h.b16 %v916
  %v991 = vunpack.c.l.b16 %v917
  %v992 = vunpack.c.h.b16 %v917
  %v993 = vunpack.c.l.b16 %v918
  %v994 = vunpack.c.h.b16 %v918
  %v995 = vunpack.c.l.b16 %v919
  %v996 = vunpack.c.h.b16 %v919
  %v997 = vunpack.c.l.b16 %v920
  %v998 = vunpack.c.h.b16 %v920
  %v999 = vunpack.c.l.b16 %v921
  %v1000 = vunpack.c.h.b16 %v921
  %v1001 = vunpack.c.l.b16 %v922
  %v1002 = vunpack.c.h.b16 %v922
  %v1003 = vunpack.c.l.b16 %v923
  %v1004 = vunpack.c.h.b16 %v923
  %v1005 = vunpack.c.l.b16 %v924
  %v1006 = vunpack.c.h.b16 %v924
  %v1007 = vunpack.c.l.b16 %v925
  %v1008 = vunpack.c.h.b16 %v925
  %v1009 = vunpack.c.l.b16 %v926
  %v1010 = vunpack.c.h.b16 %v926
  %v1011 = vunpack.c.l.b16 %v927
  %v1012 = vunpack.c.h.b16 %v927
  %v1013 = vunpack.c.l.b16 %v928
  %v1014 = vunpack.c.h.b16 %v928
  %v1015 = vunpack.c.l.b16 %v929
  %v1016 = vunpack.c.h.b16 %v929
  %v1017 = vunpack.c.l.b16 %v930
  %v1018 = vunpack.c.h.b16 %v930
  %v1019 = vunpack.c.l.b16 %v931
  %v1020 = vunpack.c.h.b16 %v931
  %v1021 = vunpack.c.l.b16 %v932
  %v1022 = vunpack.c.h.b16 %v932
  %v1023 = vunpack.c.l.b16 %v933
  %v1024 = vunpack.c.h.b16 %v933
  %v1025 = vunpack.c.l.b16 %v934
  %v1026 = vunpack.c.h.b16 %v934
  %v1027 = vunpack.c.l.b16 %v935
  %v1028 = vunpack.c.h.b16 %v935
  %v1029 = vunpack.c.l.b16 %v936
  %v1030 = vunpack.c.h.b16 %v936
  %v1031 = vunpack.c.l.b16 %v937
  %v1032 = vunpack.c.h.b16 %v937
  %v1033 = vunpack.c.l.b16 %v938
  %v1034 = vunpack.c.h.b16 %v938
  %v1035 = vpack.c.b16 %v971, %v971
  %v1036 = vpack.c.b16 %v972, %v972
  %v1037 = vpack.c.b16 %v973, %v973
  %v1038 = vpack.c.b16 %v974, %v974
  %v1039 = vpack.c.b16 %v975, %v975
  %v1040 = vpack.c.b16 %v976, %v976
  %v1041 = vpack.c.b16 %v977, %v977
  %v1042 = vpack.c.b16 %v978, %v978
  %v1043 = vpack.c.b16 %v979, %v979
  %v1044 = vpack.c.b16 %v980, %v980
  %v1045 = vpack.c.b16 %v981, %v981
  %v1046 = vpack.c.b16 %v982, %v982
  %v1047 = vpack.c.b16 %v983, %v983
  %v1048 = vpack.c.b16 %v984, %v984
  %v1049 = vpack.c.b16 %v985, %v985
  %v1050 = vpack.c.b16 %v986, %v986
  %v1051 = vpack.c.b16 %v987, %v987
  %v1052 = vpack.c.b16 %v988, %v988
  %v1053 = vpack.c.b16 %v989, %v989
  %v1054 = vpack.c.b16 %v990, %v990
  %v1055 = vpack.c.b16 %v991, %v991
  %v1056 = vpack.c.b16 %v992, %v992
  %v1057 = vpack.c.b16 %v993, %v993
  %v1058 = vpack.c.b16 %v994, %v994
  %v1059 = vpack.c.b16 %v995, %v995
  %v1060 = vpack.c.b16 %v996, %v996
  %v1061 = vpack.c.b16 %v997, %v997
  %v1062 = vpack.c.b16 %v998, %v998
  %v1063 = vpack.c.b16 %v999, %v999
  %v1064 = vpack.c.b16 %v1000, %v1000
  %v1065 = vpack.c.b16 %v1001, %v1001
  %v1066 = vpack.c.b16 %v1002, %v1002
  %v1067 = vpack.c.b16 %v1003, %v1003
  %v1068 = vpack.c.b16 %v1004, %v1004
  %v1069 = vpack.c.b16 %v1005, %v1005
  %v1070 = vpack.c.b16 %v1006, %v1006
  %v1071 = vpack.c.b16 %v1007, %v1007
  %v1072 = vpack.c.b16 %v1008, %v1008
  %v1073 = vpack.c.b16 %v1009, %v1009
  %v1074 = vpack.c.b16 %v1010, %v1010
  %v1075 = vpack.c.b16 %v1011, %v1011
  %v1076 = vpack.c.b16 %v1012, %v1012
  %v1077 = vpack.c.b16 %v1013, %v1013
  %v1078 = vpack.c.b16 %v1014, %v1014
  %v1079 = vpack.c.b16 %v1015, %v1015
  %v1080 = vpack.c.b16 %v1016, %v1016
  %v1081 = vpack.c.b16 %v1017, %v1017
  %v1082 = vpack.c.b16 %v1018, %v1018
  %v1083 = vpack.c.b16 %v1019, %v1019
  %v1084 = vpack.c.b16 %v1020, %v1020
  %v1085 = vpack.c.b16 %v1021, %v1021
  %v1086 = vpack.c.b16 %v1022, %v1022
  %v1087 = vpack.c.b16 %v1023, %v1023
  %v1088 = vpack.c.b16 %v1024, %v1024
  %v1089 = vpack.c.b16 %v1025, %v1025
  %v1090 = vpack.c.b16 %v1026, %v1026
  %v1091 = vpack.c.b16 %v1027, %v1027
  %v1092 = vpack.c.b16 %v1028, %v1028
  %v1093 = vpack.c.b16 %v1029, %v1029
  %v1094 = vpack.c.b16 %v1030, %v1030
  %v1095 = vpack.c.b16 %v1031, %v1031
  %v1096 = vpack.c.b16 %v1032, %v1032
  %v1097 = vpack.c.b16 %v1033, %v1033
  %v1098 = vpack.c.b16 %v1034, %v1034
  %vm1163 = vcmask 519168
  %1164 = vst.msk [vmem:[%s3] sm:$0xf] %vm1163, %v1035
  %1165 = vst.msk [vmem:[%s3 + $0x4] sm:$0xf] %vm1163, %v1036
  %1166 = vst.msk [vmem:[%s3 + $0x8] sm:$0xf] %vm1163, %v1037
  %1167 = vst.msk [vmem:[%s3 + $0xc] sm:$0xf] %vm1163, %v1038
  %1168 = vst.msk [vmem:[%s3 + $0x10] sm:$0xf] %vm1163, %v1039
  %1169 = vst.msk [vmem:[%s3 + $0x14] sm:$0xf] %vm1163, %v1040
  %1170 = vst.msk [vmem:[%s3 + $0x18] sm:$0xf] %vm1163, %v1041
  %1171 = vst.msk [vmem:[%s3 + $0x1c] sm:$0xf] %vm1163, %v1042
  %1172 = vst.msk [vmem:[%s3 + $0x20] sm:$0xf] %vm1163, %v1043
  %1173 = vst.msk [vmem:[%s3 + $0x24] sm:$0xf] %vm1163, %v1044
  %1174 = vst.msk [vmem:[%s3 + $0x28] sm:$0xf] %vm1163, %v1045
  %1175 = vst.msk [vmem:[%s3 + $0x2c] sm:$0xf] %vm1163, %v1046
  %1176 = vst.msk [vmem:[%s3 + $0x30] sm:$0xf] %vm1163, %v1047
  %1177 = vst.msk [vmem:[%s3 + $0x34] sm:$0xf] %vm1163, %v1048
  %1178 = vst.msk [vmem:[%s3 + $0x38] sm:$0xf] %vm1163, %v1049
  %1179 = vst.msk [vmem:[%s3 + $0x3c] sm:$0xf] %vm1163, %v1050
  %1180 = vst.msk [vmem:[%s3 + $0x40] sm:$0xf] %vm1163, %v1051
  %1181 = vst.msk [vmem:[%s3 + $0x44] sm:$0xf] %vm1163, %v1052
  %1182 = vst.msk [vmem:[%s3 + $0x48] sm:$0xf] %vm1163, %v1053
  %1183 = vst.msk [vmem:[%s3 + $0x4c] sm:$0xf] %vm1163, %v1054
  %1184 = vst.msk [vmem:[%s3 + $0x50] sm:$0xf] %vm1163, %v1055
  %1185 = vst.msk [vmem:[%s3 + $0x54] sm:$0xf] %vm1163, %v1056
  %1186 = vst.msk [vmem:[%s3 + $0x58] sm:$0xf] %vm1163, %v1057
  %1187 = vst.msk [vmem:[%s3 + $0x5c] sm:$0xf] %vm1163, %v1058
  %1188 = vst.msk [vmem:[%s3 + $0x60] sm:$0xf] %vm1163, %v1059
  %1189 = vst.msk [vmem:[%s3 + $0x64] sm:$0xf] %vm1163, %v1060
  %1190 = vst.msk [vmem:[%s3 + $0x68] sm:$0xf] %vm1163, %v1061
  %1191 = vst.msk [vmem:[%s3 + $0x6c] sm:$0xf] %vm1163, %v1062
  %1192 = vst.msk [vmem:[%s3 + $0x70] sm:$0xf] %vm1163, %v1063
  %1193 = vst.msk [vmem:[%s3 + $0x74] sm:$0xf] %vm1163, %v1064
  %1194 = vst.msk [vmem:[%s3 + $0x78] sm:$0xf] %vm1163, %v1065
  %1195 = vst.msk [vmem:[%s3 + $0x7c] sm:$0xf] %vm1163, %v1066
  %1196 = vst.msk [vmem:[%s3 + $0x80] sm:$0xf] %vm1163, %v1067
  %1197 = vst.msk [vmem:[%s3 + $0x84] sm:$0xf] %vm1163, %v1068
  %1198 = vst.msk [vmem:[%s3 + $0x88] sm:$0xf] %vm1163, %v1069
  %1199 = vst.msk [vmem:[%s3 + $0x8c] sm:$0xf] %vm1163, %v1070
  %1200 = vst.msk [vmem:[%s3 + $0x90] sm:$0xf] %vm1163, %v1071
  %1201 = vst.msk [vmem:[%s3 + $0x94] sm:$0xf] %vm1163, %v1072
  %1202 = vst.msk [vmem:[%s3 + $0x98] sm:$0xf] %vm1163, %v1073
  %1203 = vst.msk [vmem:[%s3 + $0x9c] sm:$0xf] %vm1163, %v1074
  %1204 = vst.msk [vmem:[%s3 + $0xa0] sm:$0xf] %vm1163, %v1075
  %1205 = vst.msk [vmem:[%s3 + $0xa4] sm:$0xf] %vm1163, %v1076
  %1206 = vst.msk [vmem:[%s3 + $0xa8] sm:$0xf] %vm1163, %v1077
  %1207 = vst.msk [vmem:[%s3 + $0xac] sm:$0xf] %vm1163, %v1078
  %1208 = vst.msk [vmem:[%s3 + $0xb0] sm:$0xf] %vm1163, %v1079
  %1209 = vst.msk [vmem:[%s3 + $0xb4] sm:$0xf] %vm1163, %v1080
  %1210 = vst.msk [vmem:[%s3 + $0xb8] sm:$0xf] %vm1163, %v1081
  %1211 = vst.msk [vmem:[%s3 + $0xbc] sm:$0xf] %vm1163, %v1082
  %1212 = vst.msk [vmem:[%s3 + $0xc0] sm:$0xf] %vm1163, %v1083
  %1213 = vst.msk [vmem:[%s3 + $0xc4] sm:$0xf] %vm1163, %v1084
  %1214 = vst.msk [vmem:[%s3 + $0xc8] sm:$0xf] %vm1163, %v1085
  %1215 = vst.msk [vmem:[%s3 + $0xcc] sm:$0xf] %vm1163, %v1086
  %1216 = vst.msk [vmem:[%s3 + $0xd0] sm:$0xf] %vm1163, %v1087
  %1217 = vst.msk [vmem:[%s3 + $0xd4] sm:$0xf] %vm1163, %v1088
  %1218 = vst.msk [vmem:[%s3 + $0xd8] sm:$0xf] %vm1163, %v1089
  %1219 = vst.msk [vmem:[%s3 + $0xdc] sm:$0xf] %vm1163, %v1090
  %1220 = vst.msk [vmem:[%s3 + $0xe0] sm:$0xf] %vm1163, %v1091
  %1221 = vst.msk [vmem:[%s3 + $0xe4] sm:$0xf] %vm1163, %v1092
  %1222 = vst.msk [vmem:[%s3 + $0xe8] sm:$0xf] %vm1163, %v1093
  %1223 = vst.msk [vmem:[%s3 + $0xec] sm:$0xf] %vm1163, %v1094
  %1224 = vst.msk [vmem:[%s3 + $0xf0] sm:$0xf] %vm1163, %v1095
  %1225 = vst.msk [vmem:[%s3 + $0xf4] sm:$0xf] %vm1163, %v1096
  %1226 = vst.msk [vmem:[%s3 + $0xf8] sm:$0xf] %vm1163, %v1097
  %1227 = vst.msk [vmem:[%s3 + $0xfc] sm:$0xf] %vm1163, %v1098
  // Predicated region
  $region14: #{resnext_forward.2} parent=0 // pred_check
    _
  $region15: #{resnext_forward.2} parent=0 // pred_check_branch
    %1229 = sbr.rel (0) target = $region17
  $region16: #{resnext_forward.2} parent=0 // pred_region
    _
  $region17: #{resnext_forward.2} parent=0 // pred_fallthru
    _
  // Predicated region
  $region18: #{resnext_forward.2} parent=0 // pred_check
    _
  $region19: #{resnext_forward.2} parent=0 // pred_check_branch
    %1231 = sbr.rel (0) target = $region21
  $region20: #{resnext_forward.2} parent=0 // pred_region
    _
  $region21: #{resnext_forward.2} parent=0 // pred_fallthru
    _

// kernel: resnext_forward.3
$region0: #{resnext_forward.3}
  #allocation0 [shape = 'u32[]', space=smem, size = 0x4, offset = 0x4, fixed_abs, tag = 'smem constant byte address 0x4 - core index']
  #allocation1 [shape = 'u32[144,128]{1,0:T(1,128)}', space=vmem, size = 0x12000, scoped, tag = 'internal scratch']
  %s0 = inlined_call_operand.vmem [shape: bf16[9,128,64], index: 0, kind: input, shape index: {}]
  %s1 = inlined_call_operand.vmem [shape: f32[9,128,1], index: 1, kind: input, shape index: {}]
  %s2 = inlined_call_operand.vmem [shape: bf16[64,32], index: 2, kind: input, shape index: {}]
  %s3 = inlined_call_operand.vmem [shape: f32[1,32], index: 3, kind: input, shape index: {}]
  %s4 = inlined_call_operand.vmem [shape: bf16[9,32,32], index: 4, kind: input, shape index: {}]
  %s5 = inlined_call_operand.vmem [shape: f32[1,32], index: 5, kind: input, shape index: {}]
  %s6 = inlined_call_operand.vmem [shape: bf16[96,128], index: 6, kind: input, shape index: {}]
  %s7 = inlined_call_operand.vmem [shape: f32[1,128], index: 7, kind: input, shape index: {}]
  %s8 = inlined_call_operand.vmem [shape: f32[128,10], index: 8, kind: input, shape index: {}]
  %s9 = inlined_call_operand.vmem [shape: f32[1,10], index: 9, kind: input, shape index: {}]
  %s10 = inlined_call_operand.hbm [shape: f32[2,10], index: 10, kind: output, shape index: {}]
  %s11 = sld [smem:[#allocation0]]
  $region50: #{resnext_forward.3} parent=0
    _
  %s13 = ssub.s32 1, %s11
  %s14 = scalar_select 0, %s13, %s11
  $region1: #{resnext_forward.3} parent=0
    #allocation2 [shape = 'u8[1024]{0}', space=vmem, size = 0x400, scoped, tag = 'output window, operand 0, single buffered']
    #allocation3 [shape = 's32[1]{0}', space=sflag, size = 0x4, scoped, tag = 'scoped memory for resnext_forward.3']
    %15 = vsyncpa [#allocation3], 0
    // Predicated region
    $region2: #{resnext_forward.3} parent=1 // pred_check
      _
    $region3: #{resnext_forward.3} parent=1 // pred_check_branch
      %17 = sbr.rel (0) target = $region5
    $region4: #{resnext_forward.3} parent=1 // pred_region
      _
    $region5: #{resnext_forward.3} parent=1 // pred_fallthru
      _
    // Predicated region
    $region6: #{resnext_forward.3} parent=1 // pred_check
      _
    $region7: #{resnext_forward.3} parent=1 // pred_check_branch
      %19 = sbr.rel (0) target = $region9
    $region8: #{resnext_forward.3} parent=1 // pred_region
      _
    $region9: #{resnext_forward.3} parent=1 // pred_fallthru
      _
    // Predicated region
    $region10: #{resnext_forward.3} parent=1 // pred_check
      _
    $region11: #{resnext_forward.3} parent=1 // pred_check_branch
      %21 = sbr.rel (0) target = $region13
    $region12: #{resnext_forward.3} parent=1 // pred_region
      _
    $region13: #{resnext_forward.3} parent=1 // pred_fallthru
      _
    // Predicated region
    $region14: #{resnext_forward.3} parent=1 // pred_check
      _
    $region15: #{resnext_forward.3} parent=1 // pred_check_branch
      %23 = sbr.rel (0) target = $region17
    $region16: #{resnext_forward.3} parent=1 // pred_region
      _
    $region17: #{resnext_forward.3} parent=1 // pred_fallthru
      _
    // Predicated region
    $region18: #{resnext_forward.3} parent=1 // pred_check
      _
    $region19: #{resnext_forward.3} parent=1 // pred_check_branch
      %25 = sbr.rel (0) target = $region21
    $region20: #{resnext_forward.3} parent=1 // pred_region
      _
    $region21: #{resnext_forward.3} parent=1 // pred_fallthru
      _
    // Predicated region
    $region22: #{resnext_forward.3} parent=1 // pred_check
      _
    $region23: #{resnext_forward.3} parent=1 // pred_check_branch
      %27 = sbr.rel (0) target = $region25
    $region24: #{resnext_forward.3} parent=1 // pred_region
      _
    $region25: #{resnext_forward.3} parent=1 // pred_fallthru
      _
    // Predicated region
    $region26: #{resnext_forward.3} parent=1 // pred_check
      _
    $region27: #{resnext_forward.3} parent=1 // pred_check_branch
      %29 = sbr.rel (0) target = $region29
    $region28: #{resnext_forward.3} parent=1 // pred_region
      _
    $region29: #{resnext_forward.3} parent=1 // pred_fallthru
      _
    // Predicated region
    $region30: #{resnext_forward.3} parent=1 // pred_check
      _
    $region31: #{resnext_forward.3} parent=1 // pred_check_branch
      %31 = sbr.rel (0) target = $region33
    $region32: #{resnext_forward.3} parent=1 // pred_region
      _
    $region33: #{resnext_forward.3} parent=1 // pred_fallthru
      _
    // Predicated region
    $region34: #{resnext_forward.3} parent=1 // pred_check
      _
    $region35: #{resnext_forward.3} parent=1 // pred_check_branch
      %33 = sbr.rel (0) target = $region37
    $region36: #{resnext_forward.3} parent=1 // pred_region
      _
    $region37: #{resnext_forward.3} parent=1 // pred_fallthru
      _
    // Predicated region
    $region38: #{resnext_forward.3} parent=1 // pred_check
      _
    $region39: #{resnext_forward.3} parent=1 // pred_check_branch
      %35 = sbr.rel (0) target = $region41
    $region40: #{resnext_forward.3} parent=1 // pred_region
      _
    $region41: #{resnext_forward.3} parent=1 // pred_fallthru
      _
    %v37 = vld [vmem:[%s2] sm:$0xf]
    %v38 = vld [vmem:[%s2 + $0x4] sm:$0xf]
    %v39 = vld [vmem:[%s2 + $0x8] sm:$0xf]
    %v40 = vld [vmem:[%s2 + $0xc] sm:$0xf]
    %v41 = vld [vmem:[%s2 + $0x10] sm:$0xf]
    %v42 = vld [vmem:[%s2 + $0x14] sm:$0xf]
    %v43 = vld [vmem:[%s2 + $0x18] sm:$0xf]
    %v44 = vld [vmem:[%s2 + $0x1c] sm:$0xf]
    %v45 = vld [vmem:[%s3] sm:$0x1]
    %v46 = vld [vmem:[%s0] sm:$0xf]
    %v47 = vld [vmem:[%s0 + $0x4] sm:$0xf]
    %v48 = vld [vmem:[%s0 + $0x8] sm:$0xf]
    %v49 = vld [vmem:[%s0 + $0xc] sm:$0xf]
    %v50 = vld [vmem:[%s0 + $0x10] sm:$0xf]
    %v51 = vld [vmem:[%s0 + $0x14] sm:$0xf]
    %v52 = vld [vmem:[%s0 + $0x18] sm:$0xf]
    %v53 = vld [vmem:[%s0 + $0x1c] sm:$0xf]
    %v54 = vld [vmem:[%s0 + $0x20] sm:$0xf]
    %v55 = vld [vmem:[%s0 + $0x24] sm:$0xf]
    %v56 = vld [vmem:[%s0 + $0x28] sm:$0xf]
    %v57 = vld [vmem:[%s0 + $0x2c] sm:$0xf]
    %v58 = vld [vmem:[%s0 + $0x30] sm:$0xf]
    %v59 = vld [vmem:[%s0 + $0x34] sm:$0xf]
    %v60 = vld [vmem:[%s0 + $0x38] sm:$0xf]
    %v61 = vld [vmem:[%s0 + $0x3c] sm:$0xf]
    %v63 = vlaneseq
    %v64 = vshrl.u32 %v63, 7
    %v65 = vsub.s32 0, %v64
    %v66 = vrot.slane %v45, %v65
    %v84 = vunpack.c.l.b16 %v46
    %v85 = vunpack.c.l.b16 %v47
    %v86 = vunpack.c.l.b16 %v48
    %v87 = vunpack.c.l.b16 %v49
    %v88 = vunpack.c.l.b16 %v50
    %v89 = vunpack.c.l.b16 %v51
    %v90 = vunpack.c.l.b16 %v52
    %v91 = vunpack.c.l.b16 %v53
    %v92 = vunpack.c.l.b16 %v54
    %v93 = vunpack.c.l.b16 %v55
    %v94 = vunpack.c.l.b16 %v56
    %v95 = vunpack.c.l.b16 %v57
    %v96 = vunpack.c.l.b16 %v58
    %v97 = vunpack.c.l.b16 %v59
    %v98 = vunpack.c.l.b16 %v60
    %v99 = vunpack.c.l.b16 %v61
    %v100 = vpack.c.b16 %v85, %v84
    %v101 = vpack.c.b16 %v87, %v86
    %v102 = vpack.c.b16 %v89, %v88
    %v103 = vpack.c.b16 %v91, %v90
    %v104 = vpack.c.b16 %v93, %v92
    %v105 = vpack.c.b16 %v95, %v94
    %v106 = vpack.c.b16 %v97, %v96
    %v107 = vpack.c.b16 %v99, %v98
    %v116 = vunpack.c.l.b16 %v37
    %v117 = vunpack.c.l.b16 %v38
    %v118 = vunpack.c.l.b16 %v39
    %v119 = vunpack.c.l.b16 %v40
    %v120 = vunpack.c.l.b16 %v41
    %v121 = vunpack.c.l.b16 %v42
    %v122 = vunpack.c.l.b16 %v43
    %v123 = vunpack.c.l.b16 %v44
    %v124 = vpack.c.b16 %v117, %v116
    %v125 = vpack.c.b16 %v119, %v118
    %v126 = vpack.c.b16 %v121, %v120
    %v127 = vpack.c.b16 %v123, %v122
    %vm132 = vcmask 523264
    %v134 = vsel %vm132, %v100, 0
    %v137 = vsel %vm132, %v101, 0
    %v140 = vsel %vm132, %v102, 0
    %v143 = vsel %vm132, %v103, 0
    %v146 = vsel %vm132, %v104, 0
    %v149 = vsel %vm132, %v105, 0
    %v152 = vsel %vm132, %v106, 0
    %v155 = vsel %vm132, %v107, 0
    %157 = vmatprep.subr.bf16.mxu0 0
    %158 = vmatpush1.bf16.msra.mxu0 0
    %159 = vmatprep.subr.bf16.mxu0 0
    %160 = vmatpush1.bf16.msra.mxu0 0
    %161 = vmatprep.subr.bf16.mxu0 0
    %162 = vmatpush1.bf16.msra.mxu0 0
    %163 = vmatprep.subr.bf16.mxu0 0
    %164 = vmatpush1.bf16.msra.mxu0 0
    %165 = vmatprep.subr.bf16.mxu0 0
    %166 = vmatpush1.bf16.msra.mxu0 %v127
    %167 = vmatprep.subr.bf16.mxu0 0
    %168 = vmatpush1.bf16.msra.mxu0 %v126
    %169 = vmatprep.subr.bf16.mxu0 0
    %170 = vmatpush1.bf16.msra.mxu0 %v125
    %171 = vmatprep.subr.bf16.mxu0 0
    %172 = vmatpush1.bf16.msra.mxu0 %v124
    %173 = vmatprep.subr.bf16.mxu0 0
    %174 = vmatpush2.bf16.msra.mxu0 0
    %175 = vmatprep.subr.bf16.mxu0 0
    %176 = vmatpush2.bf16.msra.mxu0 0
    %177 = vmatprep.subr.bf16.mxu0 0
    %178 = vmatpush2.bf16.msra.mxu0 0
    %179 = vmatprep.subr.bf16.mxu0 0
    %180 = vmatpush2.bf16.msra.mxu0 0
    %181 = vmatprep.subr.bf16.mxu0 0
    %182 = vmatpush2.bf16.msra.mxu0 0
    %183 = vmatprep.subr.bf16.mxu0 0
    %184 = vmatpush2.bf16.msra.mxu0 0
    %185 = vmatprep.subr.bf16.mxu0 0
    %186 = vmatpush2.bf16.msra.mxu0 0
    %187 = vmatprep.subr.bf16.mxu0 0
    %188 = vmatpush2.bf16.msra.mxu0 0
    %189 = vmatprep.mubr.bf16.mxu0 0
    %190 = vmatmul.mubr.bf16.gmra.mxu0 %v134
    %v191 = vpop.f32.mrf.mxu0
    %v192 = vadd.f32 %v66, %v191
    %v193 = vpop.f32.mrf.mxu0
    %v194 = vpop.f32.mrf.mxu0
    %v195 = vadd.f32 %v66, %v194
    %v196 = vpop.f32.mrf.mxu0
    %197 = vmatprep.mubr.bf16.mxu0 0
    %198 = vmatmul.mubr.bf16.gmra.mxu0 %v137
    %v199 = vpop.f32.mrf.mxu0
    %v200 = vadd.f32 %v66, %v199
    %v201 = vpop.f32.mrf.mxu0
    %v202 = vpop.f32.mrf.mxu0
    %v203 = vadd.f32 %v66, %v202
    %v204 = vpop.f32.mrf.mxu0
    %205 = vmatprep.mubr.bf16.mxu0 0
    %206 = vmatmul.mubr.bf16.gmra.mxu0 %v140
    %v207 = vpop.f32.mrf.mxu0
    %v208 = vadd.f32 %v66, %v207
    %v209 = vpop.f32.mrf.mxu0
    %v210 = vpop.f32.mrf.mxu0
    %v211 = vadd.f32 %v66, %v210
    %v212 = vpop.f32.mrf.mxu0
    %213 = vmatprep.mubr.bf16.mxu0 0
    %214 = vmatmul.mubr.bf16.gmra.mxu0 %v143
    %v215 = vpop.f32.mrf.mxu0
    %v216 = vadd.f32 %v66, %v215
    %v217 = vpop.f32.mrf.mxu0
    %v218 = vpop.f32.mrf.mxu0
    %v219 = vadd.f32 %v66, %v218
    %v220 = vpop.f32.mrf.mxu0
    %221 = vmatprep.mubr.bf16.mxu0 0
    %222 = vmatmul.mubr.bf16.gmra.mxu0 %v146
    %v223 = vpop.f32.mrf.mxu0
    %v224 = vadd.f32 %v66, %v223
    %v225 = vpop.f32.mrf.mxu0
    %v226 = vpop.f32.mrf.mxu0
    %v227 = vadd.f32 %v66, %v226
    %v228 = vpop.f32.mrf.mxu0
    %229 = vmatprep.mubr.bf16.mxu0 0
    %230 = vmatmul.mubr.bf16.gmra.mxu0 %v149
    %v231 = vpop.f32.mrf.mxu0
    %v232 = vadd.f32 %v66, %v231
    %v233 = vpop.f32.mrf.mxu0
    %v234 = vpop.f32.mrf.mxu0
    %v235 = vadd.f32 %v66, %v234
    %v236 = vpop.f32.mrf.mxu0
    %237 = vmatprep.mubr.bf16.mxu0 0
    %238 = vmatmul.mubr.bf16.gmra.mxu0 %v152
    %v239 = vpop.f32.mrf.mxu0
    %v240 = vadd.f32 %v66, %v239
    %v241 = vpop.f32.mrf.mxu0
    %v242 = vpop.f32.mrf.mxu0
    %v243 = vadd.f32 %v66, %v242
    %v244 = vpop.f32.mrf.mxu0
    %245 = vmatprep.mubr.bf16.mxu0 0
    %246 = vmatmul.mubr.bf16.gmra.mxu0 %v155
    %v247 = vpop.f32.mrf.mxu0
    %v248 = vadd.f32 %v66, %v247
    %v249 = vpop.f32.mrf.mxu0
    %v250 = vpop.f32.mrf.mxu0
    %v251 = vadd.f32 %v66, %v250
    %v252 = vpop.f32.mrf.mxu0
    %253 = vdwg.mxu0
    %v254 = vmax.f32 %v192, 0.0
    %v255 = vmax.f32 %v195, 0.0
    %v256 = vmax.f32 %v200, 0.0
    %v257 = vmax.f32 %v203, 0.0
    %v258 = vmax.f32 %v208, 0.0
    %v259 = vmax.f32 %v211, 0.0
    %v260 = vmax.f32 %v216, 0.0
    %v261 = vmax.f32 %v219, 0.0
    %v262 = vmax.f32 %v224, 0.0
    %v263 = vmax.f32 %v227, 0.0
    %v264 = vmax.f32 %v232, 0.0
    %v265 = vmax.f32 %v235, 0.0
    %v266 = vmax.f32 %v240, 0.0
    %v267 = vmax.f32 %v243, 0.0
    %v268 = vmax.f32 %v248, 0.0
    %v269 = vmax.f32 %v251, 0.0
    %v270 = vld [vmem:[%s1] sm:$0xff]
    %v271 = vld [vmem:[%s1 + $0x8] sm:$0xff]
    %v272 = vld [vmem:[%s1 + $0x10] sm:$0xff]
    %v273 = vld [vmem:[%s1 + $0x18] sm:$0xff]
    %v274 = vld [vmem:[%s1 + $0x20] sm:$0xff]
    %v275 = vld [vmem:[%s1 + $0x28] sm:$0xff]
    %v276 = vld [vmem:[%s1 + $0x30] sm:$0xff]
    %v277 = vld [vmem:[%s1 + $0x38] sm:$0xff]
    %v278 = vld [vmem:[%s1 + $0x40] sm:$0xff]
    %v279 = vld [vmem:[%s1 + $0x48] sm:$0xff]
    %v280 = vld [vmem:[%s1 + $0x50] sm:$0xff]
    %v281 = vld [vmem:[%s1 + $0x58] sm:$0xff]
    %v282 = vld [vmem:[%s1 + $0x60] sm:$0xff]
    %v283 = vld [vmem:[%s1 + $0x68] sm:$0xff]
    %v284 = vld [vmem:[%s1 + $0x70] sm:$0xff]
    %v285 = vld [vmem:[%s1 + $0x78] sm:$0xff]
    %287 = vset.pattern.permute.xlu0 0
    %288 = vperm.xlu0 %287, %v270
    %v289 = vpop.permute.xlu0 %288
    %292 = vset.pattern.permute.xlu0 0
    %293 = vperm.xlu0 %292, %v271
    %v294 = vpop.permute.xlu0 %293
    %297 = vset.pattern.permute.xlu0 0
    %298 = vperm.xlu0 %297, %v272
    %v299 = vpop.permute.xlu0 %298
    %302 = vset.pattern.permute.xlu0 0
    %303 = vperm.xlu0 %302, %v273
    %v304 = vpop.permute.xlu0 %303
    %307 = vset.pattern.permute.xlu0 0
    %308 = vperm.xlu0 %307, %v274
    %v309 = vpop.permute.xlu0 %308
    %312 = vset.pattern.permute.xlu0 0
    %313 = vperm.xlu0 %312, %v275
    %v314 = vpop.permute.xlu0 %313
    %317 = vset.pattern.permute.xlu0 0
    %318 = vperm.xlu0 %317, %v276
    %v319 = vpop.permute.xlu0 %318
    %322 = vset.pattern.permute.xlu0 0
    %323 = vperm.xlu0 %322, %v277
    %v324 = vpop.permute.xlu0 %323
    %327 = vset.pattern.permute.xlu0 0
    %328 = vperm.xlu0 %327, %v278
    %v329 = vpop.permute.xlu0 %328
    %332 = vset.pattern.permute.xlu0 0
    %333 = vperm.xlu0 %332, %v279
    %v334 = vpop.permute.xlu0 %333
    %337 = vset.pattern.permute.xlu0 0
    %338 = vperm.xlu0 %337, %v280
    %v339 = vpop.permute.xlu0 %338
    %342 = vset.pattern.permute.xlu0 0
    %343 = vperm.xlu0 %342, %v281
    %v344 = vpop.permute.xlu0 %343
    %347 = vset.pattern.permute.xlu0 0
    %348 = vperm.xlu0 %347, %v282
    %v349 = vpop.permute.xlu0 %348
    %352 = vset.pattern.permute.xlu0 0
    %353 = vperm.xlu0 %352, %v283
    %v354 = vpop.permute.xlu0 %353
    %357 = vset.pattern.permute.xlu0 0
    %358 = vperm.xlu0 %357, %v284
    %v359 = vpop.permute.xlu0 %358
    %362 = vset.pattern.permute.xlu0 0
    %363 = vperm.xlu0 %362, %v285
    %v364 = vpop.permute.xlu0 %363
    %v366 = vmul.f32 %v254, %v289
    %v367 = vmul.f32 %v255, %v294
    %v368 = vmul.f32 %v256, %v299
    %v369 = vmul.f32 %v257, %v304
    %v370 = vmul.f32 %v258, %v309
    %v371 = vmul.f32 %v259, %v314
    %v372 = vmul.f32 %v260, %v319
    %v373 = vmul.f32 %v261, %v324
    %v374 = vmul.f32 %v262, %v329
    %v375 = vmul.f32 %v263, %v334
    %v376 = vmul.f32 %v264, %v339
    %v377 = vmul.f32 %v265, %v344
    %v378 = vmul.f32 %v266, %v349
    %v379 = vmul.f32 %v267, %v354
    %v380 = vmul.f32 %v268, %v359
    %v381 = vmul.f32 %v269, %v364
    %v382 = vpack.c.bf16 %v367, %v366
    %v383 = vpack.c.bf16 %v369, %v368
    %v384 = vpack.c.bf16 %v371, %v370
    %v385 = vpack.c.bf16 %v373, %v372
    %v386 = vpack.c.bf16 %v375, %v374
    %v387 = vpack.c.bf16 %v377, %v376
    %v388 = vpack.c.bf16 %v379, %v378
    %v389 = vpack.c.bf16 %v381, %v380
    %v390 = vld [vmem:[%s4] sm:$0xf]
    %v391 = vld [vmem:[%s4 + $0x4] sm:$0xf]
    %v392 = vld [vmem:[%s4 + $0x8] sm:$0xf]
    %v393 = vld [vmem:[%s4 + $0xc] sm:$0xf]
    %s394 = scalar_lea.vmem %s0, 64
    %v395 = vld [vmem:[%s394] sm:$0xf]
    %v396 = vld [vmem:[%s394 + $0x4] sm:$0xf]
    %v397 = vld [vmem:[%s394 + $0x8] sm:$0xf]
    %v398 = vld [vmem:[%s394 + $0xc] sm:$0xf]
    %v399 = vld [vmem:[%s394 + $0x10] sm:$0xf]
    %v400 = vld [vmem:[%s394 + $0x14] sm:$0xf]
    %v401 = vld [vmem:[%s394 + $0x18] sm:$0xf]
    %v402 = vld [vmem:[%s394 + $0x1c] sm:$0xf]
    %v403 = vld [vmem:[%s394 + $0x20] sm:$0xf]
    %v404 = vld [vmem:[%s394 + $0x24] sm:$0xf]
    %v405 = vld [vmem:[%s394 + $0x28] sm:$0xf]
    %v406 = vld [vmem:[%s394 + $0x2c] sm:$0xf]
    %v407 = vld [vmem:[%s394 + $0x30] sm:$0xf]
    %v408 = vld [vmem:[%s394 + $0x34] sm:$0xf]
    %v409 = vld [vmem:[%s394 + $0x38] sm:$0xf]
    %v410 = vld [vmem:[%s394 + $0x3c] sm:$0xf]
    %v427 = vunpack.c.l.b16 %v395
    %v428 = vunpack.c.l.b16 %v396
    %v429 = vunpack.c.l.b16 %v397
    %v430 = vunpack.c.l.b16 %v398
    %v431 = vunpack.c.l.b16 %v399
    %v432 = vunpack.c.l.b16 %v400
    %v433 = vunpack.c.l.b16 %v401
    %v434 = vunpack.c.l.b16 %v402
    %v435 = vunpack.c.l.b16 %v403
    %v436 = vunpack.c.l.b16 %v404
    %v437 = vunpack.c.l.b16 %v405
    %v438 = vunpack.c.l.b16 %v406
    %v439 = vunpack.c.l.b16 %v407
    %v440 = vunpack.c.l.b16 %v408
    %v441 = vunpack.c.l.b16 %v409
    %v442 = vunpack.c.l.b16 %v410
    %v443 = vpack.c.b16 %v428, %v427
    %v444 = vpack.c.b16 %v430, %v429
    %v445 = vpack.c.b16 %v432, %v431
    %v446 = vpack.c.b16 %v434, %v433
    %v447 = vpack.c.b16 %v436, %v435
    %v448 = vpack.c.b16 %v438, %v437
    %v449 = vpack.c.b16 %v440, %v439
    %v450 = vpack.c.b16 %v442, %v441
    %v452 = vsel %vm132, %v443, 0
    %v455 = vsel %vm132, %v444, 0
    %v458 = vsel %vm132, %v445, 0
    %v461 = vsel %vm132, %v446, 0
    %v464 = vsel %vm132, %v447, 0
    %v467 = vsel %vm132, %v448, 0
    %v470 = vsel %vm132, %v449, 0
    %v473 = vsel %vm132, %v450, 0
    %475 = vmatprep.subr.bf16.mxu0 0
    %476 = vmatpush1.bf16.msra.mxu0 0
    %477 = vmatprep.subr.bf16.mxu0 0
    %478 = vmatpush1.bf16.msra.mxu0 0
    %479 = vmatprep.subr.bf16.mxu0 0
    %480 = vmatpush1.bf16.msra.mxu0 0
    %481 = vmatprep.subr.bf16.mxu0 0
    %482 = vmatpush1.bf16.msra.mxu0 0
    %483 = vmatprep.subr.bf16.mxu0 0
    %484 = vmatpush1.bf16.msra.mxu0 %v127
    %485 = vmatprep.subr.bf16.mxu0 0
    %486 = vmatpush1.bf16.msra.mxu0 %v126
    %487 = vmatprep.subr.bf16.mxu0 0
    %488 = vmatpush1.bf16.msra.mxu0 %v125
    %489 = vmatprep.subr.bf16.mxu0 0
    %490 = vmatpush1.bf16.msra.mxu0 %v124
    %491 = vmatprep.subr.bf16.mxu0 0
    %492 = vmatpush2.bf16.msra.mxu0 0
    %493 = vmatprep.subr.bf16.mxu0 0
    %494 = vmatpush2.bf16.msra.mxu0 0
    %495 = vmatprep.subr.bf16.mxu0 0
    %496 = vmatpush2.bf16.msra.mxu0 0
    %497 = vmatprep.subr.bf16.mxu0 0
    %498 = vmatpush2.bf16.msra.mxu0 0
    %499 = vmatprep.subr.bf16.mxu0 0
    %500 = vmatpush2.bf16.msra.mxu0 0
    %501 = vmatprep.subr.bf16.mxu0 0
    %502 = vmatpush2.bf16.msra.mxu0 0
    %503 = vmatprep.subr.bf16.mxu0 0
    %504 = vmatpush2.bf16.msra.mxu0 0
    %505 = vmatprep.subr.bf16.mxu0 0
    %506 = vmatpush2.bf16.msra.mxu0 0
    %507 = vmatprep.mubr.bf16.mxu0 0
    %508 = vmatmul.mubr.bf16.gmra.mxu0 %v452
    %v509 = vpop.f32.mrf.mxu0
    %v510 = vadd.f32 %v66, %v509
    %v511 = vpop.f32.mrf.mxu0
    %v512 = vpop.f32.mrf.mxu0
    %v513 = vadd.f32 %v66, %v512
    %v514 = vpop.f32.mrf.mxu0
    %515 = vmatprep.mubr.bf16.mxu0 0
    %516 = vmatmul.mubr.bf16.gmra.mxu0 %v455
    %v517 = vpop.f32.mrf.mxu0
    %v518 = vadd.f32 %v66, %v517
    %v519 = vpop.f32.mrf.mxu0
    %v520 = vpop.f32.mrf.mxu0
    %v521 = vadd.f32 %v66, %v520
    %v522 = vpop.f32.mrf.mxu0
    %523 = vmatprep.mubr.bf16.mxu0 0
    %524 = vmatmul.mubr.bf16.gmra.mxu0 %v458
    %v525 = vpop.f32.mrf.mxu0
    %v526 = vadd.f32 %v66, %v525
    %v527 = vpop.f32.mrf.mxu0
    %v528 = vpop.f32.mrf.mxu0
    %v529 = vadd.f32 %v66, %v528
    %v530 = vpop.f32.mrf.mxu0
    %531 = vmatprep.mubr.bf16.mxu0 0
    %532 = vmatmul.mubr.bf16.gmra.mxu0 %v461
    %v533 = vpop.f32.mrf.mxu0
    %v534 = vadd.f32 %v66, %v533
    %v535 = vpop.f32.mrf.mxu0
    %v536 = vpop.f32.mrf.mxu0
    %v537 = vadd.f32 %v66, %v536
    %v538 = vpop.f32.mrf.mxu0
    %539 = vmatprep.mubr.bf16.mxu0 0
    %540 = vmatmul.mubr.bf16.gmra.mxu0 %v464
    %v541 = vpop.f32.mrf.mxu0
    %v542 = vadd.f32 %v66, %v541
    %v543 = vpop.f32.mrf.mxu0
    %v544 = vpop.f32.mrf.mxu0
    %v545 = vadd.f32 %v66, %v544
    %v546 = vpop.f32.mrf.mxu0
    %547 = vmatprep.mubr.bf16.mxu0 0
    %548 = vmatmul.mubr.bf16.gmra.mxu0 %v467
    %v549 = vpop.f32.mrf.mxu0
    %v550 = vadd.f32 %v66, %v549
    %v551 = vpop.f32.mrf.mxu0
    %v552 = vpop.f32.mrf.mxu0
    %v553 = vadd.f32 %v66, %v552
    %v554 = vpop.f32.mrf.mxu0
    %555 = vmatprep.mubr.bf16.mxu0 0
    %556 = vmatmul.mubr.bf16.gmra.mxu0 %v470
    %v557 = vpop.f32.mrf.mxu0
    %v558 = vadd.f32 %v66, %v557
    %v559 = vpop.f32.mrf.mxu0
    %v560 = vpop.f32.mrf.mxu0
    %v561 = vadd.f32 %v66, %v560
    %v562 = vpop.f32.mrf.mxu0
    %563 = vmatprep.mubr.bf16.mxu0 0
    %564 = vmatmul.mubr.bf16.gmra.mxu0 %v473
    %v565 = vpop.f32.mrf.mxu0
    %v566 = vadd.f32 %v66, %v565
    %v567 = vpop.f32.mrf.mxu0
    %v568 = vpop.f32.mrf.mxu0
    %v569 = vadd.f32 %v66, %v568
    %v570 = vpop.f32.mrf.mxu0
    %571 = vdwg.mxu0
    %v572 = vmax.f32 %v510, 0.0
    %v573 = vmax.f32 %v513, 0.0
    %v574 = vmax.f32 %v518, 0.0
    %v575 = vmax.f32 %v521, 0.0
    %v576 = vmax.f32 %v526, 0.0
    %v577 = vmax.f32 %v529, 0.0
    %v578 = vmax.f32 %v534, 0.0
    %v579 = vmax.f32 %v537, 0.0
    %v580 = vmax.f32 %v542, 0.0
    %v581 = vmax.f32 %v545, 0.0
    %v582 = vmax.f32 %v550, 0.0
    %v583 = vmax.f32 %v553, 0.0
    %v584 = vmax.f32 %v558, 0.0
    %v585 = vmax.f32 %v561, 0.0
    %v586 = vmax.f32 %v566, 0.0
    %v587 = vmax.f32 %v569, 0.0
    %s588 = scalar_lea.vmem %s1, 128
    %v589 = vld [vmem:[%s588] sm:$0xff]
    %v590 = vld [vmem:[%s588 + $0x8] sm:$0xff]
    %v591 = vld [vmem:[%s588 + $0x10] sm:$0xff]
    %v592 = vld [vmem:[%s588 + $0x18] sm:$0xff]
    %v593 = vld [vmem:[%s588 + $0x20] sm:$0xff]
    %v594 = vld [vmem:[%s588 + $0x28] sm:$0xff]
    %v595 = vld [vmem:[%s588 + $0x30] sm:$0xff]
    %v596 = vld [vmem:[%s588 + $0x38] sm:$0xff]
    %v597 = vld [vmem:[%s588 + $0x40] sm:$0xff]
    %v598 = vld [vmem:[%s588 + $0x48] sm:$0xff]
    %v599 = vld [vmem:[%s588 + $0x50] sm:$0xff]
    %v600 = vld [vmem:[%s588 + $0x58] sm:$0xff]
    %v601 = vld [vmem:[%s588 + $0x60] sm:$0xff]
    %v602 = vld [vmem:[%s588 + $0x68] sm:$0xff]
    %v603 = vld [vmem:[%s588 + $0x70] sm:$0xff]
    %v604 = vld [vmem:[%s588 + $0x78] sm:$0xff]
    %606 = vset.pattern.permute.xlu0 0
    %607 = vperm.xlu0 %606, %v589
    %v608 = vpop.permute.xlu0 %607
    %611 = vset.pattern.permute.xlu0 0
    %612 = vperm.xlu0 %611, %v590
    %v613 = vpop.permute.xlu0 %612
    %616 = vset.pattern.permute.xlu0 0
    %617 = vperm.xlu0 %616, %v591
    %v618 = vpop.permute.xlu0 %617
    %621 = vset.pattern.permute.xlu0 0
    %622 = vperm.xlu0 %621, %v592
    %v623 = vpop.permute.xlu0 %622
    %626 = vset.pattern.permute.xlu0 0
    %627 = vperm.xlu0 %626, %v593
    %v628 = vpop.permute.xlu0 %627
    %631 = vset.pattern.permute.xlu0 0
    %632 = vperm.xlu0 %631, %v594
    %v633 = vpop.permute.xlu0 %632
    %636 = vset.pattern.permute.xlu0 0
    %637 = vperm.xlu0 %636, %v595
    %v638 = vpop.permute.xlu0 %637
    %641 = vset.pattern.permute.xlu0 0
    %642 = vperm.xlu0 %641, %v596
    %v643 = vpop.permute.xlu0 %642
    %646 = vset.pattern.permute.xlu0 0
    %647 = vperm.xlu0 %646, %v597
    %v648 = vpop.permute.xlu0 %647
    %651 = vset.pattern.permute.xlu0 0
    %652 = vperm.xlu0 %651, %v598
    %v653 = vpop.permute.xlu0 %652
    %656 = vset.pattern.permute.xlu0 0
    %657 = vperm.xlu0 %656, %v599
    %v658 = vpop.permute.xlu0 %657
    %661 = vset.pattern.permute.xlu0 0
    %662 = vperm.xlu0 %661, %v600
    %v663 = vpop.permute.xlu0 %662
    %666 = vset.pattern.permute.xlu0 0
    %667 = vperm.xlu0 %666, %v601
    %v668 = vpop.permute.xlu0 %667
    %671 = vset.pattern.permute.xlu0 0
    %672 = vperm.xlu0 %671, %v602
    %v673 = vpop.permute.xlu0 %672
    %676 = vset.pattern.permute.xlu0 0
    %677 = vperm.xlu0 %676, %v603
    %v678 = vpop.permute.xlu0 %677
    %681 = vset.pattern.permute.xlu0 0
    %682 = vperm.xlu0 %681, %v604
    %v683 = vpop.permute.xlu0 %682
    %v685 = vmul.f32 %v572, %v608
    %v686 = vmul.f32 %v573, %v613
    %v687 = vmul.f32 %v574, %v618
    %v688 = vmul.f32 %v575, %v623
    %v689 = vmul.f32 %v576, %v628
    %v690 = vmul.f32 %v577, %v633
    %v691 = vmul.f32 %v578, %v638
    %v692 = vmul.f32 %v579, %v643
    %v693 = vmul.f32 %v580, %v648
    %v694 = vmul.f32 %v581, %v653
    %v695 = vmul.f32 %v582, %v658
    %v696 = vmul.f32 %v583, %v663
    %v697 = vmul.f32 %v584, %v668
    %v698 = vmul.f32 %v585, %v673
    %v699 = vmul.f32 %v586, %v678
    %v700 = vmul.f32 %v587, %v683
    %v701 = vpack.c.bf16 %v686, %v685
    %v702 = vpack.c.bf16 %v688, %v687
    %v703 = vpack.c.bf16 %v690, %v689
    %v704 = vpack.c.bf16 %v692, %v691
    %v705 = vpack.c.bf16 %v694, %v693
    %v706 = vpack.c.bf16 %v696, %v695
    %v707 = vpack.c.bf16 %v698, %v697
    %v708 = vpack.c.bf16 %v700, %v699
    %s709 = scalar_lea.vmem %s4, 16
    %v710 = vld [vmem:[%s709] sm:$0xf]
    %v711 = vld [vmem:[%s709 + $0x4] sm:$0xf]
    %v712 = vld [vmem:[%s709 + $0x8] sm:$0xf]
    %v713 = vld [vmem:[%s709 + $0xc] sm:$0xf]
    %v718 = vunpack.c.l.b16 %v710
    %v719 = vunpack.c.l.b16 %v711
    %v720 = vunpack.c.l.b16 %v712
    %v721 = vunpack.c.l.b16 %v713
    %v722 = vpack.c.b16 %v719, %v718
    %v723 = vpack.c.b16 %v721, %v720
    %vm726 = vcmask 261120
    %v728 = vsel %vm726, %v701, 0
    %v731 = vsel %vm726, %v702, 0
    %v734 = vsel %vm726, %v703, 0
    %v737 = vsel %vm726, %v704, 0
    %v740 = vsel %vm726, %v705, 0
    %v743 = vsel %vm726, %v706, 0
    %v746 = vsel %vm726, %v707, 0
    %v749 = vsel %vm726, %v708, 0
    %751 = vmatprep.subr.bf16.mxu0 0
    %752 = vmatpush1.bf16.msra.mxu0 0
    %753 = vmatprep.subr.bf16.mxu0 0
    %754 = vmatpush1.bf16.msra.mxu0 0
    %755 = vmatprep.subr.bf16.mxu0 0
    %756 = vmatpush1.bf16.msra.mxu0 0
    %757 = vmatprep.subr.bf16.mxu0 0
    %758 = vmatpush1.bf16.msra.mxu0 0
    %759 = vmatprep.subr.bf16.mxu0 0
    %760 = vmatpush1.bf16.msra.mxu0 0
    %761 = vmatprep.subr.bf16.mxu0 0
    %762 = vmatpush1.bf16.msra.mxu0 0
    %763 = vmatprep.subr.bf16.mxu0 0
    %764 = vmatpush1.bf16.msra.mxu0 %v723
    %765 = vmatprep.subr.bf16.mxu0 0
    %766 = vmatpush1.bf16.msra.mxu0 %v722
    %767 = vmatprep.subr.bf16.mxu0 0
    %768 = vmatpush2.bf16.msra.mxu0 0
    %769 = vmatprep.subr.bf16.mxu0 0
    %770 = vmatpush2.bf16.msra.mxu0 0
    %771 = vmatprep.subr.bf16.mxu0 0
    %772 = vmatpush2.bf16.msra.mxu0 0
    %773 = vmatprep.subr.bf16.mxu0 0
    %774 = vmatpush2.bf16.msra.mxu0 0
    %775 = vmatprep.subr.bf16.mxu0 0
    %776 = vmatpush2.bf16.msra.mxu0 0
    %777 = vmatprep.subr.bf16.mxu0 0
    %778 = vmatpush2.bf16.msra.mxu0 0
    %779 = vmatprep.subr.bf16.mxu0 0
    %780 = vmatpush2.bf16.msra.mxu0 0
    %781 = vmatprep.subr.bf16.mxu0 0
    %782 = vmatpush2.bf16.msra.mxu0 0
    %783 = vmatprep.mubr.bf16.mxu0 0
    %784 = vmatmul.mubr.bf16.gmra.mxu0 %v728
    %v785 = vpop.f32.mrf.mxu0
    %v786 = vadd.f32 0.0, %v785
    %v787 = vpop.f32.mrf.mxu0
    %v788 = vpop.f32.mrf.mxu0
    %v789 = vadd.f32 0.0, %v788
    %v790 = vpop.f32.mrf.mxu0
    %791 = vmatprep.mubr.bf16.mxu0 0
    %792 = vmatmul.mubr.bf16.gmra.mxu0 %v731
    %v793 = vpop.f32.mrf.mxu0
    %v794 = vadd.f32 0.0, %v793
    %v795 = vpop.f32.mrf.mxu0
    %v796 = vpop.f32.mrf.mxu0
    %v797 = vadd.f32 0.0, %v796
    %v798 = vpop.f32.mrf.mxu0
    %799 = vmatprep.mubr.bf16.mxu0 0
    %800 = vmatmul.mubr.bf16.gmra.mxu0 %v734
    %v801 = vpop.f32.mrf.mxu0
    %v802 = vadd.f32 0.0, %v801
    %v803 = vpop.f32.mrf.mxu0
    %v804 = vpop.f32.mrf.mxu0
    %v805 = vadd.f32 0.0, %v804
    %v806 = vpop.f32.mrf.mxu0
    %807 = vmatprep.mubr.bf16.mxu0 0
    %808 = vmatmul.mubr.bf16.gmra.mxu0 %v737
    %v809 = vpop.f32.mrf.mxu0
    %v810 = vadd.f32 0.0, %v809
    %v811 = vpop.f32.mrf.mxu0
    %v812 = vpop.f32.mrf.mxu0
    %v813 = vadd.f32 0.0, %v812
    %v814 = vpop.f32.mrf.mxu0
    %815 = vmatprep.mubr.bf16.mxu0 0
    %816 = vmatmul.mubr.bf16.gmra.mxu0 %v740
    %v817 = vpop.f32.mrf.mxu0
    %v818 = vadd.f32 0.0, %v817
    %v819 = vpop.f32.mrf.mxu0
    %v820 = vpop.f32.mrf.mxu0
    %v821 = vadd.f32 0.0, %v820
    %v822 = vpop.f32.mrf.mxu0
    %823 = vmatprep.mubr.bf16.mxu0 0
    %824 = vmatmul.mubr.bf16.gmra.mxu0 %v743
    %v825 = vpop.f32.mrf.mxu0
    %v826 = vadd.f32 0.0, %v825
    %v827 = vpop.f32.mrf.mxu0
    %v828 = vpop.f32.mrf.mxu0
    %v829 = vadd.f32 0.0, %v828
    %v830 = vpop.f32.mrf.mxu0
    %831 = vmatprep.mubr.bf16.mxu0 0
    %832 = vmatmul.mubr.bf16.gmra.mxu0 %v746
    %v833 = vpop.f32.mrf.mxu0
    %v834 = vadd.f32 0.0, %v833
    %v835 = vpop.f32.mrf.mxu0
    %v836 = vpop.f32.mrf.mxu0
    %v837 = vadd.f32 0.0, %v836
    %v838 = vpop.f32.mrf.mxu0
    %839 = vmatprep.mubr.bf16.mxu0 0
    %840 = vmatmul.mubr.bf16.gmra.mxu0 %v749
    %v841 = vpop.f32.mrf.mxu0
    %v842 = vadd.f32 0.0, %v841
    %v843 = vpop.f32.mrf.mxu0
    %v844 = vpop.f32.mrf.mxu0
    %v845 = vadd.f32 0.0, %v844
    %v846 = vpop.f32.mrf.mxu0
    %847 = vdwg.mxu0
    %v852 = vunpack.c.l.b16 %v390
    %v853 = vunpack.c.l.b16 %v391
    %v854 = vunpack.c.l.b16 %v392
    %v855 = vunpack.c.l.b16 %v393
    %v856 = vpack.c.b16 %v853, %v852
    %v857 = vpack.c.b16 %v855, %v854
    %v861 = vsel %vm726, %v382, 0
    %v864 = vsel %vm726, %v383, 0
    %v867 = vsel %vm726, %v384, 0
    %v870 = vsel %vm726, %v385, 0
    %v873 = vsel %vm726, %v386, 0
    %v876 = vsel %vm726, %v387, 0
    %v879 = vsel %vm726, %v388, 0
    %v882 = vsel %vm726, %v389, 0
    %884 = vmatprep.subr.bf16.mxu0 0
    %885 = vmatpush1.bf16.msra.mxu0 0
    %886 = vmatprep.subr.bf16.mxu0 0
    %887 = vmatpush1.bf16.msra.mxu0 0
    %888 = vmatprep.subr.bf16.mxu0 0
    %889 = vmatpush1.bf16.msra.mxu0 0
    %890 = vmatprep.subr.bf16.mxu0 0
    %891 = vmatpush1.bf16.msra.mxu0 0
    %892 = vmatprep.subr.bf16.mxu0 0
    %893 = vmatpush1.bf16.msra.mxu0 0
    %894 = vmatprep.subr.bf16.mxu0 0
    %895 = vmatpush1.bf16.msra.mxu0 0
    %896 = vmatprep.subr.bf16.mxu0 0
    %897 = vmatpush1.bf16.msra.mxu0 %v857
    %898 = vmatprep.subr.bf16.mxu0 0
    %899 = vmatpush1.bf16.msra.mxu0 %v856
    %900 = vmatprep.subr.bf16.mxu0 0
    %901 = vmatpush2.bf16.msra.mxu0 0
    %902 = vmatprep.subr.bf16.mxu0 0
    %903 = vmatpush2.bf16.msra.mxu0 0
    %904 = vmatprep.subr.bf16.mxu0 0
    %905 = vmatpush2.bf16.msra.mxu0 0
    %906 = vmatprep.subr.bf16.mxu0 0
    %907 = vmatpush2.bf16.msra.mxu0 0
    %908 = vmatprep.subr.bf16.mxu0 0
    %909 = vmatpush2.bf16.msra.mxu0 0
    %910 = vmatprep.subr.bf16.mxu0 0
    %911 = vmatpush2.bf16.msra.mxu0 0
    %912 = vmatprep.subr.bf16.mxu0 0
    %913 = vmatpush2.bf16.msra.mxu0 0
    %914 = vmatprep.subr.bf16.mxu0 0
    %915 = vmatpush2.bf16.msra.mxu0 0
    %916 = vmatprep.mubr.bf16.mxu0 0
    %917 = vmatmul.mubr.bf16.gmra.mxu0 %v861
    %v918 = vpop.f32.mrf.mxu0
    %v919 = vadd.f32 %v786, %v918
    %v920 = vpop.f32.mrf.mxu0
    %v921 = vpop.f32.mrf.mxu0
    %v922 = vadd.f32 %v789, %v921
    %v923 = vpop.f32.mrf.mxu0
    %924 = vmatprep.mubr.bf16.mxu0 0
    %925 = vmatmul.mubr.bf16.gmra.mxu0 %v864
    %v926 = vpop.f32.mrf.mxu0
    %v927 = vadd.f32 %v794, %v926
    %v928 = vpop.f32.mrf.mxu0
    %v929 = vpop.f32.mrf.mxu0
    %v930 = vadd.f32 %v797, %v929
    %v931 = vpop.f32.mrf.mxu0
    %932 = vmatprep.mubr.bf16.mxu0 0
    %933 = vmatmul.mubr.bf16.gmra.mxu0 %v867
    %v934 = vpop.f32.mrf.mxu0
    %v935 = vadd.f32 %v802, %v934
    %v936 = vpop.f32.mrf.mxu0
    %v937 = vpop.f32.mrf.mxu0
    %v938 = vadd.f32 %v805, %v937
    %v939 = vpop.f32.mrf.mxu0
    %940 = vmatprep.mubr.bf16.mxu0 0
    %941 = vmatmul.mubr.bf16.gmra.mxu0 %v870
    %v942 = vpop.f32.mrf.mxu0
    %v943 = vadd.f32 %v810, %v942
    %v944 = vpop.f32.mrf.mxu0
    %v945 = vpop.f32.mrf.mxu0
    %v946 = vadd.f32 %v813, %v945
    %v947 = vpop.f32.mrf.mxu0
    %948 = vmatprep.mubr.bf16.mxu0 0
    %949 = vmatmul.mubr.bf16.gmra.mxu0 %v873
    %v950 = vpop.f32.mrf.mxu0
    %v951 = vadd.f32 %v818, %v950
    %v952 = vpop.f32.mrf.mxu0
    %v953 = vpop.f32.mrf.mxu0
    %v954 = vadd.f32 %v821, %v953
    %v955 = vpop.f32.mrf.mxu0
    %956 = vmatprep.mubr.bf16.mxu0 0
    %957 = vmatmul.mubr.bf16.gmra.mxu0 %v876
    %v958 = vpop.f32.mrf.mxu0
    %v959 = vadd.f32 %v826, %v958
    %v960 = vpop.f32.mrf.mxu0
    %v961 = vpop.f32.mrf.mxu0
    %v962 = vadd.f32 %v829, %v961
    %v963 = vpop.f32.mrf.mxu0
    %964 = vmatprep.mubr.bf16.mxu0 0
    %965 = vmatmul.mubr.bf16.gmra.mxu0 %v879
    %v966 = vpop.f32.mrf.mxu0
    %v967 = vadd.f32 %v834, %v966
    %v968 = vpop.f32.mrf.mxu0
    %v969 = vpop.f32.mrf.mxu0
    %v970 = vadd.f32 %v837, %v969
    %v971 = vpop.f32.mrf.mxu0
    %972 = vmatprep.mubr.bf16.mxu0 0
    %973 = vmatmul.mubr.bf16.gmra.mxu0 %v882
    %v974 = vpop.f32.mrf.mxu0
    %v975 = vadd.f32 %v842, %v974
    %v976 = vpop.f32.mrf.mxu0
    %v977 = vpop.f32.mrf.mxu0
    %v978 = vadd.f32 %v845, %v977
    %v979 = vpop.f32.mrf.mxu0
    %980 = vdwg.mxu0
    %s981 = scalar_lea.vmem %s0, 128
    %v982 = vld [vmem:[%s981] sm:$0xf]
    %v983 = vld [vmem:[%s981 + $0x4] sm:$0xf]
    %v984 = vld [vmem:[%s981 + $0x8] sm:$0xf]
    %v985 = vld [vmem:[%s981 + $0xc] sm:$0xf]
    %v986 = vld [vmem:[%s981 + $0x10] sm:$0xf]
    %v987 = vld [vmem:[%s981 + $0x14] sm:$0xf]
    %v988 = vld [vmem:[%s981 + $0x18] sm:$0xf]
    %v989 = vld [vmem:[%s981 + $0x1c] sm:$0xf]
    %v990 = vld [vmem:[%s981 + $0x20] sm:$0xf]
    %v991 = vld [vmem:[%s981 + $0x24] sm:$0xf]
    %v992 = vld [vmem:[%s981 + $0x28] sm:$0xf]
    %v993 = vld [vmem:[%s981 + $0x2c] sm:$0xf]
    %v994 = vld [vmem:[%s981 + $0x30] sm:$0xf]
    %v995 = vld [vmem:[%s981 + $0x34] sm:$0xf]
    %v996 = vld [vmem:[%s981 + $0x38] sm:$0xf]
    %v997 = vld [vmem:[%s981 + $0x3c] sm:$0xf]
    %v1014 = vunpack.c.l.b16 %v982
    %v1015 = vunpack.c.l.b16 %v983
    %v1016 = vunpack.c.l.b16 %v984
    %v1017 = vunpack.c.l.b16 %v985
    %v1018 = vunpack.c.l.b16 %v986
    %v1019 = vunpack.c.l.b16 %v987
    %v1020 = vunpack.c.l.b16 %v988
    %v1021 = vunpack.c.l.b16 %v989
    %v1022 = vunpack.c.l.b16 %v990
    %v1023 = vunpack.c.l.b16 %v991
    %v1024 = vunpack.c.l.b16 %v992
    %v1025 = vunpack.c.l.b16 %v993
    %v1026 = vunpack.c.l.b16 %v994
    %v1027 = vunpack.c.l.b16 %v995
    %v1028 = vunpack.c.l.b16 %v996
    %v1029 = vunpack.c.l.b16 %v997
    %v1030 = vpack.c.b16 %v1015, %v1014
    %v1031 = vpack.c.b16 %v1017, %v1016
    %v1032 = vpack.c.b16 %v1019, %v1018
    %v1033 = vpack.c.b16 %v1021, %v1020
    %v1034 = vpack.c.b16 %v1023, %v1022
    %v1035 = vpack.c.b16 %v1025, %v1024
    %v1036 = vpack.c.b16 %v1027, %v1026
    %v1037 = vpack.c.b16 %v1029, %v1028
    %v1039 = vsel %vm132, %v1030, 0
    %v1042 = vsel %vm132, %v1031, 0
    %v1045 = vsel %vm132, %v1032, 0
    %v1048 = vsel %vm132, %v1033, 0
    %v1051 = vsel %vm132, %v1034, 0
    %v1054 = vsel %vm132, %v1035, 0
    %v1057 = vsel %vm132, %v1036, 0
    %v1060 = vsel %vm132, %v1037, 0
    %1062 = vmatprep.subr.bf16.mxu0 0
    %1063 = vmatpush1.bf16.msra.mxu0 0
    %1064 = vmatprep.subr.bf16.mxu0 0
    %1065 = vmatpush1.bf16.msra.mxu0 0
    %1066 = vmatprep.subr.bf16.mxu0 0
    %1067 = vmatpush1.bf16.msra.mxu0 0
    %1068 = vmatprep.subr.bf16.mxu0 0
    %1069 = vmatpush1.bf16.msra.mxu0 0
    %1070 = vmatprep.subr.bf16.mxu0 0
    %1071 = vmatpush1.bf16.msra.mxu0 %v127
    %1072 = vmatprep.subr.bf16.mxu0 0
    %1073 = vmatpush1.bf16.msra.mxu0 %v126
    %1074 = vmatprep.subr.bf16.mxu0 0
    %1075 = vmatpush1.bf16.msra.mxu0 %v125
    %1076 = vmatprep.subr.bf16.mxu0 0
    %1077 = vmatpush1.bf16.msra.mxu0 %v124
    %1078 = vmatprep.subr.bf16.mxu0 0
    %1079 = vmatpush2.bf16.msra.mxu0 0
    %1080 = vmatprep.subr.bf16.mxu0 0
    %1081 = vmatpush2.bf16.msra.mxu0 0
    %1082 = vmatprep.subr.bf16.mxu0 0
    %1083 = vmatpush2.bf16.msra.mxu0 0
    %1084 = vmatprep.subr.bf16.mxu0 0
    %1085 = vmatpush2.bf16.msra.mxu0 0
    %1086 = vmatprep.subr.bf16.mxu0 0
    %1087 = vmatpush2.bf16.msra.mxu0 0
    %1088 = vmatprep.subr.bf16.mxu0 0
    %1089 = vmatpush2.bf16.msra.mxu0 0
    %1090 = vmatprep.subr.bf16.mxu0 0
    %1091 = vmatpush2.bf16.msra.mxu0 0
    %1092 = vmatprep.subr.bf16.mxu0 0
    %1093 = vmatpush2.bf16.msra.mxu0 0
    %1094 = vmatprep.mubr.bf16.mxu0 0
    %1095 = vmatmul.mubr.bf16.gmra.mxu0 %v1039
    %v1096 = vpop.f32.mrf.mxu0
    %v1097 = vadd.f32 %v66, %v1096
    %v1098 = vpop.f32.mrf.mxu0
    %v1099 = vpop.f32.mrf.mxu0
    %v1100 = vadd.f32 %v66, %v1099
    %v1101 = vpop.f32.mrf.mxu0
    %1102 = vmatprep.mubr.bf16.mxu0 0
    %1103 = vmatmul.mubr.bf16.gmra.mxu0 %v1042
    %v1104 = vpop.f32.mrf.mxu0
    %v1105 = vadd.f32 %v66, %v1104
    %v1106 = vpop.f32.mrf.mxu0
    %v1107 = vpop.f32.mrf.mxu0
    %v1108 = vadd.f32 %v66, %v1107
    %v1109 = vpop.f32.mrf.mxu0
    %1110 = vmatprep.mubr.bf16.mxu0 0
    %1111 = vmatmul.mubr.bf16.gmra.mxu0 %v1045
    %v1112 = vpop.f32.mrf.mxu0
    %v1113 = vadd.f32 %v66, %v1112
    %v1114 = vpop.f32.mrf.mxu0
    %v1115 = vpop.f32.mrf.mxu0
    %v1116 = vadd.f32 %v66, %v1115
    %v1117 = vpop.f32.mrf.mxu0
    %1118 = vmatprep.mubr.bf16.mxu0 0
    %1119 = vmatmul.mubr.bf16.gmra.mxu0 %v1048
    %v1120 = vpop.f32.mrf.mxu0
    %v1121 = vadd.f32 %v66, %v1120
    %v1122 = vpop.f32.mrf.mxu0
    %v1123 = vpop.f32.mrf.mxu0
    %v1124 = vadd.f32 %v66, %v1123
    %v1125 = vpop.f32.mrf.mxu0
    %1126 = vmatprep.mubr.bf16.mxu0 0
    %1127 = vmatmul.mubr.bf16.gmra.mxu0 %v1051
    %v1128 = vpop.f32.mrf.mxu0
    %v1129 = vadd.f32 %v66, %v1128
    %v1130 = vpop.f32.mrf.mxu0
    %v1131 = vpop.f32.mrf.mxu0
    %v1132 = vadd.f32 %v66, %v1131
    %v1133 = vpop.f32.mrf.mxu0
    %1134 = vmatprep.mubr.bf16.mxu0 0
    %1135 = vmatmul.mubr.bf16.gmra.mxu0 %v1054
    %v1136 = vpop.f32.mrf.mxu0
    %v1137 = vadd.f32 %v66, %v1136
    %v1138 = vpop.f32.mrf.mxu0
    %v1139 = vpop.f32.mrf.mxu0
    %v1140 = vadd.f32 %v66, %v1139
    %v1141 = vpop.f32.mrf.mxu0
    %1142 = vmatprep.mubr.bf16.mxu0 0
    %1143 = vmatmul.mubr.bf16.gmra.mxu0 %v1057
    %v1144 = vpop.f32.mrf.mxu0
    %v1145 = vadd.f32 %v66, %v1144
    %v1146 = vpop.f32.mrf.mxu0
    %v1147 = vpop.f32.mrf.mxu0
    %v1148 = vadd.f32 %v66, %v1147
    %v1149 = vpop.f32.mrf.mxu0
    %1150 = vmatprep.mubr.bf16.mxu0 0
    %1151 = vmatmul.mubr.bf16.gmra.mxu0 %v1060
    %v1152 = vpop.f32.mrf.mxu0
    %v1153 = vadd.f32 %v66, %v1152
    %v1154 = vpop.f32.mrf.mxu0
    %v1155 = vpop.f32.mrf.mxu0
    %v1156 = vadd.f32 %v66, %v1155
    %v1157 = vpop.f32.mrf.mxu0
    %1158 = vdwg.mxu0
    %v1159 = vmax.f32 %v1097, 0.0
    %v1160 = vmax.f32 %v1100, 0.0
    %v1161 = vmax.f32 %v1105, 0.0
    %v1162 = vmax.f32 %v1108, 0.0
    %v1163 = vmax.f32 %v1113, 0.0
    %v1164 = vmax.f32 %v1116, 0.0
    %v1165 = vmax.f32 %v1121, 0.0
    %v1166 = vmax.f32 %v1124, 0.0
    %v1167 = vmax.f32 %v1129, 0.0
    %v1168 = vmax.f32 %v1132, 0.0
    %v1169 = vmax.f32 %v1137, 0.0
    %v1170 = vmax.f32 %v1140, 0.0
    %v1171 = vmax.f32 %v1145, 0.0
    %v1172 = vmax.f32 %v1148, 0.0
    %v1173 = vmax.f32 %v1153, 0.0
    %v1174 = vmax.f32 %v1156, 0.0
    %s1175 = scalar_lea.vmem %s1, 256
    %v1176 = vld [vmem:[%s1175] sm:$0xff]
    %v1177 = vld [vmem:[%s1175 + $0x8] sm:$0xff]
    %v1178 = vld [vmem:[%s1175 + $0x10] sm:$0xff]
    %v1179 = vld [vmem:[%s1175 + $0x18] sm:$0xff]
    %v1180 = vld [vmem:[%s1175 + $0x20] sm:$0xff]
    %v1181 = vld [vmem:[%s1175 + $0x28] sm:$0xff]
    %v1182 = vld [vmem:[%s1175 + $0x30] sm:$0xff]
    %v1183 = vld [vmem:[%s1175 + $0x38] sm:$0xff]
    %v1184 = vld [vmem:[%s1175 + $0x40] sm:$0xff]
    %v1185 = vld [vmem:[%s1175 + $0x48] sm:$0xff]
    %v1186 = vld [vmem:[%s1175 + $0x50] sm:$0xff]
    %v1187 = vld [vmem:[%s1175 + $0x58] sm:$0xff]
    %v1188 = vld [vmem:[%s1175 + $0x60] sm:$0xff]
    %v1189 = vld [vmem:[%s1175 + $0x68] sm:$0xff]
    %v1190 = vld [vmem:[%s1175 + $0x70] sm:$0xff]
    %v1191 = vld [vmem:[%s1175 + $0x78] sm:$0xff]
    %1193 = vset.pattern.permute.xlu0 0
    %1194 = vperm.xlu0 %1193, %v1176
    %v1195 = vpop.permute.xlu0 %1194
    %1198 = vset.pattern.permute.xlu0 0
    %1199 = vperm.xlu0 %1198, %v1177
    %v1200 = vpop.permute.xlu0 %1199
    %1203 = vset.pattern.permute.xlu0 0
    %1204 = vperm.xlu0 %1203, %v1178
    %v1205 = vpop.permute.xlu0 %1204
    %1208 = vset.pattern.permute.xlu0 0
    %1209 = vperm.xlu0 %1208, %v1179
    %v1210 = vpop.permute.xlu0 %1209
    %1213 = vset.pattern.permute.xlu0 0
    %1214 = vperm.xlu0 %1213, %v1180
    %v1215 = vpop.permute.xlu0 %1214
    %1218 = vset.pattern.permute.xlu0 0
    %1219 = vperm.xlu0 %1218, %v1181
    %v1220 = vpop.permute.xlu0 %1219
    %1223 = vset.pattern.permute.xlu0 0
    %1224 = vperm.xlu0 %1223, %v1182
    %v1225 = vpop.permute.xlu0 %1224
    %1228 = vset.pattern.permute.xlu0 0
    %1229 = vperm.xlu0 %1228, %v1183
    %v1230 = vpop.permute.xlu0 %1229
    %1233 = vset.pattern.permute.xlu0 0
    %1234 = vperm.xlu0 %1233, %v1184
    %v1235 = vpop.permute.xlu0 %1234
    %1238 = vset.pattern.permute.xlu0 0
    %1239 = vperm.xlu0 %1238, %v1185
    %v1240 = vpop.permute.xlu0 %1239
    %1243 = vset.pattern.permute.xlu0 0
    %1244 = vperm.xlu0 %1243, %v1186
    %v1245 = vpop.permute.xlu0 %1244
    %1248 = vset.pattern.permute.xlu0 0
    %1249 = vperm.xlu0 %1248, %v1187
    %v1250 = vpop.permute.xlu0 %1249
    %1253 = vset.pattern.permute.xlu0 0
    %1254 = vperm.xlu0 %1253, %v1188
    %v1255 = vpop.permute.xlu0 %1254
    %1258 = vset.pattern.permute.xlu0 0
    %1259 = vperm.xlu0 %1258, %v1189
    %v1260 = vpop.permute.xlu0 %1259
    %1263 = vset.pattern.permute.xlu0 0
    %1264 = vperm.xlu0 %1263, %v1190
    %v1265 = vpop.permute.xlu0 %1264
    %1268 = vset.pattern.permute.xlu0 0
    %1269 = vperm.xlu0 %1268, %v1191
    %v1270 = vpop.permute.xlu0 %1269
    %v1272 = vmul.f32 %v1159, %v1195
    %v1273 = vmul.f32 %v1160, %v1200
    %v1274 = vmul.f32 %v1161, %v1205
    %v1275 = vmul.f32 %v1162, %v1210
    %v1276 = vmul.f32 %v1163, %v1215
    %v1277 = vmul.f32 %v1164, %v1220
    %v1278 = vmul.f32 %v1165, %v1225
    %v1279 = vmul.f32 %v1166, %v1230
    %v1280 = vmul.f32 %v1167, %v1235
    %v1281 = vmul.f32 %v1168, %v1240
    %v1282 = vmul.f32 %v1169, %v1245
    %v1283 = vmul.f32 %v1170, %v1250
    %v1284 = vmul.f32 %v1171, %v1255
    %v1285 = vmul.f32 %v1172, %v1260
    %v1286 = vmul.f32 %v1173, %v1265
    %v1287 = vmul.f32 %v1174, %v1270
    %v1288 = vpack.c.bf16 %v1273, %v1272
    %v1289 = vpack.c.bf16 %v1275, %v1274
    %v1290 = vpack.c.bf16 %v1277, %v1276
    %v1291 = vpack.c.bf16 %v1279, %v1278
    %v1292 = vpack.c.bf16 %v1281, %v1280
    %v1293 = vpack.c.bf16 %v1283, %v1282
    %v1294 = vpack.c.bf16 %v1285, %v1284
    %v1295 = vpack.c.bf16 %v1287, %v1286
    %s1296 = scalar_lea.vmem %s4, 32
    %v1297 = vld [vmem:[%s1296] sm:$0xf]
    %v1298 = vld [vmem:[%s1296 + $0x4] sm:$0xf]
    %v1299 = vld [vmem:[%s1296 + $0x8] sm:$0xf]
    %v1300 = vld [vmem:[%s1296 + $0xc] sm:$0xf]
    %v1305 = vunpack.c.l.b16 %v1297
    %v1306 = vunpack.c.l.b16 %v1298
    %v1307 = vunpack.c.l.b16 %v1299
    %v1308 = vunpack.c.l.b16 %v1300
    %v1309 = vpack.c.b16 %v1306, %v1305
    %v1310 = vpack.c.b16 %v1308, %v1307
    %v1314 = vsel %vm726, %v1288, 0
    %v1317 = vsel %vm726, %v1289, 0
    %v1320 = vsel %vm726, %v1290, 0
    %v1323 = vsel %vm726, %v1291, 0
    %v1326 = vsel %vm726, %v1292, 0
    %v1329 = vsel %vm726, %v1293, 0
    %v1332 = vsel %vm726, %v1294, 0
    %v1335 = vsel %vm726, %v1295, 0
    %1337 = vmatprep.subr.bf16.mxu0 0
    %1338 = vmatpush1.bf16.msra.mxu0 0
    %1339 = vmatprep.subr.bf16.mxu0 0
    %1340 = vmatpush1.bf16.msra.mxu0 0
    %1341 = vmatprep.subr.bf16.mxu0 0
    %1342 = vmatpush1.bf16.msra.mxu0 0
    %1343 = vmatprep.subr.bf16.mxu0 0
    %1344 = vmatpush1.bf16.msra.mxu0 0
    %1345 = vmatprep.subr.bf16.mxu0 0
    %1346 = vmatpush1.bf16.msra.mxu0 0
    %1347 = vmatprep.subr.bf16.mxu0 0
    %1348 = vmatpush1.bf16.msra.mxu0 0
    %1349 = vmatprep.subr.bf16.mxu0 0
    %1350 = vmatpush1.bf16.msra.mxu0 %v1310
    %1351 = vmatprep.subr.bf16.mxu0 0
    %1352 = vmatpush1.bf16.msra.mxu0 %v1309
    %1353 = vmatprep.subr.bf16.mxu0 0
    %1354 = vmatpush2.bf16.msra.mxu0 0
    %1355 = vmatprep.subr.bf16.mxu0 0
    %1356 = vmatpush2.bf16.msra.mxu0 0
    %1357 = vmatprep.subr.bf16.mxu0 0
    %1358 = vmatpush2.bf16.msra.mxu0 0
    %1359 = vmatprep.subr.bf16.mxu0 0
    %1360 = vmatpush2.bf16.msra.mxu0 0
    %1361 = vmatprep.subr.bf16.mxu0 0
    %1362 = vmatpush2.bf16.msra.mxu0 0
    %1363 = vmatprep.subr.bf16.mxu0 0
    %1364 = vmatpush2.bf16.msra.mxu0 0
    %1365 = vmatprep.subr.bf16.mxu0 0
    %1366 = vmatpush2.bf16.msra.mxu0 0
    %1367 = vmatprep.subr.bf16.mxu0 0
    %1368 = vmatpush2.bf16.msra.mxu0 0
    %1369 = vmatprep.mubr.bf16.mxu0 0
    %1370 = vmatmul.mubr.bf16.gmra.mxu0 %v1314
    %v1371 = vpop.f32.mrf.mxu0
    %v1372 = vadd.f32 0.0, %v1371
    %v1373 = vpop.f32.mrf.mxu0
    %v1374 = vpop.f32.mrf.mxu0
    %v1375 = vadd.f32 0.0, %v1374
    %v1376 = vpop.f32.mrf.mxu0
    %1377 = vmatprep.mubr.bf16.mxu0 0
    %1378 = vmatmul.mubr.bf16.gmra.mxu0 %v1317
    %v1379 = vpop.f32.mrf.mxu0
    %v1380 = vadd.f32 0.0, %v1379
    %v1381 = vpop.f32.mrf.mxu0
    %v1382 = vpop.f32.mrf.mxu0
    %v1383 = vadd.f32 0.0, %v1382
    %v1384 = vpop.f32.mrf.mxu0
    %1385 = vmatprep.mubr.bf16.mxu0 0
    %1386 = vmatmul.mubr.bf16.gmra.mxu0 %v1320
    %v1387 = vpop.f32.mrf.mxu0
    %v1388 = vadd.f32 0.0, %v1387
    %v1389 = vpop.f32.mrf.mxu0
    %v1390 = vpop.f32.mrf.mxu0
    %v1391 = vadd.f32 0.0, %v1390
    %v1392 = vpop.f32.mrf.mxu0
    %1393 = vmatprep.mubr.bf16.mxu0 0
    %1394 = vmatmul.mubr.bf16.gmra.mxu0 %v1323
    %v1395 = vpop.f32.mrf.mxu0
    %v1396 = vadd.f32 0.0, %v1395
    %v1397 = vpop.f32.mrf.mxu0
    %v1398 = vpop.f32.mrf.mxu0
    %v1399 = vadd.f32 0.0, %v1398
    %v1400 = vpop.f32.mrf.mxu0
    %1401 = vmatprep.mubr.bf16.mxu0 0
    %1402 = vmatmul.mubr.bf16.gmra.mxu0 %v1326
    %v1403 = vpop.f32.mrf.mxu0
    %v1404 = vadd.f32 0.0, %v1403
    %v1405 = vpop.f32.mrf.mxu0
    %v1406 = vpop.f32.mrf.mxu0
    %v1407 = vadd.f32 0.0, %v1406
    %v1408 = vpop.f32.mrf.mxu0
    %1409 = vmatprep.mubr.bf16.mxu0 0
    %1410 = vmatmul.mubr.bf16.gmra.mxu0 %v1329
    %v1411 = vpop.f32.mrf.mxu0
    %v1412 = vadd.f32 0.0, %v1411
    %v1413 = vpop.f32.mrf.mxu0
    %v1414 = vpop.f32.mrf.mxu0
    %v1415 = vadd.f32 0.0, %v1414
    %v1416 = vpop.f32.mrf.mxu0
    %1417 = vmatprep.mubr.bf16.mxu0 0
    %1418 = vmatmul.mubr.bf16.gmra.mxu0 %v1332
    %v1419 = vpop.f32.mrf.mxu0
    %v1420 = vadd.f32 0.0, %v1419
    %v1421 = vpop.f32.mrf.mxu0
    %v1422 = vpop.f32.mrf.mxu0
    %v1423 = vadd.f32 0.0, %v1422
    %v1424 = vpop.f32.mrf.mxu0
    %1425 = vmatprep.mubr.bf16.mxu0 0
    %1426 = vmatmul.mubr.bf16.gmra.mxu0 %v1335
    %v1427 = vpop.f32.mrf.mxu0
    %v1428 = vadd.f32 0.0, %v1427
    %v1429 = vpop.f32.mrf.mxu0
    %v1430 = vpop.f32.mrf.mxu0
    %v1431 = vadd.f32 0.0, %v1430
    %v1432 = vpop.f32.mrf.mxu0
    %1433 = vdwg.mxu0
    %v1434 = vadd.f32 %v919, %v1372
    %v1435 = vadd.f32 %v922, %v1375
    %v1436 = vadd.f32 %v927, %v1380
    %v1437 = vadd.f32 %v930, %v1383
    %v1438 = vadd.f32 %v935, %v1388
    %v1439 = vadd.f32 %v938, %v1391
    %v1440 = vadd.f32 %v943, %v1396
    %v1441 = vadd.f32 %v946, %v1399
    %v1442 = vadd.f32 %v951, %v1404
    %v1443 = vadd.f32 %v954, %v1407
    %v1444 = vadd.f32 %v959, %v1412
    %v1445 = vadd.f32 %v962, %v1415
    %v1446 = vadd.f32 %v967, %v1420
    %v1447 = vadd.f32 %v970, %v1423
    %v1448 = vadd.f32 %v975, %v1428
    %v1449 = vadd.f32 %v978, %v1431
    %s1450 = scalar_lea.vmem %s0, 192
    %v1451 = vld [vmem:[%s1450] sm:$0xf]
    %v1452 = vld [vmem:[%s1450 + $0x4] sm:$0xf]
    %v1453 = vld [vmem:[%s1450 + $0x8] sm:$0xf]
    %v1454 = vld [vmem:[%s1450 + $0xc] sm:$0xf]
    %v1455 = vld [vmem:[%s1450 + $0x10] sm:$0xf]
    %v1456 = vld [vmem:[%s1450 + $0x14] sm:$0xf]
    %v1457 = vld [vmem:[%s1450 + $0x18] sm:$0xf]
    %v1458 = vld [vmem:[%s1450 + $0x1c] sm:$0xf]
    %v1459 = vld [vmem:[%s1450 + $0x20] sm:$0xf]
    %v1460 = vld [vmem:[%s1450 + $0x24] sm:$0xf]
    %v1461 = vld [vmem:[%s1450 + $0x28] sm:$0xf]
    %v1462 = vld [vmem:[%s1450 + $0x2c] sm:$0xf]
    %v1463 = vld [vmem:[%s1450 + $0x30] sm:$0xf]
    %v1464 = vld [vmem:[%s1450 + $0x34] sm:$0xf]
    %v1465 = vld [vmem:[%s1450 + $0x38] sm:$0xf]
    %v1466 = vld [vmem:[%s1450 + $0x3c] sm:$0xf]
    %v1483 = vunpack.c.l.b16 %v1451
    %v1484 = vunpack.c.l.b16 %v1452
    %v1485 = vunpack.c.l.b16 %v1453
    %v1486 = vunpack.c.l.b16 %v1454
    %v1487 = vunpack.c.l.b16 %v1455
    %v1488 = vunpack.c.l.b16 %v1456
    %v1489 = vunpack.c.l.b16 %v1457
    %v1490 = vunpack.c.l.b16 %v1458
    %v1491 = vunpack.c.l.b16 %v1459
    %v1492 = vunpack.c.l.b16 %v1460
    %v1493 = vunpack.c.l.b16 %v1461
    %v1494 = vunpack.c.l.b16 %v1462
    %v1495 = vunpack.c.l.b16 %v1463
    %v1496 = vunpack.c.l.b16 %v1464
    %v1497 = vunpack.c.l.b16 %v1465
    %v1498 = vunpack.c.l.b16 %v1466
    %v1499 = vpack.c.b16 %v1484, %v1483
    %v1500 = vpack.c.b16 %v1486, %v1485
    %v1501 = vpack.c.b16 %v1488, %v1487
    %v1502 = vpack.c.b16 %v1490, %v1489
    %v1503 = vpack.c.b16 %v1492, %v1491
    %v1504 = vpack.c.b16 %v1494, %v1493
    %v1505 = vpack.c.b16 %v1496, %v1495
    %v1506 = vpack.c.b16 %v1498, %v1497
    %v1508 = vsel %vm132, %v1499, 0
    %v1511 = vsel %vm132, %v1500, 0
    %v1514 = vsel %vm132, %v1501, 0
    %v1517 = vsel %vm132, %v1502, 0
    %v1520 = vsel %vm132, %v1503, 0
    %v1523 = vsel %vm132, %v1504, 0
    %v1526 = vsel %vm132, %v1505, 0
    %v1529 = vsel %vm132, %v1506, 0
    %1531 = vmatprep.subr.bf16.mxu0 0
    %1532 = vmatpush1.bf16.msra.mxu0 0
    %1533 = vmatprep.subr.bf16.mxu0 0
    %1534 = vmatpush1.bf16.msra.mxu0 0
    %1535 = vmatprep.subr.bf16.mxu0 0
    %1536 = vmatpush1.bf16.msra.mxu0 0
    %1537 = vmatprep.subr.bf16.mxu0 0
    %1538 = vmatpush1.bf16.msra.mxu0 0
    %1539 = vmatprep.subr.bf16.mxu0 0
    %1540 = vmatpush1.bf16.msra.mxu0 %v127
    %1541 = vmatprep.subr.bf16.mxu0 0
    %1542 = vmatpush1.bf16.msra.mxu0 %v126
    %1543 = vmatprep.subr.bf16.mxu0 0
    %1544 = vmatpush1.bf16.msra.mxu0 %v125
    %1545 = vmatprep.subr.bf16.mxu0 0
    %1546 = vmatpush1.bf16.msra.mxu0 %v124
    %1547 = vmatprep.subr.bf16.mxu0 0
    %1548 = vmatpush2.bf16.msra.mxu0 0
    %1549 = vmatprep.subr.bf16.mxu0 0
    %1550 = vmatpush2.bf16.msra.mxu0 0
    %1551 = vmatprep.subr.bf16.mxu0 0
    %1552 = vmatpush2.bf16.msra.mxu0 0
    %1553 = vmatprep.subr.bf16.mxu0 0
    %1554 = vmatpush2.bf16.msra.mxu0 0
    %1555 = vmatprep.subr.bf16.mxu0 0
    %1556 = vmatpush2.bf16.msra.mxu0 0
    %1557 = vmatprep.subr.bf16.mxu0 0
    %1558 = vmatpush2.bf16.msra.mxu0 0
    %1559 = vmatprep.subr.bf16.mxu0 0
    %1560 = vmatpush2.bf16.msra.mxu0 0
    %1561 = vmatprep.subr.bf16.mxu0 0
    %1562 = vmatpush2.bf16.msra.mxu0 0
    %1563 = vmatprep.mubr.bf16.mxu0 0
    %1564 = vmatmul.mubr.bf16.gmra.mxu0 %v1508
    %v1565 = vpop.f32.mrf.mxu0
    %v1566 = vadd.f32 %v66, %v1565
    %v1567 = vpop.f32.mrf.mxu0
    %v1568 = vpop.f32.mrf.mxu0
    %v1569 = vadd.f32 %v66, %v1568
    %v1570 = vpop.f32.mrf.mxu0
    %1571 = vmatprep.mubr.bf16.mxu0 0
    %1572 = vmatmul.mubr.bf16.gmra.mxu0 %v1511
    %v1573 = vpop.f32.mrf.mxu0
    %v1574 = vadd.f32 %v66, %v1573
    %v1575 = vpop.f32.mrf.mxu0
    %v1576 = vpop.f32.mrf.mxu0
    %v1577 = vadd.f32 %v66, %v1576
    %v1578 = vpop.f32.mrf.mxu0
    %1579 = vmatprep.mubr.bf16.mxu0 0
    %1580 = vmatmul.mubr.bf16.gmra.mxu0 %v1514
    %v1581 = vpop.f32.mrf.mxu0
    %v1582 = vadd.f32 %v66, %v1581
    %v1583 = vpop.f32.mrf.mxu0
    %v1584 = vpop.f32.mrf.mxu0
    %v1585 = vadd.f32 %v66, %v1584
    %v1586 = vpop.f32.mrf.mxu0
    %1587 = vmatprep.mubr.bf16.mxu0 0
    %1588 = vmatmul.mubr.bf16.gmra.mxu0 %v1517
    %v1589 = vpop.f32.mrf.mxu0
    %v1590 = vadd.f32 %v66, %v1589
    %v1591 = vpop.f32.mrf.mxu0
    %v1592 = vpop.f32.mrf.mxu0
    %v1593 = vadd.f32 %v66, %v1592
    %v1594 = vpop.f32.mrf.mxu0
    %1595 = vmatprep.mubr.bf16.mxu0 0
    %1596 = vmatmul.mubr.bf16.gmra.mxu0 %v1520
    %v1597 = vpop.f32.mrf.mxu0
    %v1598 = vadd.f32 %v66, %v1597
    %v1599 = vpop.f32.mrf.mxu0
    %v1600 = vpop.f32.mrf.mxu0
    %v1601 = vadd.f32 %v66, %v1600
    %v1602 = vpop.f32.mrf.mxu0
    %1603 = vmatprep.mubr.bf16.mxu0 0
    %1604 = vmatmul.mubr.bf16.gmra.mxu0 %v1523
    %v1605 = vpop.f32.mrf.mxu0
    %v1606 = vadd.f32 %v66, %v1605
    %v1607 = vpop.f32.mrf.mxu0
    %v1608 = vpop.f32.mrf.mxu0
    %v1609 = vadd.f32 %v66, %v1608
    %v1610 = vpop.f32.mrf.mxu0
    %1611 = vmatprep.mubr.bf16.mxu0 0
    %1612 = vmatmul.mubr.bf16.gmra.mxu0 %v1526
    %v1613 = vpop.f32.mrf.mxu0
    %v1614 = vadd.f32 %v66, %v1613
    %v1615 = vpop.f32.mrf.mxu0
    %v1616 = vpop.f32.mrf.mxu0
    %v1617 = vadd.f32 %v66, %v1616
    %v1618 = vpop.f32.mrf.mxu0
    %1619 = vmatprep.mubr.bf16.mxu0 0
    %1620 = vmatmul.mubr.bf16.gmra.mxu0 %v1529
    %v1621 = vpop.f32.mrf.mxu0
    %v1622 = vadd.f32 %v66, %v1621
    %v1623 = vpop.f32.mrf.mxu0
    %v1624 = vpop.f32.mrf.mxu0
    %v1625 = vadd.f32 %v66, %v1624
    %v1626 = vpop.f32.mrf.mxu0
    %1627 = vdwg.mxu0
    %v1628 = vmax.f32 %v1566, 0.0
    %v1629 = vmax.f32 %v1569, 0.0
    %v1630 = vmax.f32 %v1574, 0.0
    %v1631 = vmax.f32 %v1577, 0.0
    %v1632 = vmax.f32 %v1582, 0.0
    %v1633 = vmax.f32 %v1585, 0.0
    %v1634 = vmax.f32 %v1590, 0.0
    %v1635 = vmax.f32 %v1593, 0.0
    %v1636 = vmax.f32 %v1598, 0.0
    %v1637 = vmax.f32 %v1601, 0.0
    %v1638 = vmax.f32 %v1606, 0.0
    %v1639 = vmax.f32 %v1609, 0.0
    %v1640 = vmax.f32 %v1614, 0.0
    %v1641 = vmax.f32 %v1617, 0.0
    %v1642 = vmax.f32 %v1622, 0.0
    %v1643 = vmax.f32 %v1625, 0.0
    %s1644 = scalar_lea.vmem %s1, 384
    %v1645 = vld [vmem:[%s1644] sm:$0xff]
    %v1646 = vld [vmem:[%s1644 + $0x8] sm:$0xff]
    %v1647 = vld [vmem:[%s1644 + $0x10] sm:$0xff]
    %v1648 = vld [vmem:[%s1644 + $0x18] sm:$0xff]
    %v1649 = vld [vmem:[%s1644 + $0x20] sm:$0xff]
    %v1650 = vld [vmem:[%s1644 + $0x28] sm:$0xff]
    %v1651 = vld [vmem:[%s1644 + $0x30] sm:$0xff]
    %v1652 = vld [vmem:[%s1644 + $0x38] sm:$0xff]
    %v1653 = vld [vmem:[%s1644 + $0x40] sm:$0xff]
    %v1654 = vld [vmem:[%s1644 + $0x48] sm:$0xff]
    %v1655 = vld [vmem:[%s1644 + $0x50] sm:$0xff]
    %v1656 = vld [vmem:[%s1644 + $0x58] sm:$0xff]
    %v1657 = vld [vmem:[%s1644 + $0x60] sm:$0xff]
    %v1658 = vld [vmem:[%s1644 + $0x68] sm:$0xff]
    %v1659 = vld [vmem:[%s1644 + $0x70] sm:$0xff]
    %v1660 = vld [vmem:[%s1644 + $0x78] sm:$0xff]
    %1662 = vset.pattern.permute.xlu0 0
    %1663 = vperm.xlu0 %1662, %v1645
    %v1664 = vpop.permute.xlu0 %1663
    %1667 = vset.pattern.permute.xlu0 0
    %1668 = vperm.xlu0 %1667, %v1646
    %v1669 = vpop.permute.xlu0 %1668
    %1672 = vset.pattern.permute.xlu0 0
    %1673 = vperm.xlu0 %1672, %v1647
    %v1674 = vpop.permute.xlu0 %1673
    %1677 = vset.pattern.permute.xlu0 0
    %1678 = vperm.xlu0 %1677, %v1648
    %v1679 = vpop.permute.xlu0 %1678
    %1682 = vset.pattern.permute.xlu0 0
    %1683 = vperm.xlu0 %1682, %v1649
    %v1684 = vpop.permute.xlu0 %1683
    %1687 = vset.pattern.permute.xlu0 0
    %1688 = vperm.xlu0 %1687, %v1650
    %v1689 = vpop.permute.xlu0 %1688
    %1692 = vset.pattern.permute.xlu0 0
    %1693 = vperm.xlu0 %1692, %v1651
    %v1694 = vpop.permute.xlu0 %1693
    %1697 = vset.pattern.permute.xlu0 0
    %1698 = vperm.xlu0 %1697, %v1652
    %v1699 = vpop.permute.xlu0 %1698
    %1702 = vset.pattern.permute.xlu0 0
    %1703 = vperm.xlu0 %1702, %v1653
    %v1704 = vpop.permute.xlu0 %1703
    %1707 = vset.pattern.permute.xlu0 0
    %1708 = vperm.xlu0 %1707, %v1654
    %v1709 = vpop.permute.xlu0 %1708
    %1712 = vset.pattern.permute.xlu0 0
    %1713 = vperm.xlu0 %1712, %v1655
    %v1714 = vpop.permute.xlu0 %1713
    %1717 = vset.pattern.permute.xlu0 0
    %1718 = vperm.xlu0 %1717, %v1656
    %v1719 = vpop.permute.xlu0 %1718
    %1722 = vset.pattern.permute.xlu0 0
    %1723 = vperm.xlu0 %1722, %v1657
    %v1724 = vpop.permute.xlu0 %1723
    %1727 = vset.pattern.permute.xlu0 0
    %1728 = vperm.xlu0 %1727, %v1658
    %v1729 = vpop.permute.xlu0 %1728
    %1732 = vset.pattern.permute.xlu0 0
    %1733 = vperm.xlu0 %1732, %v1659
    %v1734 = vpop.permute.xlu0 %1733
    %1737 = vset.pattern.permute.xlu0 0
    %1738 = vperm.xlu0 %1737, %v1660
    %v1739 = vpop.permute.xlu0 %1738
    %v1741 = vmul.f32 %v1628, %v1664
    %v1742 = vmul.f32 %v1629, %v1669
    %v1743 = vmul.f32 %v1630, %v1674
    %v1744 = vmul.f32 %v1631, %v1679
    %v1745 = vmul.f32 %v1632, %v1684
    %v1746 = vmul.f32 %v1633, %v1689
    %v1747 = vmul.f32 %v1634, %v1694
    %v1748 = vmul.f32 %v1635, %v1699
    %v1749 = vmul.f32 %v1636, %v1704
    %v1750 = vmul.f32 %v1637, %v1709
    %v1751 = vmul.f32 %v1638, %v1714
    %v1752 = vmul.f32 %v1639, %v1719
    %v1753 = vmul.f32 %v1640, %v1724
    %v1754 = vmul.f32 %v1641, %v1729
    %v1755 = vmul.f32 %v1642, %v1734
    %v1756 = vmul.f32 %v1643, %v1739
    %v1757 = vpack.c.bf16 %v1742, %v1741
    %v1758 = vpack.c.bf16 %v1744, %v1743
    %v1759 = vpack.c.bf16 %v1746, %v1745
    %v1760 = vpack.c.bf16 %v1748, %v1747
    %v1761 = vpack.c.bf16 %v1750, %v1749
    %v1762 = vpack.c.bf16 %v1752, %v1751
    %v1763 = vpack.c.bf16 %v1754, %v1753
    %v1764 = vpack.c.bf16 %v1756, %v1755
    %s1765 = scalar_lea.vmem %s4, 48
    %v1766 = vld [vmem:[%s1765] sm:$0xf]
    %v1767 = vld [vmem:[%s1765 + $0x4] sm:$0xf]
    %v1768 = vld [vmem:[%s1765 + $0x8] sm:$0xf]
    %v1769 = vld [vmem:[%s1765 + $0xc] sm:$0xf]
    %v1774 = vunpack.c.l.b16 %v1766
    %v1775 = vunpack.c.l.b16 %v1767
    %v1776 = vunpack.c.l.b16 %v1768
    %v1777 = vunpack.c.l.b16 %v1769
    %v1778 = vpack.c.b16 %v1775, %v1774
    %v1779 = vpack.c.b16 %v1777, %v1776
    %v1783 = vsel %vm726, %v1757, 0
    %v1786 = vsel %vm726, %v1758, 0
    %v1789 = vsel %vm726, %v1759, 0
    %v1792 = vsel %vm726, %v1760, 0
    %v1795 = vsel %vm726, %v1761, 0
    %v1798 = vsel %vm726, %v1762, 0
    %v1801 = vsel %vm726, %v1763, 0
    %v1804 = vsel %vm726, %v1764, 0
    %1806 = vmatprep.subr.bf16.mxu0 0
    %1807 = vmatpush1.bf16.msra.mxu0 0
    %1808 = vmatprep.subr.bf16.mxu0 0
    %1809 = vmatpush1.bf16.msra.mxu0 0
    %1810 = vmatprep.subr.bf16.mxu0 0
    %1811 = vmatpush1.bf16.msra.mxu0 0
    %1812 = vmatprep.subr.bf16.mxu0 0
    %1813 = vmatpush1.bf16.msra.mxu0 0
    %1814 = vmatprep.subr.bf16.mxu0 0
    %1815 = vmatpush1.bf16.msra.mxu0 0
    %1816 = vmatprep.subr.bf16.mxu0 0
    %1817 = vmatpush1.bf16.msra.mxu0 0
    %1818 = vmatprep.subr.bf16.mxu0 0
    %1819 = vmatpush1.bf16.msra.mxu0 %v1779
    %1820 = vmatprep.subr.bf16.mxu0 0
    %1821 = vmatpush1.bf16.msra.mxu0 %v1778
    %1822 = vmatprep.subr.bf16.mxu0 0
    %1823 = vmatpush2.bf16.msra.mxu0 0
    %1824 = vmatprep.subr.bf16.mxu0 0
    %1825 = vmatpush2.bf16.msra.mxu0 0
    %1826 = vmatprep.subr.bf16.mxu0 0
    %1827 = vmatpush2.bf16.msra.mxu0 0
    %1828 = vmatprep.subr.bf16.mxu0 0
    %1829 = vmatpush2.bf16.msra.mxu0 0
    %1830 = vmatprep.subr.bf16.mxu0 0
    %1831 = vmatpush2.bf16.msra.mxu0 0
    %1832 = vmatprep.subr.bf16.mxu0 0
    %1833 = vmatpush2.bf16.msra.mxu0 0
    %1834 = vmatprep.subr.bf16.mxu0 0
    %1835 = vmatpush2.bf16.msra.mxu0 0
    %1836 = vmatprep.subr.bf16.mxu0 0
    %1837 = vmatpush2.bf16.msra.mxu0 0
    %1838 = vmatprep.mubr.bf16.mxu0 0
    %1839 = vmatmul.mubr.bf16.gmra.mxu0 %v1783
    %v1840 = vpop.f32.mrf.mxu0
    %v1841 = vadd.f32 0.0, %v1840
    %v1842 = vpop.f32.mrf.mxu0
    %v1843 = vpop.f32.mrf.mxu0
    %v1844 = vadd.f32 0.0, %v1843
    %v1845 = vpop.f32.mrf.mxu0
    %1846 = vmatprep.mubr.bf16.mxu0 0
    %1847 = vmatmul.mubr.bf16.gmra.mxu0 %v1786
    %v1848 = vpop.f32.mrf.mxu0
    %v1849 = vadd.f32 0.0, %v1848
    %v1850 = vpop.f32.mrf.mxu0
    %v1851 = vpop.f32.mrf.mxu0
    %v1852 = vadd.f32 0.0, %v1851
    %v1853 = vpop.f32.mrf.mxu0
    %1854 = vmatprep.mubr.bf16.mxu0 0
    %1855 = vmatmul.mubr.bf16.gmra.mxu0 %v1789
    %v1856 = vpop.f32.mrf.mxu0
    %v1857 = vadd.f32 0.0, %v1856
    %v1858 = vpop.f32.mrf.mxu0
    %v1859 = vpop.f32.mrf.mxu0
    %v1860 = vadd.f32 0.0, %v1859
    %v1861 = vpop.f32.mrf.mxu0
    %1862 = vmatprep.mubr.bf16.mxu0 0
    %1863 = vmatmul.mubr.bf16.gmra.mxu0 %v1792
    %v1864 = vpop.f32.mrf.mxu0
    %v1865 = vadd.f32 0.0, %v1864
    %v1866 = vpop.f32.mrf.mxu0
    %v1867 = vpop.f32.mrf.mxu0
    %v1868 = vadd.f32 0.0, %v1867
    %v1869 = vpop.f32.mrf.mxu0
    %1870 = vmatprep.mubr.bf16.mxu0 0
    %1871 = vmatmul.mubr.bf16.gmra.mxu0 %v1795
    %v1872 = vpop.f32.mrf.mxu0
    %v1873 = vadd.f32 0.0, %v1872
    %v1874 = vpop.f32.mrf.mxu0
    %v1875 = vpop.f32.mrf.mxu0
    %v1876 = vadd.f32 0.0, %v1875
    %v1877 = vpop.f32.mrf.mxu0
    %1878 = vmatprep.mubr.bf16.mxu0 0
    %1879 = vmatmul.mubr.bf16.gmra.mxu0 %v1798
    %v1880 = vpop.f32.mrf.mxu0
    %v1881 = vadd.f32 0.0, %v1880
    %v1882 = vpop.f32.mrf.mxu0
    %v1883 = vpop.f32.mrf.mxu0
    %v1884 = vadd.f32 0.0, %v1883
    %v1885 = vpop.f32.mrf.mxu0
    %1886 = vmatprep.mubr.bf16.mxu0 0
    %1887 = vmatmul.mubr.bf16.gmra.mxu0 %v1801
    %v1888 = vpop.f32.mrf.mxu0
    %v1889 = vadd.f32 0.0, %v1888
    %v1890 = vpop.f32.mrf.mxu0
    %v1891 = vpop.f32.mrf.mxu0
    %v1892 = vadd.f32 0.0, %v1891
    %v1893 = vpop.f32.mrf.mxu0
    %1894 = vmatprep.mubr.bf16.mxu0 0
    %1895 = vmatmul.mubr.bf16.gmra.mxu0 %v1804
    %v1896 = vpop.f32.mrf.mxu0
    %v1897 = vadd.f32 0.0, %v1896
    %v1898 = vpop.f32.mrf.mxu0
    %v1899 = vpop.f32.mrf.mxu0
    %v1900 = vadd.f32 0.0, %v1899
    %v1901 = vpop.f32.mrf.mxu0
    %1902 = vdwg.mxu0
    %v1903 = vadd.f32 %v1434, %v1841
    %v1904 = vadd.f32 %v1435, %v1844
    %v1905 = vadd.f32 %v1436, %v1849
    %v1906 = vadd.f32 %v1437, %v1852
    %v1907 = vadd.f32 %v1438, %v1857
    %v1908 = vadd.f32 %v1439, %v1860
    %v1909 = vadd.f32 %v1440, %v1865
    %v1910 = vadd.f32 %v1441, %v1868
    %v1911 = vadd.f32 %v1442, %v1873
    %v1912 = vadd.f32 %v1443, %v1876
    %v1913 = vadd.f32 %v1444, %v1881
    %v1914 = vadd.f32 %v1445, %v1884
    %v1915 = vadd.f32 %v1446, %v1889
    %v1916 = vadd.f32 %v1447, %v1892
    %v1917 = vadd.f32 %v1448, %v1897
    %v1918 = vadd.f32 %v1449, %v1900
    %s1919 = scalar_lea.vmem %s0, 256
    %v1920 = vld [vmem:[%s1919] sm:$0xf]
    %v1921 = vld [vmem:[%s1919 + $0x4] sm:$0xf]
    %v1922 = vld [vmem:[%s1919 + $0x8] sm:$0xf]
    %v1923 = vld [vmem:[%s1919 + $0xc] sm:$0xf]
    %v1924 = vld [vmem:[%s1919 + $0x10] sm:$0xf]
    %v1925 = vld [vmem:[%s1919 + $0x14] sm:$0xf]
    %v1926 = vld [vmem:[%s1919 + $0x18] sm:$0xf]
    %v1927 = vld [vmem:[%s1919 + $0x1c] sm:$0xf]
    %v1928 = vld [vmem:[%s1919 + $0x20] sm:$0xf]
    %v1929 = vld [vmem:[%s1919 + $0x24] sm:$0xf]
    %v1930 = vld [vmem:[%s1919 + $0x28] sm:$0xf]
    %v1931 = vld [vmem:[%s1919 + $0x2c] sm:$0xf]
    %v1932 = vld [vmem:[%s1919 + $0x30] sm:$0xf]
    %v1933 = vld [vmem:[%s1919 + $0x34] sm:$0xf]
    %v1934 = vld [vmem:[%s1919 + $0x38] sm:$0xf]
    %v1935 = vld [vmem:[%s1919 + $0x3c] sm:$0xf]
    %v1952 = vunpack.c.l.b16 %v1920
    %v1953 = vunpack.c.l.b16 %v1921
    %v1954 = vunpack.c.l.b16 %v1922
    %v1955 = vunpack.c.l.b16 %v1923
    %v1956 = vunpack.c.l.b16 %v1924
    %v1957 = vunpack.c.l.b16 %v1925
    %v1958 = vunpack.c.l.b16 %v1926
    %v1959 = vunpack.c.l.b16 %v1927
    %v1960 = vunpack.c.l.b16 %v1928
    %v1961 = vunpack.c.l.b16 %v1929
    %v1962 = vunpack.c.l.b16 %v1930
    %v1963 = vunpack.c.l.b16 %v1931
    %v1964 = vunpack.c.l.b16 %v1932
    %v1965 = vunpack.c.l.b16 %v1933
    %v1966 = vunpack.c.l.b16 %v1934
    %v1967 = vunpack.c.l.b16 %v1935
    %v1968 = vpack.c.b16 %v1953, %v1952
    %v1969 = vpack.c.b16 %v1955, %v1954
    %v1970 = vpack.c.b16 %v1957, %v1956
    %v1971 = vpack.c.b16 %v1959, %v1958
    %v1972 = vpack.c.b16 %v1961, %v1960
    %v1973 = vpack.c.b16 %v1963, %v1962
    %v1974 = vpack.c.b16 %v1965, %v1964
    %v1975 = vpack.c.b16 %v1967, %v1966
    %v1977 = vsel %vm132, %v1968, 0
    %v1980 = vsel %vm132, %v1969, 0
    %v1983 = vsel %vm132, %v1970, 0
    %v1986 = vsel %vm132, %v1971, 0
    %v1989 = vsel %vm132, %v1972, 0
    %v1992 = vsel %vm132, %v1973, 0
    %v1995 = vsel %vm132, %v1974, 0
    %v1998 = vsel %vm132, %v1975, 0
    %2000 = vmatprep.subr.bf16.mxu0 0
    %2001 = vmatpush1.bf16.msra.mxu0 0
    %2002 = vmatprep.subr.bf16.mxu0 0
    %2003 = vmatpush1.bf16.msra.mxu0 0
    %2004 = vmatprep.subr.bf16.mxu0 0
    %2005 = vmatpush1.bf16.msra.mxu0 0
    %2006 = vmatprep.subr.bf16.mxu0 0
    %2007 = vmatpush1.bf16.msra.mxu0 0
    %2008 = vmatprep.subr.bf16.mxu0 0
    %2009 = vmatpush1.bf16.msra.mxu0 %v127
    %2010 = vmatprep.subr.bf16.mxu0 0
    %2011 = vmatpush1.bf16.msra.mxu0 %v126
    %2012 = vmatprep.subr.bf16.mxu0 0
    %2013 = vmatpush1.bf16.msra.mxu0 %v125
    %2014 = vmatprep.subr.bf16.mxu0 0
    %2015 = vmatpush1.bf16.msra.mxu0 %v124
    %2016 = vmatprep.subr.bf16.mxu0 0
    %2017 = vmatpush2.bf16.msra.mxu0 0
    %2018 = vmatprep.subr.bf16.mxu0 0
    %2019 = vmatpush2.bf16.msra.mxu0 0
    %2020 = vmatprep.subr.bf16.mxu0 0
    %2021 = vmatpush2.bf16.msra.mxu0 0
    %2022 = vmatprep.subr.bf16.mxu0 0
    %2023 = vmatpush2.bf16.msra.mxu0 0
    %2024 = vmatprep.subr.bf16.mxu0 0
    %2025 = vmatpush2.bf16.msra.mxu0 0
    %2026 = vmatprep.subr.bf16.mxu0 0
    %2027 = vmatpush2.bf16.msra.mxu0 0
    %2028 = vmatprep.subr.bf16.mxu0 0
    %2029 = vmatpush2.bf16.msra.mxu0 0
    %2030 = vmatprep.subr.bf16.mxu0 0
    %2031 = vmatpush2.bf16.msra.mxu0 0
    %2032 = vmatprep.mubr.bf16.mxu0 0
    %2033 = vmatmul.mubr.bf16.gmra.mxu0 %v1977
    %v2034 = vpop.f32.mrf.mxu0
    %v2035 = vadd.f32 %v66, %v2034
    %v2036 = vpop.f32.mrf.mxu0
    %v2037 = vpop.f32.mrf.mxu0
    %v2038 = vadd.f32 %v66, %v2037
    %v2039 = vpop.f32.mrf.mxu0
    %2040 = vmatprep.mubr.bf16.mxu0 0
    %2041 = vmatmul.mubr.bf16.gmra.mxu0 %v1980
    %v2042 = vpop.f32.mrf.mxu0
    %v2043 = vadd.f32 %v66, %v2042
    %v2044 = vpop.f32.mrf.mxu0
    %v2045 = vpop.f32.mrf.mxu0
    %v2046 = vadd.f32 %v66, %v2045
    %v2047 = vpop.f32.mrf.mxu0
    %2048 = vmatprep.mubr.bf16.mxu0 0
    %2049 = vmatmul.mubr.bf16.gmra.mxu0 %v1983
    %v2050 = vpop.f32.mrf.mxu0
    %v2051 = vadd.f32 %v66, %v2050
    %v2052 = vpop.f32.mrf.mxu0
    %v2053 = vpop.f32.mrf.mxu0
    %v2054 = vadd.f32 %v66, %v2053
    %v2055 = vpop.f32.mrf.mxu0
    %2056 = vmatprep.mubr.bf16.mxu0 0
    %2057 = vmatmul.mubr.bf16.gmra.mxu0 %v1986
    %v2058 = vpop.f32.mrf.mxu0
    %v2059 = vadd.f32 %v66, %v2058
    %v2060 = vpop.f32.mrf.mxu0
    %v2061 = vpop.f32.mrf.mxu0
    %v2062 = vadd.f32 %v66, %v2061
    %v2063 = vpop.f32.mrf.mxu0
    %2064 = vmatprep.mubr.bf16.mxu0 0
    %2065 = vmatmul.mubr.bf16.gmra.mxu0 %v1989
    %v2066 = vpop.f32.mrf.mxu0
    %v2067 = vadd.f32 %v66, %v2066
    %v2068 = vpop.f32.mrf.mxu0
    %v2069 = vpop.f32.mrf.mxu0
    %v2070 = vadd.f32 %v66, %v2069
    %v2071 = vpop.f32.mrf.mxu0
    %2072 = vmatprep.mubr.bf16.mxu0 0
    %2073 = vmatmul.mubr.bf16.gmra.mxu0 %v1992
    %v2074 = vpop.f32.mrf.mxu0
    %v2075 = vadd.f32 %v66, %v2074
    %v2076 = vpop.f32.mrf.mxu0
    %v2077 = vpop.f32.mrf.mxu0
    %v2078 = vadd.f32 %v66, %v2077
    %v2079 = vpop.f32.mrf.mxu0
    %2080 = vmatprep.mubr.bf16.mxu0 0
    %2081 = vmatmul.mubr.bf16.gmra.mxu0 %v1995
    %v2082 = vpop.f32.mrf.mxu0
    %v2083 = vadd.f32 %v66, %v2082
    %v2084 = vpop.f32.mrf.mxu0
    %v2085 = vpop.f32.mrf.mxu0
    %v2086 = vadd.f32 %v66, %v2085
    %v2087 = vpop.f32.mrf.mxu0
    %2088 = vmatprep.mubr.bf16.mxu0 0
    %2089 = vmatmul.mubr.bf16.gmra.mxu0 %v1998
    %v2090 = vpop.f32.mrf.mxu0
    %v2091 = vadd.f32 %v66, %v2090
    %v2092 = vpop.f32.mrf.mxu0
    %v2093 = vpop.f32.mrf.mxu0
    %v2094 = vadd.f32 %v66, %v2093
    %v2095 = vpop.f32.mrf.mxu0
    %2096 = vdwg.mxu0
    %v2097 = vmax.f32 %v2035, 0.0
    %v2098 = vmax.f32 %v2038, 0.0
    %v2099 = vmax.f32 %v2043, 0.0
    %v2100 = vmax.f32 %v2046, 0.0
    %v2101 = vmax.f32 %v2051, 0.0
    %v2102 = vmax.f32 %v2054, 0.0
    %v2103 = vmax.f32 %v2059, 0.0
    %v2104 = vmax.f32 %v2062, 0.0
    %v2105 = vmax.f32 %v2067, 0.0
    %v2106 = vmax.f32 %v2070, 0.0
    %v2107 = vmax.f32 %v2075, 0.0
    %v2108 = vmax.f32 %v2078, 0.0
    %v2109 = vmax.f32 %v2083, 0.0
    %v2110 = vmax.f32 %v2086, 0.0
    %v2111 = vmax.f32 %v2091, 0.0
    %v2112 = vmax.f32 %v2094, 0.0
    %s2113 = scalar_lea.vmem %s1, 512
    %v2114 = vld [vmem:[%s2113] sm:$0xff]
    %v2115 = vld [vmem:[%s2113 + $0x8] sm:$0xff]
    %v2116 = vld [vmem:[%s2113 + $0x10] sm:$0xff]
    %v2117 = vld [vmem:[%s2113 + $0x18] sm:$0xff]
    %v2118 = vld [vmem:[%s2113 + $0x20] sm:$0xff]
    %v2119 = vld [vmem:[%s2113 + $0x28] sm:$0xff]
    %v2120 = vld [vmem:[%s2113 + $0x30] sm:$0xff]
    %v2121 = vld [vmem:[%s2113 + $0x38] sm:$0xff]
    %v2122 = vld [vmem:[%s2113 + $0x40] sm:$0xff]
    %v2123 = vld [vmem:[%s2113 + $0x48] sm:$0xff]
    %v2124 = vld [vmem:[%s2113 + $0x50] sm:$0xff]
    %v2125 = vld [vmem:[%s2113 + $0x58] sm:$0xff]
    %v2126 = vld [vmem:[%s2113 + $0x60] sm:$0xff]
    %v2127 = vld [vmem:[%s2113 + $0x68] sm:$0xff]
    %v2128 = vld [vmem:[%s2113 + $0x70] sm:$0xff]
    %v2129 = vld [vmem:[%s2113 + $0x78] sm:$0xff]
    %2131 = vset.pattern.permute.xlu0 0
    %2132 = vperm.xlu0 %2131, %v2114
    %v2133 = vpop.permute.xlu0 %2132
    %2136 = vset.pattern.permute.xlu0 0
    %2137 = vperm.xlu0 %2136, %v2115
    %v2138 = vpop.permute.xlu0 %2137
    %2141 = vset.pattern.permute.xlu0 0
    %2142 = vperm.xlu0 %2141, %v2116
    %v2143 = vpop.permute.xlu0 %2142
    %2146 = vset.pattern.permute.xlu0 0
    %2147 = vperm.xlu0 %2146, %v2117
    %v2148 = vpop.permute.xlu0 %2147
    %2151 = vset.pattern.permute.xlu0 0
    %2152 = vperm.xlu0 %2151, %v2118
    %v2153 = vpop.permute.xlu0 %2152
    %2156 = vset.pattern.permute.xlu0 0
    %2157 = vperm.xlu0 %2156, %v2119
    %v2158 = vpop.permute.xlu0 %2157
    %2161 = vset.pattern.permute.xlu0 0
    %2162 = vperm.xlu0 %2161, %v2120
    %v2163 = vpop.permute.xlu0 %2162
    %2166 = vset.pattern.permute.xlu0 0
    %2167 = vperm.xlu0 %2166, %v2121
    %v2168 = vpop.permute.xlu0 %2167
    %2171 = vset.pattern.permute.xlu0 0
    %2172 = vperm.xlu0 %2171, %v2122
    %v2173 = vpop.permute.xlu0 %2172
    %2176 = vset.pattern.permute.xlu0 0
    %2177 = vperm.xlu0 %2176, %v2123
    %v2178 = vpop.permute.xlu0 %2177
    %2181 = vset.pattern.permute.xlu0 0
    %2182 = vperm.xlu0 %2181, %v2124
    %v2183 = vpop.permute.xlu0 %2182
    %2186 = vset.pattern.permute.xlu0 0
    %2187 = vperm.xlu0 %2186, %v2125
    %v2188 = vpop.permute.xlu0 %2187
    %2191 = vset.pattern.permute.xlu0 0
    %2192 = vperm.xlu0 %2191, %v2126
    %v2193 = vpop.permute.xlu0 %2192
    %2196 = vset.pattern.permute.xlu0 0
    %2197 = vperm.xlu0 %2196, %v2127
    %v2198 = vpop.permute.xlu0 %2197
    %2201 = vset.pattern.permute.xlu0 0
    %2202 = vperm.xlu0 %2201, %v2128
    %v2203 = vpop.permute.xlu0 %2202
    %2206 = vset.pattern.permute.xlu0 0
    %2207 = vperm.xlu0 %2206, %v2129
    %v2208 = vpop.permute.xlu0 %2207
    %v2210 = vmul.f32 %v2097, %v2133
    %v2211 = vmul.f32 %v2098, %v2138
    %v2212 = vmul.f32 %v2099, %v2143
    %v2213 = vmul.f32 %v2100, %v2148
    %v2214 = vmul.f32 %v2101, %v2153
    %v2215 = vmul.f32 %v2102, %v2158
    %v2216 = vmul.f32 %v2103, %v2163
    %v2217 = vmul.f32 %v2104, %v2168
    %v2218 = vmul.f32 %v2105, %v2173
    %v2219 = vmul.f32 %v2106, %v2178
    %v2220 = vmul.f32 %v2107, %v2183
    %v2221 = vmul.f32 %v2108, %v2188
    %v2222 = vmul.f32 %v2109, %v2193
    %v2223 = vmul.f32 %v2110, %v2198
    %v2224 = vmul.f32 %v2111, %v2203
    %v2225 = vmul.f32 %v2112, %v2208
    %v2226 = vpack.c.bf16 %v2211, %v2210
    %v2227 = vpack.c.bf16 %v2213, %v2212
    %v2228 = vpack.c.bf16 %v2215, %v2214
    %v2229 = vpack.c.bf16 %v2217, %v2216
    %v2230 = vpack.c.bf16 %v2219, %v2218
    %v2231 = vpack.c.bf16 %v2221, %v2220
    %v2232 = vpack.c.bf16 %v2223, %v2222
    %v2233 = vpack.c.bf16 %v2225, %v2224
    %s2234 = scalar_lea.vmem %s4, 64
    %v2235 = vld [vmem:[%s2234] sm:$0xf]
    %v2236 = vld [vmem:[%s2234 + $0x4] sm:$0xf]
    %v2237 = vld [vmem:[%s2234 + $0x8] sm:$0xf]
    %v2238 = vld [vmem:[%s2234 + $0xc] sm:$0xf]
    %v2243 = vunpack.c.l.b16 %v2235
    %v2244 = vunpack.c.l.b16 %v2236
    %v2245 = vunpack.c.l.b16 %v2237
    %v2246 = vunpack.c.l.b16 %v2238
    %v2247 = vpack.c.b16 %v2244, %v2243
    %v2248 = vpack.c.b16 %v2246, %v2245
    %v2252 = vsel %vm726, %v2226, 0
    %v2255 = vsel %vm726, %v2227, 0
    %v2258 = vsel %vm726, %v2228, 0
    %v2261 = vsel %vm726, %v2229, 0
    %v2264 = vsel %vm726, %v2230, 0
    %v2267 = vsel %vm726, %v2231, 0
    %v2270 = vsel %vm726, %v2232, 0
    %v2273 = vsel %vm726, %v2233, 0
    %2275 = vmatprep.subr.bf16.mxu0 0
    %2276 = vmatpush1.bf16.msra.mxu0 0
    %2277 = vmatprep.subr.bf16.mxu0 0
    %2278 = vmatpush1.bf16.msra.mxu0 0
    %2279 = vmatprep.subr.bf16.mxu0 0
    %2280 = vmatpush1.bf16.msra.mxu0 0
    %2281 = vmatprep.subr.bf16.mxu0 0
    %2282 = vmatpush1.bf16.msra.mxu0 0
    %2283 = vmatprep.subr.bf16.mxu0 0
    %2284 = vmatpush1.bf16.msra.mxu0 0
    %2285 = vmatprep.subr.bf16.mxu0 0
    %2286 = vmatpush1.bf16.msra.mxu0 0
    %2287 = vmatprep.subr.bf16.mxu0 0
    %2288 = vmatpush1.bf16.msra.mxu0 %v2248
    %2289 = vmatprep.subr.bf16.mxu0 0
    %2290 = vmatpush1.bf16.msra.mxu0 %v2247
    %2291 = vmatprep.subr.bf16.mxu0 0
    %2292 = vmatpush2.bf16.msra.mxu0 0
    %2293 = vmatprep.subr.bf16.mxu0 0
    %2294 = vmatpush2.bf16.msra.mxu0 0
    %2295 = vmatprep.subr.bf16.mxu0 0
    %2296 = vmatpush2.bf16.msra.mxu0 0
    %2297 = vmatprep.subr.bf16.mxu0 0
    %2298 = vmatpush2.bf16.msra.mxu0 0
    %2299 = vmatprep.subr.bf16.mxu0 0
    %2300 = vmatpush2.bf16.msra.mxu0 0
    %2301 = vmatprep.subr.bf16.mxu0 0
    %2302 = vmatpush2.bf16.msra.mxu0 0
    %2303 = vmatprep.subr.bf16.mxu0 0
    %2304 = vmatpush2.bf16.msra.mxu0 0
    %2305 = vmatprep.subr.bf16.mxu0 0
    %2306 = vmatpush2.bf16.msra.mxu0 0
    %2307 = vmatprep.mubr.bf16.mxu0 0
    %2308 = vmatmul.mubr.bf16.gmra.mxu0 %v2252
    %v2309 = vpop.f32.mrf.mxu0
    %v2310 = vadd.f32 0.0, %v2309
    %v2311 = vpop.f32.mrf.mxu0
    %v2312 = vpop.f32.mrf.mxu0
    %v2313 = vadd.f32 0.0, %v2312
    %v2314 = vpop.f32.mrf.mxu0
    %2315 = vmatprep.mubr.bf16.mxu0 0
    %2316 = vmatmul.mubr.bf16.gmra.mxu0 %v2255
    %v2317 = vpop.f32.mrf.mxu0
    %v2318 = vadd.f32 0.0, %v2317
    %v2319 = vpop.f32.mrf.mxu0
    %v2320 = vpop.f32.mrf.mxu0
    %v2321 = vadd.f32 0.0, %v2320
    %v2322 = vpop.f32.mrf.mxu0
    %2323 = vmatprep.mubr.bf16.mxu0 0
    %2324 = vmatmul.mubr.bf16.gmra.mxu0 %v2258
    %v2325 = vpop.f32.mrf.mxu0
    %v2326 = vadd.f32 0.0, %v2325
    %v2327 = vpop.f32.mrf.mxu0
    %v2328 = vpop.f32.mrf.mxu0
    %v2329 = vadd.f32 0.0, %v2328
    %v2330 = vpop.f32.mrf.mxu0
    %2331 = vmatprep.mubr.bf16.mxu0 0
    %2332 = vmatmul.mubr.bf16.gmra.mxu0 %v2261
    %v2333 = vpop.f32.mrf.mxu0
    %v2334 = vadd.f32 0.0, %v2333
    %v2335 = vpop.f32.mrf.mxu0
    %v2336 = vpop.f32.mrf.mxu0
    %v2337 = vadd.f32 0.0, %v2336
    %v2338 = vpop.f32.mrf.mxu0
    %2339 = vmatprep.mubr.bf16.mxu0 0
    %2340 = vmatmul.mubr.bf16.gmra.mxu0 %v2264
    %v2341 = vpop.f32.mrf.mxu0
    %v2342 = vadd.f32 0.0, %v2341
    %v2343 = vpop.f32.mrf.mxu0
    %v2344 = vpop.f32.mrf.mxu0
    %v2345 = vadd.f32 0.0, %v2344
    %v2346 = vpop.f32.mrf.mxu0
    %2347 = vmatprep.mubr.bf16.mxu0 0
    %2348 = vmatmul.mubr.bf16.gmra.mxu0 %v2267
    %v2349 = vpop.f32.mrf.mxu0
    %v2350 = vadd.f32 0.0, %v2349
    %v2351 = vpop.f32.mrf.mxu0
    %v2352 = vpop.f32.mrf.mxu0
    %v2353 = vadd.f32 0.0, %v2352
    %v2354 = vpop.f32.mrf.mxu0
    %2355 = vmatprep.mubr.bf16.mxu0 0
    %2356 = vmatmul.mubr.bf16.gmra.mxu0 %v2270
    %v2357 = vpop.f32.mrf.mxu0
    %v2358 = vadd.f32 0.0, %v2357
    %v2359 = vpop.f32.mrf.mxu0
    %v2360 = vpop.f32.mrf.mxu0
    %v2361 = vadd.f32 0.0, %v2360
    %v2362 = vpop.f32.mrf.mxu0
    %2363 = vmatprep.mubr.bf16.mxu0 0
    %2364 = vmatmul.mubr.bf16.gmra.mxu0 %v2273
    %v2365 = vpop.f32.mrf.mxu0
    %v2366 = vadd.f32 0.0, %v2365
    %v2367 = vpop.f32.mrf.mxu0
    %v2368 = vpop.f32.mrf.mxu0
    %v2369 = vadd.f32 0.0, %v2368
    %v2370 = vpop.f32.mrf.mxu0
    %2371 = vdwg.mxu0
    %v2372 = vadd.f32 %v1903, %v2310
    %v2373 = vadd.f32 %v1904, %v2313
    %v2374 = vadd.f32 %v1905, %v2318
    %v2375 = vadd.f32 %v1906, %v2321
    %v2376 = vadd.f32 %v1907, %v2326
    %v2377 = vadd.f32 %v1908, %v2329
    %v2378 = vadd.f32 %v1909, %v2334
    %v2379 = vadd.f32 %v1910, %v2337
    %v2380 = vadd.f32 %v1911, %v2342
    %v2381 = vadd.f32 %v1912, %v2345
    %v2382 = vadd.f32 %v1913, %v2350
    %v2383 = vadd.f32 %v1914, %v2353
    %v2384 = vadd.f32 %v1915, %v2358
    %v2385 = vadd.f32 %v1916, %v2361
    %v2386 = vadd.f32 %v1917, %v2366
    %v2387 = vadd.f32 %v1918, %v2369
    %s2388 = scalar_lea.vmem %s0, 320
    %v2389 = vld [vmem:[%s2388] sm:$0xf]
    %v2390 = vld [vmem:[%s2388 + $0x4] sm:$0xf]
    %v2391 = vld [vmem:[%s2388 + $0x8] sm:$0xf]
    %v2392 = vld [vmem:[%s2388 + $0xc] sm:$0xf]
    %v2393 = vld [vmem:[%s2388 + $0x10] sm:$0xf]
    %v2394 = vld [vmem:[%s2388 + $0x14] sm:$0xf]
    %v2395 = vld [vmem:[%s2388 + $0x18] sm:$0xf]
    %v2396 = vld [vmem:[%s2388 + $0x1c] sm:$0xf]
    %v2397 = vld [vmem:[%s2388 + $0x20] sm:$0xf]
    %v2398 = vld [vmem:[%s2388 + $0x24] sm:$0xf]
    %v2399 = vld [vmem:[%s2388 + $0x28] sm:$0xf]
    %v2400 = vld [vmem:[%s2388 + $0x2c] sm:$0xf]
    %v2401 = vld [vmem:[%s2388 + $0x30] sm:$0xf]
    %v2402 = vld [vmem:[%s2388 + $0x34] sm:$0xf]
    %v2403 = vld [vmem:[%s2388 + $0x38] sm:$0xf]
    %v2404 = vld [vmem:[%s2388 + $0x3c] sm:$0xf]
    %v2421 = vunpack.c.l.b16 %v2389
    %v2422 = vunpack.c.l.b16 %v2390
    %v2423 = vunpack.c.l.b16 %v2391
    %v2424 = vunpack.c.l.b16 %v2392
    %v2425 = vunpack.c.l.b16 %v2393
    %v2426 = vunpack.c.l.b16 %v2394
    %v2427 = vunpack.c.l.b16 %v2395
    %v2428 = vunpack.c.l.b16 %v2396
    %v2429 = vunpack.c.l.b16 %v2397
    %v2430 = vunpack.c.l.b16 %v2398
    %v2431 = vunpack.c.l.b16 %v2399
    %v2432 = vunpack.c.l.b16 %v2400
    %v2433 = vunpack.c.l.b16 %v2401
    %v2434 = vunpack.c.l.b16 %v2402
    %v2435 = vunpack.c.l.b16 %v2403
    %v2436 = vunpack.c.l.b16 %v2404
    %v2437 = vpack.c.b16 %v2422, %v2421
    %v2438 = vpack.c.b16 %v2424, %v2423
    %v2439 = vpack.c.b16 %v2426, %v2425
    %v2440 = vpack.c.b16 %v2428, %v2427
    %v2441 = vpack.c.b16 %v2430, %v2429
    %v2442 = vpack.c.b16 %v2432, %v2431
    %v2443 = vpack.c.b16 %v2434, %v2433
    %v2444 = vpack.c.b16 %v2436, %v2435
    %v2446 = vsel %vm132, %v2437, 0
    %v2449 = vsel %vm132, %v2438, 0
    %v2452 = vsel %vm132, %v2439, 0
    %v2455 = vsel %vm132, %v2440, 0
    %v2458 = vsel %vm132, %v2441, 0
    %v2461 = vsel %vm132, %v2442, 0
    %v2464 = vsel %vm132, %v2443, 0
    %v2467 = vsel %vm132, %v2444, 0
    %2469 = vmatprep.subr.bf16.mxu0 0
    %2470 = vmatpush1.bf16.msra.mxu0 0
    %2471 = vmatprep.subr.bf16.mxu0 0
    %2472 = vmatpush1.bf16.msra.mxu0 0
    %2473 = vmatprep.subr.bf16.mxu0 0
    %2474 = vmatpush1.bf16.msra.mxu0 0
    %2475 = vmatprep.subr.bf16.mxu0 0
    %2476 = vmatpush1.bf16.msra.mxu0 0
    %2477 = vmatprep.subr.bf16.mxu0 0
    %2478 = vmatpush1.bf16.msra.mxu0 %v127
    %2479 = vmatprep.subr.bf16.mxu0 0
    %2480 = vmatpush1.bf16.msra.mxu0 %v126
    %2481 = vmatprep.subr.bf16.mxu0 0
    %2482 = vmatpush1.bf16.msra.mxu0 %v125
    %2483 = vmatprep.subr.bf16.mxu0 0
    %2484 = vmatpush1.bf16.msra.mxu0 %v124
    %2485 = vmatprep.subr.bf16.mxu0 0
    %2486 = vmatpush2.bf16.msra.mxu0 0
    %2487 = vmatprep.subr.bf16.mxu0 0
    %2488 = vmatpush2.bf16.msra.mxu0 0
    %2489 = vmatprep.subr.bf16.mxu0 0
    %2490 = vmatpush2.bf16.msra.mxu0 0
    %2491 = vmatprep.subr.bf16.mxu0 0
    %2492 = vmatpush2.bf16.msra.mxu0 0
    %2493 = vmatprep.subr.bf16.mxu0 0
    %2494 = vmatpush2.bf16.msra.mxu0 0
    %2495 = vmatprep.subr.bf16.mxu0 0
    %2496 = vmatpush2.bf16.msra.mxu0 0
    %2497 = vmatprep.subr.bf16.mxu0 0
    %2498 = vmatpush2.bf16.msra.mxu0 0
    %2499 = vmatprep.subr.bf16.mxu0 0
    %2500 = vmatpush2.bf16.msra.mxu0 0
    %2501 = vmatprep.mubr.bf16.mxu0 0
    %2502 = vmatmul.mubr.bf16.gmra.mxu0 %v2446
    %v2503 = vpop.f32.mrf.mxu0
    %v2504 = vadd.f32 %v66, %v2503
    %v2505 = vpop.f32.mrf.mxu0
    %v2506 = vpop.f32.mrf.mxu0
    %v2507 = vadd.f32 %v66, %v2506
    %v2508 = vpop.f32.mrf.mxu0
    %2509 = vmatprep.mubr.bf16.mxu0 0
    %2510 = vmatmul.mubr.bf16.gmra.mxu0 %v2449
    %v2511 = vpop.f32.mrf.mxu0
    %v2512 = vadd.f32 %v66, %v2511
    %v2513 = vpop.f32.mrf.mxu0
    %v2514 = vpop.f32.mrf.mxu0
    %v2515 = vadd.f32 %v66, %v2514
    %v2516 = vpop.f32.mrf.mxu0
    %2517 = vmatprep.mubr.bf16.mxu0 0
    %2518 = vmatmul.mubr.bf16.gmra.mxu0 %v2452
    %v2519 = vpop.f32.mrf.mxu0
    %v2520 = vadd.f32 %v66, %v2519
    %v2521 = vpop.f32.mrf.mxu0
    %v2522 = vpop.f32.mrf.mxu0
    %v2523 = vadd.f32 %v66, %v2522
    %v2524 = vpop.f32.mrf.mxu0
    %2525 = vmatprep.mubr.bf16.mxu0 0
    %2526 = vmatmul.mubr.bf16.gmra.mxu0 %v2455
    %v2527 = vpop.f32.mrf.mxu0
    %v2528 = vadd.f32 %v66, %v2527
    %v2529 = vpop.f32.mrf.mxu0
    %v2530 = vpop.f32.mrf.mxu0
    %v2531 = vadd.f32 %v66, %v2530
    %v2532 = vpop.f32.mrf.mxu0
    %2533 = vmatprep.mubr.bf16.mxu0 0
    %2534 = vmatmul.mubr.bf16.gmra.mxu0 %v2458
    %v2535 = vpop.f32.mrf.mxu0
    %v2536 = vadd.f32 %v66, %v2535
    %v2537 = vpop.f32.mrf.mxu0
    %v2538 = vpop.f32.mrf.mxu0
    %v2539 = vadd.f32 %v66, %v2538
    %v2540 = vpop.f32.mrf.mxu0
    %2541 = vmatprep.mubr.bf16.mxu0 0
    %2542 = vmatmul.mubr.bf16.gmra.mxu0 %v2461
    %v2543 = vpop.f32.mrf.mxu0
    %v2544 = vadd.f32 %v66, %v2543
    %v2545 = vpop.f32.mrf.mxu0
    %v2546 = vpop.f32.mrf.mxu0
    %v2547 = vadd.f32 %v66, %v2546
    %v2548 = vpop.f32.mrf.mxu0
    %2549 = vmatprep.mubr.bf16.mxu0 0
    %2550 = vmatmul.mubr.bf16.gmra.mxu0 %v2464
    %v2551 = vpop.f32.mrf.mxu0
    %v2552 = vadd.f32 %v66, %v2551
    %v2553 = vpop.f32.mrf.mxu0
    %v2554 = vpop.f32.mrf.mxu0
    %v2555 = vadd.f32 %v66, %v2554
    %v2556 = vpop.f32.mrf.mxu0
    %2557 = vmatprep.mubr.bf16.mxu0 0
    %2558 = vmatmul.mubr.bf16.gmra.mxu0 %v2467
    %v2559 = vpop.f32.mrf.mxu0
    %v2560 = vadd.f32 %v66, %v2559
    %v2561 = vpop.f32.mrf.mxu0
    %v2562 = vpop.f32.mrf.mxu0
    %v2563 = vadd.f32 %v66, %v2562
    %v2564 = vpop.f32.mrf.mxu0
    %2565 = vdwg.mxu0
    %v2566 = vmax.f32 %v2504, 0.0
    %v2567 = vmax.f32 %v2507, 0.0
    %v2568 = vmax.f32 %v2512, 0.0
    %v2569 = vmax.f32 %v2515, 0.0
    %v2570 = vmax.f32 %v2520, 0.0
    %v2571 = vmax.f32 %v2523, 0.0
    %v2572 = vmax.f32 %v2528, 0.0
    %v2573 = vmax.f32 %v2531, 0.0
    %v2574 = vmax.f32 %v2536, 0.0
    %v2575 = vmax.f32 %v2539, 0.0
    %v2576 = vmax.f32 %v2544, 0.0
    %v2577 = vmax.f32 %v2547, 0.0
    %v2578 = vmax.f32 %v2552, 0.0
    %v2579 = vmax.f32 %v2555, 0.0
    %v2580 = vmax.f32 %v2560, 0.0
    %v2581 = vmax.f32 %v2563, 0.0
    %s2582 = scalar_lea.vmem %s1, 640
    %v2583 = vld [vmem:[%s2582] sm:$0xff]
    %v2584 = vld [vmem:[%s2582 + $0x8] sm:$0xff]
    %v2585 = vld [vmem:[%s2582 + $0x10] sm:$0xff]
    %v2586 = vld [vmem:[%s2582 + $0x18] sm:$0xff]
    %v2587 = vld [vmem:[%s2582 + $0x20] sm:$0xff]
    %v2588 = vld [vmem:[%s2582 + $0x28] sm:$0xff]
    %v2589 = vld [vmem:[%s2582 + $0x30] sm:$0xff]
    %v2590 = vld [vmem:[%s2582 + $0x38] sm:$0xff]
    %v2591 = vld [vmem:[%s2582 + $0x40] sm:$0xff]
    %v2592 = vld [vmem:[%s2582 + $0x48] sm:$0xff]
    %v2593 = vld [vmem:[%s2582 + $0x50] sm:$0xff]
    %v2594 = vld [vmem:[%s2582 + $0x58] sm:$0xff]
    %v2595 = vld [vmem:[%s2582 + $0x60] sm:$0xff]
    %v2596 = vld [vmem:[%s2582 + $0x68] sm:$0xff]
    %v2597 = vld [vmem:[%s2582 + $0x70] sm:$0xff]
    %v2598 = vld [vmem:[%s2582 + $0x78] sm:$0xff]
    %2600 = vset.pattern.permute.xlu0 0
    %2601 = vperm.xlu0 %2600, %v2583
    %v2602 = vpop.permute.xlu0 %2601
    %2605 = vset.pattern.permute.xlu0 0
    %2606 = vperm.xlu0 %2605, %v2584
    %v2607 = vpop.permute.xlu0 %2606
    %2610 = vset.pattern.permute.xlu0 0
    %2611 = vperm.xlu0 %2610, %v2585
    %v2612 = vpop.permute.xlu0 %2611
    %2615 = vset.pattern.permute.xlu0 0
    %2616 = vperm.xlu0 %2615, %v2586
    %v2617 = vpop.permute.xlu0 %2616
    %2620 = vset.pattern.permute.xlu0 0
    %2621 = vperm.xlu0 %2620, %v2587
    %v2622 = vpop.permute.xlu0 %2621
    %2625 = vset.pattern.permute.xlu0 0
    %2626 = vperm.xlu0 %2625, %v2588
    %v2627 = vpop.permute.xlu0 %2626
    %2630 = vset.pattern.permute.xlu0 0
    %2631 = vperm.xlu0 %2630, %v2589
    %v2632 = vpop.permute.xlu0 %2631
    %2635 = vset.pattern.permute.xlu0 0
    %2636 = vperm.xlu0 %2635, %v2590
    %v2637 = vpop.permute.xlu0 %2636
    %2640 = vset.pattern.permute.xlu0 0
    %2641 = vperm.xlu0 %2640, %v2591
    %v2642 = vpop.permute.xlu0 %2641
    %2645 = vset.pattern.permute.xlu0 0
    %2646 = vperm.xlu0 %2645, %v2592
    %v2647 = vpop.permute.xlu0 %2646
    %2650 = vset.pattern.permute.xlu0 0
    %2651 = vperm.xlu0 %2650, %v2593
    %v2652 = vpop.permute.xlu0 %2651
    %2655 = vset.pattern.permute.xlu0 0
    %2656 = vperm.xlu0 %2655, %v2594
    %v2657 = vpop.permute.xlu0 %2656
    %2660 = vset.pattern.permute.xlu0 0
    %2661 = vperm.xlu0 %2660, %v2595
    %v2662 = vpop.permute.xlu0 %2661
    %2665 = vset.pattern.permute.xlu0 0
    %2666 = vperm.xlu0 %2665, %v2596
    %v2667 = vpop.permute.xlu0 %2666
    %2670 = vset.pattern.permute.xlu0 0
    %2671 = vperm.xlu0 %2670, %v2597
    %v2672 = vpop.permute.xlu0 %2671
    %2675 = vset.pattern.permute.xlu0 0
    %2676 = vperm.xlu0 %2675, %v2598
    %v2677 = vpop.permute.xlu0 %2676
    %v2679 = vmul.f32 %v2566, %v2602
    %v2680 = vmul.f32 %v2567, %v2607
    %v2681 = vmul.f32 %v2568, %v2612
    %v2682 = vmul.f32 %v2569, %v2617
    %v2683 = vmul.f32 %v2570, %v2622
    %v2684 = vmul.f32 %v2571, %v2627
    %v2685 = vmul.f32 %v2572, %v2632
    %v2686 = vmul.f32 %v2573, %v2637
    %v2687 = vmul.f32 %v2574, %v2642
    %v2688 = vmul.f32 %v2575, %v2647
    %v2689 = vmul.f32 %v2576, %v2652
    %v2690 = vmul.f32 %v2577, %v2657
    %v2691 = vmul.f32 %v2578, %v2662
    %v2692 = vmul.f32 %v2579, %v2667
    %v2693 = vmul.f32 %v2580, %v2672
    %v2694 = vmul.f32 %v2581, %v2677
    %v2695 = vpack.c.bf16 %v2680, %v2679
    %v2696 = vpack.c.bf16 %v2682, %v2681
    %v2697 = vpack.c.bf16 %v2684, %v2683
    %v2698 = vpack.c.bf16 %v2686, %v2685
    %v2699 = vpack.c.bf16 %v2688, %v2687
    %v2700 = vpack.c.bf16 %v2690, %v2689
    %v2701 = vpack.c.bf16 %v2692, %v2691
    %v2702 = vpack.c.bf16 %v2694, %v2693
    %s2703 = scalar_lea.vmem %s4, 80
    %v2704 = vld [vmem:[%s2703] sm:$0xf]
    %v2705 = vld [vmem:[%s2703 + $0x4] sm:$0xf]
    %v2706 = vld [vmem:[%s2703 + $0x8] sm:$0xf]
    %v2707 = vld [vmem:[%s2703 + $0xc] sm:$0xf]
    %v2712 = vunpack.c.l.b16 %v2704
    %v2713 = vunpack.c.l.b16 %v2705
    %v2714 = vunpack.c.l.b16 %v2706
    %v2715 = vunpack.c.l.b16 %v2707
    %v2716 = vpack.c.b16 %v2713, %v2712
    %v2717 = vpack.c.b16 %v2715, %v2714
    %v2721 = vsel %vm726, %v2695, 0
    %v2724 = vsel %vm726, %v2696, 0
    %v2727 = vsel %vm726, %v2697, 0
    %v2730 = vsel %vm726, %v2698, 0
    %v2733 = vsel %vm726, %v2699, 0
    %v2736 = vsel %vm726, %v2700, 0
    %v2739 = vsel %vm726, %v2701, 0
    %v2742 = vsel %vm726, %v2702, 0
    %2744 = vmatprep.subr.bf16.mxu0 0
    %2745 = vmatpush1.bf16.msra.mxu0 0
    %2746 = vmatprep.subr.bf16.mxu0 0
    %2747 = vmatpush1.bf16.msra.mxu0 0
    %2748 = vmatprep.subr.bf16.mxu0 0
    %2749 = vmatpush1.bf16.msra.mxu0 0
    %2750 = vmatprep.subr.bf16.mxu0 0
    %2751 = vmatpush1.bf16.msra.mxu0 0
    %2752 = vmatprep.subr.bf16.mxu0 0
    %2753 = vmatpush1.bf16.msra.mxu0 0
    %2754 = vmatprep.subr.bf16.mxu0 0
    %2755 = vmatpush1.bf16.msra.mxu0 0
    %2756 = vmatprep.subr.bf16.mxu0 0
    %2757 = vmatpush1.bf16.msra.mxu0 %v2717
    %2758 = vmatprep.subr.bf16.mxu0 0
    %2759 = vmatpush1.bf16.msra.mxu0 %v2716
    %2760 = vmatprep.subr.bf16.mxu0 0
    %2761 = vmatpush2.bf16.msra.mxu0 0
    %2762 = vmatprep.subr.bf16.mxu0 0
    %2763 = vmatpush2.bf16.msra.mxu0 0
    %2764 = vmatprep.subr.bf16.mxu0 0
    %2765 = vmatpush2.bf16.msra.mxu0 0
    %2766 = vmatprep.subr.bf16.mxu0 0
    %2767 = vmatpush2.bf16.msra.mxu0 0
    %2768 = vmatprep.subr.bf16.mxu0 0
    %2769 = vmatpush2.bf16.msra.mxu0 0
    %2770 = vmatprep.subr.bf16.mxu0 0
    %2771 = vmatpush2.bf16.msra.mxu0 0
    %2772 = vmatprep.subr.bf16.mxu0 0
    %2773 = vmatpush2.bf16.msra.mxu0 0
    %2774 = vmatprep.subr.bf16.mxu0 0
    %2775 = vmatpush2.bf16.msra.mxu0 0
    %2776 = vmatprep.mubr.bf16.mxu0 0
    %2777 = vmatmul.mubr.bf16.gmra.mxu0 %v2721
    %v2778 = vpop.f32.mrf.mxu0
    %v2779 = vadd.f32 0.0, %v2778
    %v2780 = vpop.f32.mrf.mxu0
    %v2781 = vpop.f32.mrf.mxu0
    %v2782 = vadd.f32 0.0, %v2781
    %v2783 = vpop.f32.mrf.mxu0
    %2784 = vmatprep.mubr.bf16.mxu0 0
    %2785 = vmatmul.mubr.bf16.gmra.mxu0 %v2724
    %v2786 = vpop.f32.mrf.mxu0
    %v2787 = vadd.f32 0.0, %v2786
    %v2788 = vpop.f32.mrf.mxu0
    %v2789 = vpop.f32.mrf.mxu0
    %v2790 = vadd.f32 0.0, %v2789
    %v2791 = vpop.f32.mrf.mxu0
    %2792 = vmatprep.mubr.bf16.mxu0 0
    %2793 = vmatmul.mubr.bf16.gmra.mxu0 %v2727
    %v2794 = vpop.f32.mrf.mxu0
    %v2795 = vadd.f32 0.0, %v2794
    %v2796 = vpop.f32.mrf.mxu0
    %v2797 = vpop.f32.mrf.mxu0
    %v2798 = vadd.f32 0.0, %v2797
    %v2799 = vpop.f32.mrf.mxu0
    %2800 = vmatprep.mubr.bf16.mxu0 0
    %2801 = vmatmul.mubr.bf16.gmra.mxu0 %v2730
    %v2802 = vpop.f32.mrf.mxu0
    %v2803 = vadd.f32 0.0, %v2802
    %v2804 = vpop.f32.mrf.mxu0
    %v2805 = vpop.f32.mrf.mxu0
    %v2806 = vadd.f32 0.0, %v2805
    %v2807 = vpop.f32.mrf.mxu0
    %2808 = vmatprep.mubr.bf16.mxu0 0
    %2809 = vmatmul.mubr.bf16.gmra.mxu0 %v2733
    %v2810 = vpop.f32.mrf.mxu0
    %v2811 = vadd.f32 0.0, %v2810
    %v2812 = vpop.f32.mrf.mxu0
    %v2813 = vpop.f32.mrf.mxu0
    %v2814 = vadd.f32 0.0, %v2813
    %v2815 = vpop.f32.mrf.mxu0
    %2816 = vmatprep.mubr.bf16.mxu0 0
    %2817 = vmatmul.mubr.bf16.gmra.mxu0 %v2736
    %v2818 = vpop.f32.mrf.mxu0
    %v2819 = vadd.f32 0.0, %v2818
    %v2820 = vpop.f32.mrf.mxu0
    %v2821 = vpop.f32.mrf.mxu0
    %v2822 = vadd.f32 0.0, %v2821
    %v2823 = vpop.f32.mrf.mxu0
    %2824 = vmatprep.mubr.bf16.mxu0 0
    %2825 = vmatmul.mubr.bf16.gmra.mxu0 %v2739
    %v2826 = vpop.f32.mrf.mxu0
    %v2827 = vadd.f32 0.0, %v2826
    %v2828 = vpop.f32.mrf.mxu0
    %v2829 = vpop.f32.mrf.mxu0
    %v2830 = vadd.f32 0.0, %v2829
    %v2831 = vpop.f32.mrf.mxu0
    %2832 = vmatprep.mubr.bf16.mxu0 0
    %2833 = vmatmul.mubr.bf16.gmra.mxu0 %v2742
    %v2834 = vpop.f32.mrf.mxu0
    %v2835 = vadd.f32 0.0, %v2834
    %v2836 = vpop.f32.mrf.mxu0
    %v2837 = vpop.f32.mrf.mxu0
    %v2838 = vadd.f32 0.0, %v2837
    %v2839 = vpop.f32.mrf.mxu0
    %2840 = vdwg.mxu0
    %v2841 = vadd.f32 %v2372, %v2779
    %v2842 = vadd.f32 %v2373, %v2782
    %v2843 = vadd.f32 %v2374, %v2787
    %v2844 = vadd.f32 %v2375, %v2790
    %v2845 = vadd.f32 %v2376, %v2795
    %v2846 = vadd.f32 %v2377, %v2798
    %v2847 = vadd.f32 %v2378, %v2803
    %v2848 = vadd.f32 %v2379, %v2806
    %v2849 = vadd.f32 %v2380, %v2811
    %v2850 = vadd.f32 %v2381, %v2814
    %v2851 = vadd.f32 %v2382, %v2819
    %v2852 = vadd.f32 %v2383, %v2822
    %v2853 = vadd.f32 %v2384, %v2827
    %v2854 = vadd.f32 %v2385, %v2830
    %v2855 = vadd.f32 %v2386, %v2835
    %v2856 = vadd.f32 %v2387, %v2838
    %s2857 = scalar_lea.vmem %s0, 384
    %v2858 = vld [vmem:[%s2857] sm:$0xf]
    %v2859 = vld [vmem:[%s2857 + $0x4] sm:$0xf]
    %v2860 = vld [vmem:[%s2857 + $0x8] sm:$0xf]
    %v2861 = vld [vmem:[%s2857 + $0xc] sm:$0xf]
    %v2862 = vld [vmem:[%s2857 + $0x10] sm:$0xf]
    %v2863 = vld [vmem:[%s2857 + $0x14] sm:$0xf]
    %v2864 = vld [vmem:[%s2857 + $0x18] sm:$0xf]
    %v2865 = vld [vmem:[%s2857 + $0x1c] sm:$0xf]
    %v2866 = vld [vmem:[%s2857 + $0x20] sm:$0xf]
    %v2867 = vld [vmem:[%s2857 + $0x24] sm:$0xf]
    %v2868 = vld [vmem:[%s2857 + $0x28] sm:$0xf]
    %v2869 = vld [vmem:[%s2857 + $0x2c] sm:$0xf]
    %v2870 = vld [vmem:[%s2857 + $0x30] sm:$0xf]
    %v2871 = vld [vmem:[%s2857 + $0x34] sm:$0xf]
    %v2872 = vld [vmem:[%s2857 + $0x38] sm:$0xf]
    %v2873 = vld [vmem:[%s2857 + $0x3c] sm:$0xf]
    %v2890 = vunpack.c.l.b16 %v2858
    %v2891 = vunpack.c.l.b16 %v2859
    %v2892 = vunpack.c.l.b16 %v2860
    %v2893 = vunpack.c.l.b16 %v2861
    %v2894 = vunpack.c.l.b16 %v2862
    %v2895 = vunpack.c.l.b16 %v2863
    %v2896 = vunpack.c.l.b16 %v2864
    %v2897 = vunpack.c.l.b16 %v2865
    %v2898 = vunpack.c.l.b16 %v2866
    %v2899 = vunpack.c.l.b16 %v2867
    %v2900 = vunpack.c.l.b16 %v2868
    %v2901 = vunpack.c.l.b16 %v2869
    %v2902 = vunpack.c.l.b16 %v2870
    %v2903 = vunpack.c.l.b16 %v2871
    %v2904 = vunpack.c.l.b16 %v2872
    %v2905 = vunpack.c.l.b16 %v2873
    %v2906 = vpack.c.b16 %v2891, %v2890
    %v2907 = vpack.c.b16 %v2893, %v2892
    %v2908 = vpack.c.b16 %v2895, %v2894
    %v2909 = vpack.c.b16 %v2897, %v2896
    %v2910 = vpack.c.b16 %v2899, %v2898
    %v2911 = vpack.c.b16 %v2901, %v2900
    %v2912 = vpack.c.b16 %v2903, %v2902
    %v2913 = vpack.c.b16 %v2905, %v2904
    %v2915 = vsel %vm132, %v2906, 0
    %v2918 = vsel %vm132, %v2907, 0
    %v2921 = vsel %vm132, %v2908, 0
    %v2924 = vsel %vm132, %v2909, 0
    %v2927 = vsel %vm132, %v2910, 0
    %v2930 = vsel %vm132, %v2911, 0
    %v2933 = vsel %vm132, %v2912, 0
    %v2936 = vsel %vm132, %v2913, 0
    %2938 = vmatprep.subr.bf16.mxu0 0
    %2939 = vmatpush1.bf16.msra.mxu0 0
    %2940 = vmatprep.subr.bf16.mxu0 0
    %2941 = vmatpush1.bf16.msra.mxu0 0
    %2942 = vmatprep.subr.bf16.mxu0 0
    %2943 = vmatpush1.bf16.msra.mxu0 0
    %2944 = vmatprep.subr.bf16.mxu0 0
    %2945 = vmatpush1.bf16.msra.mxu0 0
    %2946 = vmatprep.subr.bf16.mxu0 0
    %2947 = vmatpush1.bf16.msra.mxu0 %v127
    %2948 = vmatprep.subr.bf16.mxu0 0
    %2949 = vmatpush1.bf16.msra.mxu0 %v126
    %2950 = vmatprep.subr.bf16.mxu0 0
    %2951 = vmatpush1.bf16.msra.mxu0 %v125
    %2952 = vmatprep.subr.bf16.mxu0 0
    %2953 = vmatpush1.bf16.msra.mxu0 %v124
    %2954 = vmatprep.subr.bf16.mxu0 0
    %2955 = vmatpush2.bf16.msra.mxu0 0
    %2956 = vmatprep.subr.bf16.mxu0 0
    %2957 = vmatpush2.bf16.msra.mxu0 0
    %2958 = vmatprep.subr.bf16.mxu0 0
    %2959 = vmatpush2.bf16.msra.mxu0 0
    %2960 = vmatprep.subr.bf16.mxu0 0
    %2961 = vmatpush2.bf16.msra.mxu0 0
    %2962 = vmatprep.subr.bf16.mxu0 0
    %2963 = vmatpush2.bf16.msra.mxu0 0
    %2964 = vmatprep.subr.bf16.mxu0 0
    %2965 = vmatpush2.bf16.msra.mxu0 0
    %2966 = vmatprep.subr.bf16.mxu0 0
    %2967 = vmatpush2.bf16.msra.mxu0 0
    %2968 = vmatprep.subr.bf16.mxu0 0
    %2969 = vmatpush2.bf16.msra.mxu0 0
    %2970 = vmatprep.mubr.bf16.mxu0 0
    %2971 = vmatmul.mubr.bf16.gmra.mxu0 %v2915
    %v2972 = vpop.f32.mrf.mxu0
    %v2973 = vadd.f32 %v66, %v2972
    %v2974 = vpop.f32.mrf.mxu0
    %v2975 = vpop.f32.mrf.mxu0
    %v2976 = vadd.f32 %v66, %v2975
    %v2977 = vpop.f32.mrf.mxu0
    %2978 = vmatprep.mubr.bf16.mxu0 0
    %2979 = vmatmul.mubr.bf16.gmra.mxu0 %v2918
    %v2980 = vpop.f32.mrf.mxu0
    %v2981 = vadd.f32 %v66, %v2980
    %v2982 = vpop.f32.mrf.mxu0
    %v2983 = vpop.f32.mrf.mxu0
    %v2984 = vadd.f32 %v66, %v2983
    %v2985 = vpop.f32.mrf.mxu0
    %2986 = vmatprep.mubr.bf16.mxu0 0
    %2987 = vmatmul.mubr.bf16.gmra.mxu0 %v2921
    %v2988 = vpop.f32.mrf.mxu0
    %v2989 = vadd.f32 %v66, %v2988
    %v2990 = vpop.f32.mrf.mxu0
    %v2991 = vpop.f32.mrf.mxu0
    %v2992 = vadd.f32 %v66, %v2991
    %v2993 = vpop.f32.mrf.mxu0
    %2994 = vmatprep.mubr.bf16.mxu0 0
    %2995 = vmatmul.mubr.bf16.gmra.mxu0 %v2924
    %v2996 = vpop.f32.mrf.mxu0
    %v2997 = vadd.f32 %v66, %v2996
    %v2998 = vpop.f32.mrf.mxu0
    %v2999 = vpop.f32.mrf.mxu0
    %v3000 = vadd.f32 %v66, %v2999
    %v3001 = vpop.f32.mrf.mxu0
    %3002 = vmatprep.mubr.bf16.mxu0 0
    %3003 = vmatmul.mubr.bf16.gmra.mxu0 %v2927
    %v3004 = vpop.f32.mrf.mxu0
    %v3005 = vadd.f32 %v66, %v3004
    %v3006 = vpop.f32.mrf.mxu0
    %v3007 = vpop.f32.mrf.mxu0
    %v3008 = vadd.f32 %v66, %v3007
    %v3009 = vpop.f32.mrf.mxu0
    %3010 = vmatprep.mubr.bf16.mxu0 0
    %3011 = vmatmul.mubr.bf16.gmra.mxu0 %v2930
    %v3012 = vpop.f32.mrf.mxu0
    %v3013 = vadd.f32 %v66, %v3012
    %v3014 = vpop.f32.mrf.mxu0
    %v3015 = vpop.f32.mrf.mxu0
    %v3016 = vadd.f32 %v66, %v3015
    %v3017 = vpop.f32.mrf.mxu0
    %3018 = vmatprep.mubr.bf16.mxu0 0
    %3019 = vmatmul.mubr.bf16.gmra.mxu0 %v2933
    %v3020 = vpop.f32.mrf.mxu0
    %v3021 = vadd.f32 %v66, %v3020
    %v3022 = vpop.f32.mrf.mxu0
    %v3023 = vpop.f32.mrf.mxu0
    %v3024 = vadd.f32 %v66, %v3023
    %v3025 = vpop.f32.mrf.mxu0
    %3026 = vmatprep.mubr.bf16.mxu0 0
    %3027 = vmatmul.mubr.bf16.gmra.mxu0 %v2936
    %v3028 = vpop.f32.mrf.mxu0
    %v3029 = vadd.f32 %v66, %v3028
    %v3030 = vpop.f32.mrf.mxu0
    %v3031 = vpop.f32.mrf.mxu0
    %v3032 = vadd.f32 %v66, %v3031
    %v3033 = vpop.f32.mrf.mxu0
    %3034 = vdwg.mxu0
    %v3035 = vmax.f32 %v2973, 0.0
    %v3036 = vmax.f32 %v2976, 0.0
    %v3037 = vmax.f32 %v2981, 0.0
    %v3038 = vmax.f32 %v2984, 0.0
    %v3039 = vmax.f32 %v2989, 0.0
    %v3040 = vmax.f32 %v2992, 0.0
    %v3041 = vmax.f32 %v2997, 0.0
    %v3042 = vmax.f32 %v3000, 0.0
    %v3043 = vmax.f32 %v3005, 0.0
    %v3044 = vmax.f32 %v3008, 0.0
    %v3045 = vmax.f32 %v3013, 0.0
    %v3046 = vmax.f32 %v3016, 0.0
    %v3047 = vmax.f32 %v3021, 0.0
    %v3048 = vmax.f32 %v3024, 0.0
    %v3049 = vmax.f32 %v3029, 0.0
    %v3050 = vmax.f32 %v3032, 0.0
    %s3051 = scalar_lea.vmem %s1, 768
    %v3052 = vld [vmem:[%s3051] sm:$0xff]
    %v3053 = vld [vmem:[%s3051 + $0x8] sm:$0xff]
    %v3054 = vld [vmem:[%s3051 + $0x10] sm:$0xff]
    %v3055 = vld [vmem:[%s3051 + $0x18] sm:$0xff]
    %v3056 = vld [vmem:[%s3051 + $0x20] sm:$0xff]
    %v3057 = vld [vmem:[%s3051 + $0x28] sm:$0xff]
    %v3058 = vld [vmem:[%s3051 + $0x30] sm:$0xff]
    %v3059 = vld [vmem:[%s3051 + $0x38] sm:$0xff]
    %v3060 = vld [vmem:[%s3051 + $0x40] sm:$0xff]
    %v3061 = vld [vmem:[%s3051 + $0x48] sm:$0xff]
    %v3062 = vld [vmem:[%s3051 + $0x50] sm:$0xff]
    %v3063 = vld [vmem:[%s3051 + $0x58] sm:$0xff]
    %v3064 = vld [vmem:[%s3051 + $0x60] sm:$0xff]
    %v3065 = vld [vmem:[%s3051 + $0x68] sm:$0xff]
    %v3066 = vld [vmem:[%s3051 + $0x70] sm:$0xff]
    %v3067 = vld [vmem:[%s3051 + $0x78] sm:$0xff]
    %3069 = vset.pattern.permute.xlu0 0
    %3070 = vperm.xlu0 %3069, %v3052
    %v3071 = vpop.permute.xlu0 %3070
    %3074 = vset.pattern.permute.xlu0 0
    %3075 = vperm.xlu0 %3074, %v3053
    %v3076 = vpop.permute.xlu0 %3075
    %3079 = vset.pattern.permute.xlu0 0
    %3080 = vperm.xlu0 %3079, %v3054
    %v3081 = vpop.permute.xlu0 %3080
    %3084 = vset.pattern.permute.xlu0 0
    %3085 = vperm.xlu0 %3084, %v3055
    %v3086 = vpop.permute.xlu0 %3085
    %3089 = vset.pattern.permute.xlu0 0
    %3090 = vperm.xlu0 %3089, %v3056
    %v3091 = vpop.permute.xlu0 %3090
    %3094 = vset.pattern.permute.xlu0 0
    %3095 = vperm.xlu0 %3094, %v3057
    %v3096 = vpop.permute.xlu0 %3095
    %3099 = vset.pattern.permute.xlu0 0
    %3100 = vperm.xlu0 %3099, %v3058
    %v3101 = vpop.permute.xlu0 %3100
    %3104 = vset.pattern.permute.xlu0 0
    %3105 = vperm.xlu0 %3104, %v3059
    %v3106 = vpop.permute.xlu0 %3105
    %3109 = vset.pattern.permute.xlu0 0
    %3110 = vperm.xlu0 %3109, %v3060
    %v3111 = vpop.permute.xlu0 %3110
    %3114 = vset.pattern.permute.xlu0 0
    %3115 = vperm.xlu0 %3114, %v3061
    %v3116 = vpop.permute.xlu0 %3115
    %3119 = vset.pattern.permute.xlu0 0
    %3120 = vperm.xlu0 %3119, %v3062
    %v3121 = vpop.permute.xlu0 %3120
    %3124 = vset.pattern.permute.xlu0 0
    %3125 = vperm.xlu0 %3124, %v3063
    %v3126 = vpop.permute.xlu0 %3125
    %3129 = vset.pattern.permute.xlu0 0
    %3130 = vperm.xlu0 %3129, %v3064
    %v3131 = vpop.permute.xlu0 %3130
    %3134 = vset.pattern.permute.xlu0 0
    %3135 = vperm.xlu0 %3134, %v3065
    %v3136 = vpop.permute.xlu0 %3135
    %3139 = vset.pattern.permute.xlu0 0
    %3140 = vperm.xlu0 %3139, %v3066
    %v3141 = vpop.permute.xlu0 %3140
    %3144 = vset.pattern.permute.xlu0 0
    %3145 = vperm.xlu0 %3144, %v3067
    %v3146 = vpop.permute.xlu0 %3145
    %v3148 = vmul.f32 %v3035, %v3071
    %v3149 = vmul.f32 %v3036, %v3076
    %v3150 = vmul.f32 %v3037, %v3081
    %v3151 = vmul.f32 %v3038, %v3086
    %v3152 = vmul.f32 %v3039, %v3091
    %v3153 = vmul.f32 %v3040, %v3096
    %v3154 = vmul.f32 %v3041, %v3101
    %v3155 = vmul.f32 %v3042, %v3106
    %v3156 = vmul.f32 %v3043, %v3111
    %v3157 = vmul.f32 %v3044, %v3116
    %v3158 = vmul.f32 %v3045, %v3121
    %v3159 = vmul.f32 %v3046, %v3126
    %v3160 = vmul.f32 %v3047, %v3131
    %v3161 = vmul.f32 %v3048, %v3136
    %v3162 = vmul.f32 %v3049, %v3141
    %v3163 = vmul.f32 %v3050, %v3146
    %v3164 = vpack.c.bf16 %v3149, %v3148
    %v3165 = vpack.c.bf16 %v3151, %v3150
    %v3166 = vpack.c.bf16 %v3153, %v3152
    %v3167 = vpack.c.bf16 %v3155, %v3154
    %v3168 = vpack.c.bf16 %v3157, %v3156
    %v3169 = vpack.c.bf16 %v3159, %v3158
    %v3170 = vpack.c.bf16 %v3161, %v3160
    %v3171 = vpack.c.bf16 %v3163, %v3162
    %s3172 = scalar_lea.vmem %s4, 96
    %v3173 = vld [vmem:[%s3172] sm:$0xf]
    %v3174 = vld [vmem:[%s3172 + $0x4] sm:$0xf]
    %v3175 = vld [vmem:[%s3172 + $0x8] sm:$0xf]
    %v3176 = vld [vmem:[%s3172 + $0xc] sm:$0xf]
    %v3181 = vunpack.c.l.b16 %v3173
    %v3182 = vunpack.c.l.b16 %v3174
    %v3183 = vunpack.c.l.b16 %v3175
    %v3184 = vunpack.c.l.b16 %v3176
    %v3185 = vpack.c.b16 %v3182, %v3181
    %v3186 = vpack.c.b16 %v3184, %v3183
    %v3190 = vsel %vm726, %v3164, 0
    %v3193 = vsel %vm726, %v3165, 0
    %v3196 = vsel %vm726, %v3166, 0
    %v3199 = vsel %vm726, %v3167, 0
    %v3202 = vsel %vm726, %v3168, 0
    %v3205 = vsel %vm726, %v3169, 0
    %v3208 = vsel %vm726, %v3170, 0
    %v3211 = vsel %vm726, %v3171, 0
    %3213 = vmatprep.subr.bf16.mxu0 0
    %3214 = vmatpush1.bf16.msra.mxu0 0
    %3215 = vmatprep.subr.bf16.mxu0 0
    %3216 = vmatpush1.bf16.msra.mxu0 0
    %3217 = vmatprep.subr.bf16.mxu0 0
    %3218 = vmatpush1.bf16.msra.mxu0 0
    %3219 = vmatprep.subr.bf16.mxu0 0
    %3220 = vmatpush1.bf16.msra.mxu0 0
    %3221 = vmatprep.subr.bf16.mxu0 0
    %3222 = vmatpush1.bf16.msra.mxu0 0
    %3223 = vmatprep.subr.bf16.mxu0 0
    %3224 = vmatpush1.bf16.msra.mxu0 0
    %3225 = vmatprep.subr.bf16.mxu0 0
    %3226 = vmatpush1.bf16.msra.mxu0 %v3186
    %3227 = vmatprep.subr.bf16.mxu0 0
    %3228 = vmatpush1.bf16.msra.mxu0 %v3185
    %3229 = vmatprep.subr.bf16.mxu0 0
    %3230 = vmatpush2.bf16.msra.mxu0 0
    %3231 = vmatprep.subr.bf16.mxu0 0
    %3232 = vmatpush2.bf16.msra.mxu0 0
    %3233 = vmatprep.subr.bf16.mxu0 0
    %3234 = vmatpush2.bf16.msra.mxu0 0
    %3235 = vmatprep.subr.bf16.mxu0 0
    %3236 = vmatpush2.bf16.msra.mxu0 0
    %3237 = vmatprep.subr.bf16.mxu0 0
    %3238 = vmatpush2.bf16.msra.mxu0 0
    %3239 = vmatprep.subr.bf16.mxu0 0
    %3240 = vmatpush2.bf16.msra.mxu0 0
    %3241 = vmatprep.subr.bf16.mxu0 0
    %3242 = vmatpush2.bf16.msra.mxu0 0
    %3243 = vmatprep.subr.bf16.mxu0 0
    %3244 = vmatpush2.bf16.msra.mxu0 0
    %3245 = vmatprep.mubr.bf16.mxu0 0
    %3246 = vmatmul.mubr.bf16.gmra.mxu0 %v3190
    %v3247 = vpop.f32.mrf.mxu0
    %v3248 = vadd.f32 0.0, %v3247
    %v3249 = vpop.f32.mrf.mxu0
    %v3250 = vpop.f32.mrf.mxu0
    %v3251 = vadd.f32 0.0, %v3250
    %v3252 = vpop.f32.mrf.mxu0
    %3253 = vmatprep.mubr.bf16.mxu0 0
    %3254 = vmatmul.mubr.bf16.gmra.mxu0 %v3193
    %v3255 = vpop.f32.mrf.mxu0
    %v3256 = vadd.f32 0.0, %v3255
    %v3257 = vpop.f32.mrf.mxu0
    %v3258 = vpop.f32.mrf.mxu0
    %v3259 = vadd.f32 0.0, %v3258
    %v3260 = vpop.f32.mrf.mxu0
    %3261 = vmatprep.mubr.bf16.mxu0 0
    %3262 = vmatmul.mubr.bf16.gmra.mxu0 %v3196
    %v3263 = vpop.f32.mrf.mxu0
    %v3264 = vadd.f32 0.0, %v3263
    %v3265 = vpop.f32.mrf.mxu0
    %v3266 = vpop.f32.mrf.mxu0
    %v3267 = vadd.f32 0.0, %v3266
    %v3268 = vpop.f32.mrf.mxu0
    %3269 = vmatprep.mubr.bf16.mxu0 0
    %3270 = vmatmul.mubr.bf16.gmra.mxu0 %v3199
    %v3271 = vpop.f32.mrf.mxu0
    %v3272 = vadd.f32 0.0, %v3271
    %v3273 = vpop.f32.mrf.mxu0
    %v3274 = vpop.f32.mrf.mxu0
    %v3275 = vadd.f32 0.0, %v3274
    %v3276 = vpop.f32.mrf.mxu0
    %3277 = vmatprep.mubr.bf16.mxu0 0
    %3278 = vmatmul.mubr.bf16.gmra.mxu0 %v3202
    %v3279 = vpop.f32.mrf.mxu0
    %v3280 = vadd.f32 0.0, %v3279
    %v3281 = vpop.f32.mrf.mxu0
    %v3282 = vpop.f32.mrf.mxu0
    %v3283 = vadd.f32 0.0, %v3282
    %v3284 = vpop.f32.mrf.mxu0
    %3285 = vmatprep.mubr.bf16.mxu0 0
    %3286 = vmatmul.mubr.bf16.gmra.mxu0 %v3205
    %v3287 = vpop.f32.mrf.mxu0
    %v3288 = vadd.f32 0.0, %v3287
    %v3289 = vpop.f32.mrf.mxu0
    %v3290 = vpop.f32.mrf.mxu0
    %v3291 = vadd.f32 0.0, %v3290
    %v3292 = vpop.f32.mrf.mxu0
    %3293 = vmatprep.mubr.bf16.mxu0 0
    %3294 = vmatmul.mubr.bf16.gmra.mxu0 %v3208
    %v3295 = vpop.f32.mrf.mxu0
    %v3296 = vadd.f32 0.0, %v3295
    %v3297 = vpop.f32.mrf.mxu0
    %v3298 = vpop.f32.mrf.mxu0
    %v3299 = vadd.f32 0.0, %v3298
    %v3300 = vpop.f32.mrf.mxu0
    %3301 = vmatprep.mubr.bf16.mxu0 0
    %3302 = vmatmul.mubr.bf16.gmra.mxu0 %v3211
    %v3303 = vpop.f32.mrf.mxu0
    %v3304 = vadd.f32 0.0, %v3303
    %v3305 = vpop.f32.mrf.mxu0
    %v3306 = vpop.f32.mrf.mxu0
    %v3307 = vadd.f32 0.0, %v3306
    %v3308 = vpop.f32.mrf.mxu0
    %3309 = vdwg.mxu0
    %v3310 = vadd.f32 %v2841, %v3248
    %v3311 = vadd.f32 %v2842, %v3251
    %v3312 = vadd.f32 %v2843, %v3256
    %v3313 = vadd.f32 %v2844, %v3259
    %v3314 = vadd.f32 %v2845, %v3264
    %v3315 = vadd.f32 %v2846, %v3267
    %v3316 = vadd.f32 %v2847, %v3272
    %v3317 = vadd.f32 %v2848, %v3275
    %v3318 = vadd.f32 %v2849, %v3280
    %v3319 = vadd.f32 %v2850, %v3283
    %v3320 = vadd.f32 %v2851, %v3288
    %v3321 = vadd.f32 %v2852, %v3291
    %v3322 = vadd.f32 %v2853, %v3296
    %v3323 = vadd.f32 %v2854, %v3299
    %v3324 = vadd.f32 %v2855, %v3304
    %v3325 = vadd.f32 %v2856, %v3307
    %s3326 = scalar_lea.vmem %s0, 448
    %v3327 = vld [vmem:[%s3326] sm:$0xf]
    %v3328 = vld [vmem:[%s3326 + $0x4] sm:$0xf]
    %v3329 = vld [vmem:[%s3326 + $0x8] sm:$0xf]
    %v3330 = vld [vmem:[%s3326 + $0xc] sm:$0xf]
    %v3331 = vld [vmem:[%s3326 + $0x10] sm:$0xf]
    %v3332 = vld [vmem:[%s3326 + $0x14] sm:$0xf]
    %v3333 = vld [vmem:[%s3326 + $0x18] sm:$0xf]
    %v3334 = vld [vmem:[%s3326 + $0x1c] sm:$0xf]
    %v3335 = vld [vmem:[%s3326 + $0x20] sm:$0xf]
    %v3336 = vld [vmem:[%s3326 + $0x24] sm:$0xf]
    %v3337 = vld [vmem:[%s3326 + $0x28] sm:$0xf]
    %v3338 = vld [vmem:[%s3326 + $0x2c] sm:$0xf]
    %v3339 = vld [vmem:[%s3326 + $0x30] sm:$0xf]
    %v3340 = vld [vmem:[%s3326 + $0x34] sm:$0xf]
    %v3341 = vld [vmem:[%s3326 + $0x38] sm:$0xf]
    %v3342 = vld [vmem:[%s3326 + $0x3c] sm:$0xf]
    %v3359 = vunpack.c.l.b16 %v3327
    %v3360 = vunpack.c.l.b16 %v3328
    %v3361 = vunpack.c.l.b16 %v3329
    %v3362 = vunpack.c.l.b16 %v3330
    %v3363 = vunpack.c.l.b16 %v3331
    %v3364 = vunpack.c.l.b16 %v3332
    %v3365 = vunpack.c.l.b16 %v3333
    %v3366 = vunpack.c.l.b16 %v3334
    %v3367 = vunpack.c.l.b16 %v3335
    %v3368 = vunpack.c.l.b16 %v3336
    %v3369 = vunpack.c.l.b16 %v3337
    %v3370 = vunpack.c.l.b16 %v3338
    %v3371 = vunpack.c.l.b16 %v3339
    %v3372 = vunpack.c.l.b16 %v3340
    %v3373 = vunpack.c.l.b16 %v3341
    %v3374 = vunpack.c.l.b16 %v3342
    %v3375 = vpack.c.b16 %v3360, %v3359
    %v3376 = vpack.c.b16 %v3362, %v3361
    %v3377 = vpack.c.b16 %v3364, %v3363
    %v3378 = vpack.c.b16 %v3366, %v3365
    %v3379 = vpack.c.b16 %v3368, %v3367
    %v3380 = vpack.c.b16 %v3370, %v3369
    %v3381 = vpack.c.b16 %v3372, %v3371
    %v3382 = vpack.c.b16 %v3374, %v3373
    %v3384 = vsel %vm132, %v3375, 0
    %v3387 = vsel %vm132, %v3376, 0
    %v3390 = vsel %vm132, %v3377, 0
    %v3393 = vsel %vm132, %v3378, 0
    %v3396 = vsel %vm132, %v3379, 0
    %v3399 = vsel %vm132, %v3380, 0
    %v3402 = vsel %vm132, %v3381, 0
    %v3405 = vsel %vm132, %v3382, 0
    %3407 = vmatprep.subr.bf16.mxu0 0
    %3408 = vmatpush1.bf16.msra.mxu0 0
    %3409 = vmatprep.subr.bf16.mxu0 0
    %3410 = vmatpush1.bf16.msra.mxu0 0
    %3411 = vmatprep.subr.bf16.mxu0 0
    %3412 = vmatpush1.bf16.msra.mxu0 0
    %3413 = vmatprep.subr.bf16.mxu0 0
    %3414 = vmatpush1.bf16.msra.mxu0 0
    %3415 = vmatprep.subr.bf16.mxu0 0
    %3416 = vmatpush1.bf16.msra.mxu0 %v127
    %3417 = vmatprep.subr.bf16.mxu0 0
    %3418 = vmatpush1.bf16.msra.mxu0 %v126
    %3419 = vmatprep.subr.bf16.mxu0 0
    %3420 = vmatpush1.bf16.msra.mxu0 %v125
    %3421 = vmatprep.subr.bf16.mxu0 0
    %3422 = vmatpush1.bf16.msra.mxu0 %v124
    %3423 = vmatprep.subr.bf16.mxu0 0
    %3424 = vmatpush2.bf16.msra.mxu0 0
    %3425 = vmatprep.subr.bf16.mxu0 0
    %3426 = vmatpush2.bf16.msra.mxu0 0
    %3427 = vmatprep.subr.bf16.mxu0 0
    %3428 = vmatpush2.bf16.msra.mxu0 0
    %3429 = vmatprep.subr.bf16.mxu0 0
    %3430 = vmatpush2.bf16.msra.mxu0 0
    %3431 = vmatprep.subr.bf16.mxu0 0
    %3432 = vmatpush2.bf16.msra.mxu0 0
    %3433 = vmatprep.subr.bf16.mxu0 0
    %3434 = vmatpush2.bf16.msra.mxu0 0
    %3435 = vmatprep.subr.bf16.mxu0 0
    %3436 = vmatpush2.bf16.msra.mxu0 0
    %3437 = vmatprep.subr.bf16.mxu0 0
    %3438 = vmatpush2.bf16.msra.mxu0 0
    %3439 = vmatprep.mubr.bf16.mxu0 0
    %3440 = vmatmul.mubr.bf16.gmra.mxu0 %v3384
    %v3441 = vpop.f32.mrf.mxu0
    %v3442 = vadd.f32 %v66, %v3441
    %v3443 = vpop.f32.mrf.mxu0
    %v3444 = vpop.f32.mrf.mxu0
    %v3445 = vadd.f32 %v66, %v3444
    %v3446 = vpop.f32.mrf.mxu0
    %3447 = vmatprep.mubr.bf16.mxu0 0
    %3448 = vmatmul.mubr.bf16.gmra.mxu0 %v3387
    %v3449 = vpop.f32.mrf.mxu0
    %v3450 = vadd.f32 %v66, %v3449
    %v3451 = vpop.f32.mrf.mxu0
    %v3452 = vpop.f32.mrf.mxu0
    %v3453 = vadd.f32 %v66, %v3452
    %v3454 = vpop.f32.mrf.mxu0
    %3455 = vmatprep.mubr.bf16.mxu0 0
    %3456 = vmatmul.mubr.bf16.gmra.mxu0 %v3390
    %v3457 = vpop.f32.mrf.mxu0
    %v3458 = vadd.f32 %v66, %v3457
    %v3459 = vpop.f32.mrf.mxu0
    %v3460 = vpop.f32.mrf.mxu0
    %v3461 = vadd.f32 %v66, %v3460
    %v3462 = vpop.f32.mrf.mxu0
    %3463 = vmatprep.mubr.bf16.mxu0 0
    %3464 = vmatmul.mubr.bf16.gmra.mxu0 %v3393
    %v3465 = vpop.f32.mrf.mxu0
    %v3466 = vadd.f32 %v66, %v3465
    %v3467 = vpop.f32.mrf.mxu0
    %v3468 = vpop.f32.mrf.mxu0
    %v3469 = vadd.f32 %v66, %v3468
    %v3470 = vpop.f32.mrf.mxu0
    %3471 = vmatprep.mubr.bf16.mxu0 0
    %3472 = vmatmul.mubr.bf16.gmra.mxu0 %v3396
    %v3473 = vpop.f32.mrf.mxu0
    %v3474 = vadd.f32 %v66, %v3473
    %v3475 = vpop.f32.mrf.mxu0
    %v3476 = vpop.f32.mrf.mxu0
    %v3477 = vadd.f32 %v66, %v3476
    %v3478 = vpop.f32.mrf.mxu0
    %3479 = vmatprep.mubr.bf16.mxu0 0
    %3480 = vmatmul.mubr.bf16.gmra.mxu0 %v3399
    %v3481 = vpop.f32.mrf.mxu0
    %v3482 = vadd.f32 %v66, %v3481
    %v3483 = vpop.f32.mrf.mxu0
    %v3484 = vpop.f32.mrf.mxu0
    %v3485 = vadd.f32 %v66, %v3484
    %v3486 = vpop.f32.mrf.mxu0
    %3487 = vmatprep.mubr.bf16.mxu0 0
    %3488 = vmatmul.mubr.bf16.gmra.mxu0 %v3402
    %v3489 = vpop.f32.mrf.mxu0
    %v3490 = vadd.f32 %v66, %v3489
    %v3491 = vpop.f32.mrf.mxu0
    %v3492 = vpop.f32.mrf.mxu0
    %v3493 = vadd.f32 %v66, %v3492
    %v3494 = vpop.f32.mrf.mxu0
    %3495 = vmatprep.mubr.bf16.mxu0 0
    %3496 = vmatmul.mubr.bf16.gmra.mxu0 %v3405
    %v3497 = vpop.f32.mrf.mxu0
    %v3498 = vadd.f32 %v66, %v3497
    %v3499 = vpop.f32.mrf.mxu0
    %v3500 = vpop.f32.mrf.mxu0
    %v3501 = vadd.f32 %v66, %v3500
    %v3502 = vpop.f32.mrf.mxu0
    %3503 = vdwg.mxu0
    %v3504 = vmax.f32 %v3442, 0.0
    %v3505 = vmax.f32 %v3445, 0.0
    %v3506 = vmax.f32 %v3450, 0.0
    %v3507 = vmax.f32 %v3453, 0.0
    %v3508 = vmax.f32 %v3458, 0.0
    %v3509 = vmax.f32 %v3461, 0.0
    %v3510 = vmax.f32 %v3466, 0.0
    %v3511 = vmax.f32 %v3469, 0.0
    %v3512 = vmax.f32 %v3474, 0.0
    %v3513 = vmax.f32 %v3477, 0.0
    %v3514 = vmax.f32 %v3482, 0.0
    %v3515 = vmax.f32 %v3485, 0.0
    %v3516 = vmax.f32 %v3490, 0.0
    %v3517 = vmax.f32 %v3493, 0.0
    %v3518 = vmax.f32 %v3498, 0.0
    %v3519 = vmax.f32 %v3501, 0.0
    %s3520 = scalar_lea.vmem %s1, 896
    %v3521 = vld [vmem:[%s3520] sm:$0xff]
    %v3522 = vld [vmem:[%s3520 + $0x8] sm:$0xff]
    %v3523 = vld [vmem:[%s3520 + $0x10] sm:$0xff]
    %v3524 = vld [vmem:[%s3520 + $0x18] sm:$0xff]
    %v3525 = vld [vmem:[%s3520 + $0x20] sm:$0xff]
    %v3526 = vld [vmem:[%s3520 + $0x28] sm:$0xff]
    %v3527 = vld [vmem:[%s3520 + $0x30] sm:$0xff]
    %v3528 = vld [vmem:[%s3520 + $0x38] sm:$0xff]
    %v3529 = vld [vmem:[%s3520 + $0x40] sm:$0xff]
    %v3530 = vld [vmem:[%s3520 + $0x48] sm:$0xff]
    %v3531 = vld [vmem:[%s3520 + $0x50] sm:$0xff]
    %v3532 = vld [vmem:[%s3520 + $0x58] sm:$0xff]
    %v3533 = vld [vmem:[%s3520 + $0x60] sm:$0xff]
    %v3534 = vld [vmem:[%s3520 + $0x68] sm:$0xff]
    %v3535 = vld [vmem:[%s3520 + $0x70] sm:$0xff]
    %v3536 = vld [vmem:[%s3520 + $0x78] sm:$0xff]
    %3538 = vset.pattern.permute.xlu0 0
    %3539 = vperm.xlu0 %3538, %v3521
    %v3540 = vpop.permute.xlu0 %3539
    %3543 = vset.pattern.permute.xlu0 0
    %3544 = vperm.xlu0 %3543, %v3522
    %v3545 = vpop.permute.xlu0 %3544
    %3548 = vset.pattern.permute.xlu0 0
    %3549 = vperm.xlu0 %3548, %v3523
    %v3550 = vpop.permute.xlu0 %3549
    %3553 = vset.pattern.permute.xlu0 0
    %3554 = vperm.xlu0 %3553, %v3524
    %v3555 = vpop.permute.xlu0 %3554
    %3558 = vset.pattern.permute.xlu0 0
    %3559 = vperm.xlu0 %3558, %v3525
    %v3560 = vpop.permute.xlu0 %3559
    %3563 = vset.pattern.permute.xlu0 0
    %3564 = vperm.xlu0 %3563, %v3526
    %v3565 = vpop.permute.xlu0 %3564
    %3568 = vset.pattern.permute.xlu0 0
    %3569 = vperm.xlu0 %3568, %v3527
    %v3570 = vpop.permute.xlu0 %3569
    %3573 = vset.pattern.permute.xlu0 0
    %3574 = vperm.xlu0 %3573, %v3528
    %v3575 = vpop.permute.xlu0 %3574
    %3578 = vset.pattern.permute.xlu0 0
    %3579 = vperm.xlu0 %3578, %v3529
    %v3580 = vpop.permute.xlu0 %3579
    %3583 = vset.pattern.permute.xlu0 0
    %3584 = vperm.xlu0 %3583, %v3530
    %v3585 = vpop.permute.xlu0 %3584
    %3588 = vset.pattern.permute.xlu0 0
    %3589 = vperm.xlu0 %3588, %v3531
    %v3590 = vpop.permute.xlu0 %3589
    %3593 = vset.pattern.permute.xlu0 0
    %3594 = vperm.xlu0 %3593, %v3532
    %v3595 = vpop.permute.xlu0 %3594
    %3598 = vset.pattern.permute.xlu0 0
    %3599 = vperm.xlu0 %3598, %v3533
    %v3600 = vpop.permute.xlu0 %3599
    %3603 = vset.pattern.permute.xlu0 0
    %3604 = vperm.xlu0 %3603, %v3534
    %v3605 = vpop.permute.xlu0 %3604
    %3608 = vset.pattern.permute.xlu0 0
    %3609 = vperm.xlu0 %3608, %v3535
    %v3610 = vpop.permute.xlu0 %3609
    %3613 = vset.pattern.permute.xlu0 0
    %3614 = vperm.xlu0 %3613, %v3536
    %v3615 = vpop.permute.xlu0 %3614
    %v3617 = vmul.f32 %v3504, %v3540
    %v3618 = vmul.f32 %v3505, %v3545
    %v3619 = vmul.f32 %v3506, %v3550
    %v3620 = vmul.f32 %v3507, %v3555
    %v3621 = vmul.f32 %v3508, %v3560
    %v3622 = vmul.f32 %v3509, %v3565
    %v3623 = vmul.f32 %v3510, %v3570
    %v3624 = vmul.f32 %v3511, %v3575
    %v3625 = vmul.f32 %v3512, %v3580
    %v3626 = vmul.f32 %v3513, %v3585
    %v3627 = vmul.f32 %v3514, %v3590
    %v3628 = vmul.f32 %v3515, %v3595
    %v3629 = vmul.f32 %v3516, %v3600
    %v3630 = vmul.f32 %v3517, %v3605
    %v3631 = vmul.f32 %v3518, %v3610
    %v3632 = vmul.f32 %v3519, %v3615
    %v3633 = vpack.c.bf16 %v3618, %v3617
    %v3634 = vpack.c.bf16 %v3620, %v3619
    %v3635 = vpack.c.bf16 %v3622, %v3621
    %v3636 = vpack.c.bf16 %v3624, %v3623
    %v3637 = vpack.c.bf16 %v3626, %v3625
    %v3638 = vpack.c.bf16 %v3628, %v3627
    %v3639 = vpack.c.bf16 %v3630, %v3629
    %v3640 = vpack.c.bf16 %v3632, %v3631
    %s3641 = scalar_lea.vmem %s4, 112
    %v3642 = vld [vmem:[%s3641] sm:$0xf]
    %v3643 = vld [vmem:[%s3641 + $0x4] sm:$0xf]
    %v3644 = vld [vmem:[%s3641 + $0x8] sm:$0xf]
    %v3645 = vld [vmem:[%s3641 + $0xc] sm:$0xf]
    %v3650 = vunpack.c.l.b16 %v3642
    %v3651 = vunpack.c.l.b16 %v3643
    %v3652 = vunpack.c.l.b16 %v3644
    %v3653 = vunpack.c.l.b16 %v3645
    %v3654 = vpack.c.b16 %v3651, %v3650
    %v3655 = vpack.c.b16 %v3653, %v3652
    %v3659 = vsel %vm726, %v3633, 0
    %v3662 = vsel %vm726, %v3634, 0
    %v3665 = vsel %vm726, %v3635, 0
    %v3668 = vsel %vm726, %v3636, 0
    %v3671 = vsel %vm726, %v3637, 0
    %v3674 = vsel %vm726, %v3638, 0
    %v3677 = vsel %vm726, %v3639, 0
    %v3680 = vsel %vm726, %v3640, 0
    %3682 = vmatprep.subr.bf16.mxu0 0
    %3683 = vmatpush1.bf16.msra.mxu0 0
    %3684 = vmatprep.subr.bf16.mxu0 0
    %3685 = vmatpush1.bf16.msra.mxu0 0
    %3686 = vmatprep.subr.bf16.mxu0 0
    %3687 = vmatpush1.bf16.msra.mxu0 0
    %3688 = vmatprep.subr.bf16.mxu0 0
    %3689 = vmatpush1.bf16.msra.mxu0 0
    %3690 = vmatprep.subr.bf16.mxu0 0
    %3691 = vmatpush1.bf16.msra.mxu0 0
    %3692 = vmatprep.subr.bf16.mxu0 0
    %3693 = vmatpush1.bf16.msra.mxu0 0
    %3694 = vmatprep.subr.bf16.mxu0 0
    %3695 = vmatpush1.bf16.msra.mxu0 %v3655
    %3696 = vmatprep.subr.bf16.mxu0 0
    %3697 = vmatpush1.bf16.msra.mxu0 %v3654
    %3698 = vmatprep.subr.bf16.mxu0 0
    %3699 = vmatpush2.bf16.msra.mxu0 0
    %3700 = vmatprep.subr.bf16.mxu0 0
    %3701 = vmatpush2.bf16.msra.mxu0 0
    %3702 = vmatprep.subr.bf16.mxu0 0
    %3703 = vmatpush2.bf16.msra.mxu0 0
    %3704 = vmatprep.subr.bf16.mxu0 0
    %3705 = vmatpush2.bf16.msra.mxu0 0
    %3706 = vmatprep.subr.bf16.mxu0 0
    %3707 = vmatpush2.bf16.msra.mxu0 0
    %3708 = vmatprep.subr.bf16.mxu0 0
    %3709 = vmatpush2.bf16.msra.mxu0 0
    %3710 = vmatprep.subr.bf16.mxu0 0
    %3711 = vmatpush2.bf16.msra.mxu0 0
    %3712 = vmatprep.subr.bf16.mxu0 0
    %3713 = vmatpush2.bf16.msra.mxu0 0
    %3714 = vmatprep.mubr.bf16.mxu0 0
    %3715 = vmatmul.mubr.bf16.gmra.mxu0 %v3659
    %v3716 = vpop.f32.mrf.mxu0
    %v3717 = vadd.f32 0.0, %v3716
    %v3718 = vpop.f32.mrf.mxu0
    %v3719 = vpop.f32.mrf.mxu0
    %v3720 = vadd.f32 0.0, %v3719
    %v3721 = vpop.f32.mrf.mxu0
    %3722 = vmatprep.mubr.bf16.mxu0 0
    %3723 = vmatmul.mubr.bf16.gmra.mxu0 %v3662
    %v3724 = vpop.f32.mrf.mxu0
    %v3725 = vadd.f32 0.0, %v3724
    %v3726 = vpop.f32.mrf.mxu0
    %v3727 = vpop.f32.mrf.mxu0
    %v3728 = vadd.f32 0.0, %v3727
    %v3729 = vpop.f32.mrf.mxu0
    %3730 = vmatprep.mubr.bf16.mxu0 0
    %3731 = vmatmul.mubr.bf16.gmra.mxu0 %v3665
    %v3732 = vpop.f32.mrf.mxu0
    %v3733 = vadd.f32 0.0, %v3732
    %v3734 = vpop.f32.mrf.mxu0
    %v3735 = vpop.f32.mrf.mxu0
    %v3736 = vadd.f32 0.0, %v3735
    %v3737 = vpop.f32.mrf.mxu0
    %3738 = vmatprep.mubr.bf16.mxu0 0
    %3739 = vmatmul.mubr.bf16.gmra.mxu0 %v3668
    %v3740 = vpop.f32.mrf.mxu0
    %v3741 = vadd.f32 0.0, %v3740
    %v3742 = vpop.f32.mrf.mxu0
    %v3743 = vpop.f32.mrf.mxu0
    %v3744 = vadd.f32 0.0, %v3743
    %v3745 = vpop.f32.mrf.mxu0
    %3746 = vmatprep.mubr.bf16.mxu0 0
    %3747 = vmatmul.mubr.bf16.gmra.mxu0 %v3671
    %v3748 = vpop.f32.mrf.mxu0
    %v3749 = vadd.f32 0.0, %v3748
    %v3750 = vpop.f32.mrf.mxu0
    %v3751 = vpop.f32.mrf.mxu0
    %v3752 = vadd.f32 0.0, %v3751
    %v3753 = vpop.f32.mrf.mxu0
    %3754 = vmatprep.mubr.bf16.mxu0 0
    %3755 = vmatmul.mubr.bf16.gmra.mxu0 %v3674
    %v3756 = vpop.f32.mrf.mxu0
    %v3757 = vadd.f32 0.0, %v3756
    %v3758 = vpop.f32.mrf.mxu0
    %v3759 = vpop.f32.mrf.mxu0
    %v3760 = vadd.f32 0.0, %v3759
    %v3761 = vpop.f32.mrf.mxu0
    %3762 = vmatprep.mubr.bf16.mxu0 0
    %3763 = vmatmul.mubr.bf16.gmra.mxu0 %v3677
    %v3764 = vpop.f32.mrf.mxu0
    %v3765 = vadd.f32 0.0, %v3764
    %v3766 = vpop.f32.mrf.mxu0
    %v3767 = vpop.f32.mrf.mxu0
    %v3768 = vadd.f32 0.0, %v3767
    %v3769 = vpop.f32.mrf.mxu0
    %3770 = vmatprep.mubr.bf16.mxu0 0
    %3771 = vmatmul.mubr.bf16.gmra.mxu0 %v3680
    %v3772 = vpop.f32.mrf.mxu0
    %v3773 = vadd.f32 0.0, %v3772
    %v3774 = vpop.f32.mrf.mxu0
    %v3775 = vpop.f32.mrf.mxu0
    %v3776 = vadd.f32 0.0, %v3775
    %v3777 = vpop.f32.mrf.mxu0
    %3778 = vdwg.mxu0
    %v3779 = vadd.f32 %v3310, %v3717
    %v3780 = vadd.f32 %v3311, %v3720
    %v3781 = vadd.f32 %v3312, %v3725
    %v3782 = vadd.f32 %v3313, %v3728
    %v3783 = vadd.f32 %v3314, %v3733
    %v3784 = vadd.f32 %v3315, %v3736
    %v3785 = vadd.f32 %v3316, %v3741
    %v3786 = vadd.f32 %v3317, %v3744
    %v3787 = vadd.f32 %v3318, %v3749
    %v3788 = vadd.f32 %v3319, %v3752
    %v3789 = vadd.f32 %v3320, %v3757
    %v3790 = vadd.f32 %v3321, %v3760
    %v3791 = vadd.f32 %v3322, %v3765
    %v3792 = vadd.f32 %v3323, %v3768
    %v3793 = vadd.f32 %v3324, %v3773
    %v3794 = vadd.f32 %v3325, %v3776
    %s3795 = scalar_lea.vmem %s0, 512
    %v3796 = vld [vmem:[%s3795] sm:$0xf]
    %v3797 = vld [vmem:[%s3795 + $0x4] sm:$0xf]
    %v3798 = vld [vmem:[%s3795 + $0x8] sm:$0xf]
    %v3799 = vld [vmem:[%s3795 + $0xc] sm:$0xf]
    %v3800 = vld [vmem:[%s3795 + $0x10] sm:$0xf]
    %v3801 = vld [vmem:[%s3795 + $0x14] sm:$0xf]
    %v3802 = vld [vmem:[%s3795 + $0x18] sm:$0xf]
    %v3803 = vld [vmem:[%s3795 + $0x1c] sm:$0xf]
    %v3804 = vld [vmem:[%s3795 + $0x20] sm:$0xf]
    %v3805 = vld [vmem:[%s3795 + $0x24] sm:$0xf]
    %v3806 = vld [vmem:[%s3795 + $0x28] sm:$0xf]
    %v3807 = vld [vmem:[%s3795 + $0x2c] sm:$0xf]
    %v3808 = vld [vmem:[%s3795 + $0x30] sm:$0xf]
    %v3809 = vld [vmem:[%s3795 + $0x34] sm:$0xf]
    %v3810 = vld [vmem:[%s3795 + $0x38] sm:$0xf]
    %v3811 = vld [vmem:[%s3795 + $0x3c] sm:$0xf]
    %v3828 = vunpack.c.l.b16 %v3796
    %v3829 = vunpack.c.l.b16 %v3797
    %v3830 = vunpack.c.l.b16 %v3798
    %v3831 = vunpack.c.l.b16 %v3799
    %v3832 = vunpack.c.l.b16 %v3800
    %v3833 = vunpack.c.l.b16 %v3801
    %v3834 = vunpack.c.l.b16 %v3802
    %v3835 = vunpack.c.l.b16 %v3803
    %v3836 = vunpack.c.l.b16 %v3804
    %v3837 = vunpack.c.l.b16 %v3805
    %v3838 = vunpack.c.l.b16 %v3806
    %v3839 = vunpack.c.l.b16 %v3807
    %v3840 = vunpack.c.l.b16 %v3808
    %v3841 = vunpack.c.l.b16 %v3809
    %v3842 = vunpack.c.l.b16 %v3810
    %v3843 = vunpack.c.l.b16 %v3811
    %v3844 = vpack.c.b16 %v3829, %v3828
    %v3845 = vpack.c.b16 %v3831, %v3830
    %v3846 = vpack.c.b16 %v3833, %v3832
    %v3847 = vpack.c.b16 %v3835, %v3834
    %v3848 = vpack.c.b16 %v3837, %v3836
    %v3849 = vpack.c.b16 %v3839, %v3838
    %v3850 = vpack.c.b16 %v3841, %v3840
    %v3851 = vpack.c.b16 %v3843, %v3842
    %v3853 = vsel %vm132, %v3844, 0
    %v3856 = vsel %vm132, %v3845, 0
    %v3859 = vsel %vm132, %v3846, 0
    %v3862 = vsel %vm132, %v3847, 0
    %v3865 = vsel %vm132, %v3848, 0
    %v3868 = vsel %vm132, %v3849, 0
    %v3871 = vsel %vm132, %v3850, 0
    %v3874 = vsel %vm132, %v3851, 0
    %3876 = vmatprep.subr.bf16.mxu0 0
    %3877 = vmatpush1.bf16.msra.mxu0 0
    %3878 = vmatprep.subr.bf16.mxu0 0
    %3879 = vmatpush1.bf16.msra.mxu0 0
    %3880 = vmatprep.subr.bf16.mxu0 0
    %3881 = vmatpush1.bf16.msra.mxu0 0
    %3882 = vmatprep.subr.bf16.mxu0 0
    %3883 = vmatpush1.bf16.msra.mxu0 0
    %3884 = vmatprep.subr.bf16.mxu0 0
    %3885 = vmatpush1.bf16.msra.mxu0 %v127
    %3886 = vmatprep.subr.bf16.mxu0 0
    %3887 = vmatpush1.bf16.msra.mxu0 %v126
    %3888 = vmatprep.subr.bf16.mxu0 0
    %3889 = vmatpush1.bf16.msra.mxu0 %v125
    %3890 = vmatprep.subr.bf16.mxu0 0
    %3891 = vmatpush1.bf16.msra.mxu0 %v124
    %3892 = vmatprep.subr.bf16.mxu0 0
    %3893 = vmatpush2.bf16.msra.mxu0 0
    %3894 = vmatprep.subr.bf16.mxu0 0
    %3895 = vmatpush2.bf16.msra.mxu0 0
    %3896 = vmatprep.subr.bf16.mxu0 0
    %3897 = vmatpush2.bf16.msra.mxu0 0
    %3898 = vmatprep.subr.bf16.mxu0 0
    %3899 = vmatpush2.bf16.msra.mxu0 0
    %3900 = vmatprep.subr.bf16.mxu0 0
    %3901 = vmatpush2.bf16.msra.mxu0 0
    %3902 = vmatprep.subr.bf16.mxu0 0
    %3903 = vmatpush2.bf16.msra.mxu0 0
    %3904 = vmatprep.subr.bf16.mxu0 0
    %3905 = vmatpush2.bf16.msra.mxu0 0
    %3906 = vmatprep.subr.bf16.mxu0 0
    %3907 = vmatpush2.bf16.msra.mxu0 0
    %3908 = vmatprep.mubr.bf16.mxu0 0
    %3909 = vmatmul.mubr.bf16.gmra.mxu0 %v3853
    %v3910 = vpop.f32.mrf.mxu0
    %v3911 = vadd.f32 %v66, %v3910
    %v3912 = vpop.f32.mrf.mxu0
    %v3913 = vpop.f32.mrf.mxu0
    %v3914 = vadd.f32 %v66, %v3913
    %v3915 = vpop.f32.mrf.mxu0
    %3916 = vmatprep.mubr.bf16.mxu0 0
    %3917 = vmatmul.mubr.bf16.gmra.mxu0 %v3856
    %v3918 = vpop.f32.mrf.mxu0
    %v3919 = vadd.f32 %v66, %v3918
    %v3920 = vpop.f32.mrf.mxu0
    %v3921 = vpop.f32.mrf.mxu0
    %v3922 = vadd.f32 %v66, %v3921
    %v3923 = vpop.f32.mrf.mxu0
    %3924 = vmatprep.mubr.bf16.mxu0 0
    %3925 = vmatmul.mubr.bf16.gmra.mxu0 %v3859
    %v3926 = vpop.f32.mrf.mxu0
    %v3927 = vadd.f32 %v66, %v3926
    %v3928 = vpop.f32.mrf.mxu0
    %v3929 = vpop.f32.mrf.mxu0
    %v3930 = vadd.f32 %v66, %v3929
    %v3931 = vpop.f32.mrf.mxu0
    %3932 = vmatprep.mubr.bf16.mxu0 0
    %3933 = vmatmul.mubr.bf16.gmra.mxu0 %v3862
    %v3934 = vpop.f32.mrf.mxu0
    %v3935 = vadd.f32 %v66, %v3934
    %v3936 = vpop.f32.mrf.mxu0
    %v3937 = vpop.f32.mrf.mxu0
    %v3938 = vadd.f32 %v66, %v3937
    %v3939 = vpop.f32.mrf.mxu0
    %3940 = vmatprep.mubr.bf16.mxu0 0
    %3941 = vmatmul.mubr.bf16.gmra.mxu0 %v3865
    %v3942 = vpop.f32.mrf.mxu0
    %v3943 = vadd.f32 %v66, %v3942
    %v3944 = vpop.f32.mrf.mxu0
    %v3945 = vpop.f32.mrf.mxu0
    %v3946 = vadd.f32 %v66, %v3945
    %v3947 = vpop.f32.mrf.mxu0
    %3948 = vmatprep.mubr.bf16.mxu0 0
    %3949 = vmatmul.mubr.bf16.gmra.mxu0 %v3868
    %v3950 = vpop.f32.mrf.mxu0
    %v3951 = vadd.f32 %v66, %v3950
    %v3952 = vpop.f32.mrf.mxu0
    %v3953 = vpop.f32.mrf.mxu0
    %v3954 = vadd.f32 %v66, %v3953
    %v3955 = vpop.f32.mrf.mxu0
    %3956 = vmatprep.mubr.bf16.mxu0 0
    %3957 = vmatmul.mubr.bf16.gmra.mxu0 %v3871
    %v3958 = vpop.f32.mrf.mxu0
    %v3959 = vadd.f32 %v66, %v3958
    %v3960 = vpop.f32.mrf.mxu0
    %v3961 = vpop.f32.mrf.mxu0
    %v3962 = vadd.f32 %v66, %v3961
    %v3963 = vpop.f32.mrf.mxu0
    %3964 = vmatprep.mubr.bf16.mxu0 0
    %3965 = vmatmul.mubr.bf16.gmra.mxu0 %v3874
    %v3966 = vpop.f32.mrf.mxu0
    %v3967 = vadd.f32 %v66, %v3966
    %v3968 = vpop.f32.mrf.mxu0
    %v3969 = vpop.f32.mrf.mxu0
    %v3970 = vadd.f32 %v66, %v3969
    %v3971 = vpop.f32.mrf.mxu0
    %3972 = vdwg.mxu0
    %v3973 = vmax.f32 %v3911, 0.0
    %v3974 = vmax.f32 %v3914, 0.0
    %v3975 = vmax.f32 %v3919, 0.0
    %v3976 = vmax.f32 %v3922, 0.0
    %v3977 = vmax.f32 %v3927, 0.0
    %v3978 = vmax.f32 %v3930, 0.0
    %v3979 = vmax.f32 %v3935, 0.0
    %v3980 = vmax.f32 %v3938, 0.0
    %v3981 = vmax.f32 %v3943, 0.0
    %v3982 = vmax.f32 %v3946, 0.0
    %v3983 = vmax.f32 %v3951, 0.0
    %v3984 = vmax.f32 %v3954, 0.0
    %v3985 = vmax.f32 %v3959, 0.0
    %v3986 = vmax.f32 %v3962, 0.0
    %v3987 = vmax.f32 %v3967, 0.0
    %v3988 = vmax.f32 %v3970, 0.0
    %s3989 = scalar_lea.vmem %s1, 1024
    %v3990 = vld [vmem:[%s3989] sm:$0xff]
    %v3991 = vld [vmem:[%s3989 + $0x8] sm:$0xff]
    %v3992 = vld [vmem:[%s3989 + $0x10] sm:$0xff]
    %v3993 = vld [vmem:[%s3989 + $0x18] sm:$0xff]
    %v3994 = vld [vmem:[%s3989 + $0x20] sm:$0xff]
    %v3995 = vld [vmem:[%s3989 + $0x28] sm:$0xff]
    %v3996 = vld [vmem:[%s3989 + $0x30] sm:$0xff]
    %v3997 = vld [vmem:[%s3989 + $0x38] sm:$0xff]
    %v3998 = vld [vmem:[%s3989 + $0x40] sm:$0xff]
    %v3999 = vld [vmem:[%s3989 + $0x48] sm:$0xff]
    %v4000 = vld [vmem:[%s3989 + $0x50] sm:$0xff]
    %v4001 = vld [vmem:[%s3989 + $0x58] sm:$0xff]
    %v4002 = vld [vmem:[%s3989 + $0x60] sm:$0xff]
    %v4003 = vld [vmem:[%s3989 + $0x68] sm:$0xff]
    %v4004 = vld [vmem:[%s3989 + $0x70] sm:$0xff]
    %v4005 = vld [vmem:[%s3989 + $0x78] sm:$0xff]
    %4007 = vset.pattern.permute.xlu0 0
    %4008 = vperm.xlu0 %4007, %v3990
    %v4009 = vpop.permute.xlu0 %4008
    %4012 = vset.pattern.permute.xlu0 0
    %4013 = vperm.xlu0 %4012, %v3991
    %v4014 = vpop.permute.xlu0 %4013
    %4017 = vset.pattern.permute.xlu0 0
    %4018 = vperm.xlu0 %4017, %v3992
    %v4019 = vpop.permute.xlu0 %4018
    %4022 = vset.pattern.permute.xlu0 0
    %4023 = vperm.xlu0 %4022, %v3993
    %v4024 = vpop.permute.xlu0 %4023
    %4027 = vset.pattern.permute.xlu0 0
    %4028 = vperm.xlu0 %4027, %v3994
    %v4029 = vpop.permute.xlu0 %4028
    %4032 = vset.pattern.permute.xlu0 0
    %4033 = vperm.xlu0 %4032, %v3995
    %v4034 = vpop.permute.xlu0 %4033
    %4037 = vset.pattern.permute.xlu0 0
    %4038 = vperm.xlu0 %4037, %v3996
    %v4039 = vpop.permute.xlu0 %4038
    %4042 = vset.pattern.permute.xlu0 0
    %4043 = vperm.xlu0 %4042, %v3997
    %v4044 = vpop.permute.xlu0 %4043
    %4047 = vset.pattern.permute.xlu0 0
    %4048 = vperm.xlu0 %4047, %v3998
    %v4049 = vpop.permute.xlu0 %4048
    %4052 = vset.pattern.permute.xlu0 0
    %4053 = vperm.xlu0 %4052, %v3999
    %v4054 = vpop.permute.xlu0 %4053
    %4057 = vset.pattern.permute.xlu0 0
    %4058 = vperm.xlu0 %4057, %v4000
    %v4059 = vpop.permute.xlu0 %4058
    %4062 = vset.pattern.permute.xlu0 0
    %4063 = vperm.xlu0 %4062, %v4001
    %v4064 = vpop.permute.xlu0 %4063
    %4067 = vset.pattern.permute.xlu0 0
    %4068 = vperm.xlu0 %4067, %v4002
    %v4069 = vpop.permute.xlu0 %4068
    %4072 = vset.pattern.permute.xlu0 0
    %4073 = vperm.xlu0 %4072, %v4003
    %v4074 = vpop.permute.xlu0 %4073
    %4077 = vset.pattern.permute.xlu0 0
    %4078 = vperm.xlu0 %4077, %v4004
    %v4079 = vpop.permute.xlu0 %4078
    %4082 = vset.pattern.permute.xlu0 0
    %4083 = vperm.xlu0 %4082, %v4005
    %v4084 = vpop.permute.xlu0 %4083
    %v4086 = vmul.f32 %v3973, %v4009
    %v4087 = vmul.f32 %v3974, %v4014
    %v4088 = vmul.f32 %v3975, %v4019
    %v4089 = vmul.f32 %v3976, %v4024
    %v4090 = vmul.f32 %v3977, %v4029
    %v4091 = vmul.f32 %v3978, %v4034
    %v4092 = vmul.f32 %v3979, %v4039
    %v4093 = vmul.f32 %v3980, %v4044
    %v4094 = vmul.f32 %v3981, %v4049
    %v4095 = vmul.f32 %v3982, %v4054
    %v4096 = vmul.f32 %v3983, %v4059
    %v4097 = vmul.f32 %v3984, %v4064
    %v4098 = vmul.f32 %v3985, %v4069
    %v4099 = vmul.f32 %v3986, %v4074
    %v4100 = vmul.f32 %v3987, %v4079
    %v4101 = vmul.f32 %v3988, %v4084
    %v4102 = vpack.c.bf16 %v4087, %v4086
    %v4103 = vpack.c.bf16 %v4089, %v4088
    %v4104 = vpack.c.bf16 %v4091, %v4090
    %v4105 = vpack.c.bf16 %v4093, %v4092
    %v4106 = vpack.c.bf16 %v4095, %v4094
    %v4107 = vpack.c.bf16 %v4097, %v4096
    %v4108 = vpack.c.bf16 %v4099, %v4098
    %v4109 = vpack.c.bf16 %v4101, %v4100
    %s4110 = scalar_lea.vmem %s4, 128
    %v4111 = vld [vmem:[%s4110] sm:$0xf]
    %v4112 = vld [vmem:[%s4110 + $0x4] sm:$0xf]
    %v4113 = vld [vmem:[%s4110 + $0x8] sm:$0xf]
    %v4114 = vld [vmem:[%s4110 + $0xc] sm:$0xf]
    %v4119 = vunpack.c.l.b16 %v4111
    %v4120 = vunpack.c.l.b16 %v4112
    %v4121 = vunpack.c.l.b16 %v4113
    %v4122 = vunpack.c.l.b16 %v4114
    %v4123 = vpack.c.b16 %v4120, %v4119
    %v4124 = vpack.c.b16 %v4122, %v4121
    %v4128 = vsel %vm726, %v4102, 0
    %v4131 = vsel %vm726, %v4103, 0
    %v4134 = vsel %vm726, %v4104, 0
    %v4137 = vsel %vm726, %v4105, 0
    %v4140 = vsel %vm726, %v4106, 0
    %v4143 = vsel %vm726, %v4107, 0
    %v4146 = vsel %vm726, %v4108, 0
    %v4149 = vsel %vm726, %v4109, 0
    %4151 = vmatprep.subr.bf16.mxu0 0
    %4152 = vmatpush1.bf16.msra.mxu0 0
    %4153 = vmatprep.subr.bf16.mxu0 0
    %4154 = vmatpush1.bf16.msra.mxu0 0
    %4155 = vmatprep.subr.bf16.mxu0 0
    %4156 = vmatpush1.bf16.msra.mxu0 0
    %4157 = vmatprep.subr.bf16.mxu0 0
    %4158 = vmatpush1.bf16.msra.mxu0 0
    %4159 = vmatprep.subr.bf16.mxu0 0
    %4160 = vmatpush1.bf16.msra.mxu0 0
    %4161 = vmatprep.subr.bf16.mxu0 0
    %4162 = vmatpush1.bf16.msra.mxu0 0
    %4163 = vmatprep.subr.bf16.mxu0 0
    %4164 = vmatpush1.bf16.msra.mxu0 %v4124
    %4165 = vmatprep.subr.bf16.mxu0 0
    %4166 = vmatpush1.bf16.msra.mxu0 %v4123
    %4167 = vmatprep.subr.bf16.mxu0 0
    %4168 = vmatpush2.bf16.msra.mxu0 0
    %4169 = vmatprep.subr.bf16.mxu0 0
    %4170 = vmatpush2.bf16.msra.mxu0 0
    %4171 = vmatprep.subr.bf16.mxu0 0
    %4172 = vmatpush2.bf16.msra.mxu0 0
    %4173 = vmatprep.subr.bf16.mxu0 0
    %4174 = vmatpush2.bf16.msra.mxu0 0
    %4175 = vmatprep.subr.bf16.mxu0 0
    %4176 = vmatpush2.bf16.msra.mxu0 0
    %4177 = vmatprep.subr.bf16.mxu0 0
    %4178 = vmatpush2.bf16.msra.mxu0 0
    %4179 = vmatprep.subr.bf16.mxu0 0
    %4180 = vmatpush2.bf16.msra.mxu0 0
    %4181 = vmatprep.subr.bf16.mxu0 0
    %4182 = vmatpush2.bf16.msra.mxu0 0
    %4183 = vmatprep.mubr.bf16.mxu0 0
    %4184 = vmatmul.mubr.bf16.gmra.mxu0 %v4128
    %v4185 = vpop.f32.mrf.mxu0
    %v4186 = vadd.f32 0.0, %v4185
    %v4187 = vpop.f32.mrf.mxu0
    %v4188 = vpop.f32.mrf.mxu0
    %v4189 = vadd.f32 0.0, %v4188
    %v4190 = vpop.f32.mrf.mxu0
    %4191 = vmatprep.mubr.bf16.mxu0 0
    %4192 = vmatmul.mubr.bf16.gmra.mxu0 %v4131
    %v4193 = vpop.f32.mrf.mxu0
    %v4194 = vadd.f32 0.0, %v4193
    %v4195 = vpop.f32.mrf.mxu0
    %v4196 = vpop.f32.mrf.mxu0
    %v4197 = vadd.f32 0.0, %v4196
    %v4198 = vpop.f32.mrf.mxu0
    %4199 = vmatprep.mubr.bf16.mxu0 0
    %4200 = vmatmul.mubr.bf16.gmra.mxu0 %v4134
    %v4201 = vpop.f32.mrf.mxu0
    %v4202 = vadd.f32 0.0, %v4201
    %v4203 = vpop.f32.mrf.mxu0
    %v4204 = vpop.f32.mrf.mxu0
    %v4205 = vadd.f32 0.0, %v4204
    %v4206 = vpop.f32.mrf.mxu0
    %4207 = vmatprep.mubr.bf16.mxu0 0
    %4208 = vmatmul.mubr.bf16.gmra.mxu0 %v4137
    %v4209 = vpop.f32.mrf.mxu0
    %v4210 = vadd.f32 0.0, %v4209
    %v4211 = vpop.f32.mrf.mxu0
    %v4212 = vpop.f32.mrf.mxu0
    %v4213 = vadd.f32 0.0, %v4212
    %v4214 = vpop.f32.mrf.mxu0
    %4215 = vmatprep.mubr.bf16.mxu0 0
    %4216 = vmatmul.mubr.bf16.gmra.mxu0 %v4140
    %v4217 = vpop.f32.mrf.mxu0
    %v4218 = vadd.f32 0.0, %v4217
    %v4219 = vpop.f32.mrf.mxu0
    %v4220 = vpop.f32.mrf.mxu0
    %v4221 = vadd.f32 0.0, %v4220
    %v4222 = vpop.f32.mrf.mxu0
    %4223 = vmatprep.mubr.bf16.mxu0 0
    %4224 = vmatmul.mubr.bf16.gmra.mxu0 %v4143
    %v4225 = vpop.f32.mrf.mxu0
    %v4226 = vadd.f32 0.0, %v4225
    %v4227 = vpop.f32.mrf.mxu0
    %v4228 = vpop.f32.mrf.mxu0
    %v4229 = vadd.f32 0.0, %v4228
    %v4230 = vpop.f32.mrf.mxu0
    %4231 = vmatprep.mubr.bf16.mxu0 0
    %4232 = vmatmul.mubr.bf16.gmra.mxu0 %v4146
    %v4233 = vpop.f32.mrf.mxu0
    %v4234 = vadd.f32 0.0, %v4233
    %v4235 = vpop.f32.mrf.mxu0
    %v4236 = vpop.f32.mrf.mxu0
    %v4237 = vadd.f32 0.0, %v4236
    %v4238 = vpop.f32.mrf.mxu0
    %4239 = vmatprep.mubr.bf16.mxu0 0
    %4240 = vmatmul.mubr.bf16.gmra.mxu0 %v4149
    %v4241 = vpop.f32.mrf.mxu0
    %v4242 = vadd.f32 0.0, %v4241
    %v4243 = vpop.f32.mrf.mxu0
    %v4244 = vpop.f32.mrf.mxu0
    %v4245 = vadd.f32 0.0, %v4244
    %v4246 = vpop.f32.mrf.mxu0
    %4247 = vdwg.mxu0
    %v4248 = vadd.f32 %v3779, %v4186
    %v4249 = vadd.f32 %v3780, %v4189
    %v4250 = vadd.f32 %v3781, %v4194
    %v4251 = vadd.f32 %v3782, %v4197
    %v4252 = vadd.f32 %v3783, %v4202
    %v4253 = vadd.f32 %v3784, %v4205
    %v4254 = vadd.f32 %v3785, %v4210
    %v4255 = vadd.f32 %v3786, %v4213
    %v4256 = vadd.f32 %v3787, %v4218
    %v4257 = vadd.f32 %v3788, %v4221
    %v4258 = vadd.f32 %v3789, %v4226
    %v4259 = vadd.f32 %v3790, %v4229
    %v4260 = vadd.f32 %v3791, %v4234
    %v4261 = vadd.f32 %v3792, %v4237
    %v4262 = vadd.f32 %v3793, %v4242
    %v4263 = vadd.f32 %v3794, %v4245
    %v4264 = vld [vmem:[%s5] sm:$0x1]
    %v4266 = vlaneseq
    %v4267 = vshrl.u32 %v4266, 7
    %v4268 = vsub.s32 0, %v4267
    %v4269 = vrot.slane %v4264, %v4268
    %v4271 = vadd.f32 %v4248, %v4269
    %v4272 = vadd.f32 %v4249, %v4269
    %v4273 = vadd.f32 %v4250, %v4269
    %v4274 = vadd.f32 %v4251, %v4269
    %v4275 = vadd.f32 %v4252, %v4269
    %v4276 = vadd.f32 %v4253, %v4269
    %v4277 = vadd.f32 %v4254, %v4269
    %v4278 = vadd.f32 %v4255, %v4269
    %v4279 = vadd.f32 %v4256, %v4269
    %v4280 = vadd.f32 %v4257, %v4269
    %v4281 = vadd.f32 %v4258, %v4269
    %v4282 = vadd.f32 %v4259, %v4269
    %v4283 = vadd.f32 %v4260, %v4269
    %v4284 = vadd.f32 %v4261, %v4269
    %v4285 = vadd.f32 %v4262, %v4269
    %v4286 = vadd.f32 %v4263, %v4269
    %v4287 = vmax.f32 %v4271, 0.0
    %v4288 = vmax.f32 %v4272, 0.0
    %v4289 = vmax.f32 %v4273, 0.0
    %v4290 = vmax.f32 %v4274, 0.0
    %v4291 = vmax.f32 %v4275, 0.0
    %v4292 = vmax.f32 %v4276, 0.0
    %v4293 = vmax.f32 %v4277, 0.0
    %v4294 = vmax.f32 %v4278, 0.0
    %v4295 = vmax.f32 %v4279, 0.0
    %v4296 = vmax.f32 %v4280, 0.0
    %v4297 = vmax.f32 %v4281, 0.0
    %v4298 = vmax.f32 %v4282, 0.0
    %v4299 = vmax.f32 %v4283, 0.0
    %v4300 = vmax.f32 %v4284, 0.0
    %v4301 = vmax.f32 %v4285, 0.0
    %v4302 = vmax.f32 %v4286, 0.0
    %v4303 = vpack.c.bf16 %v4288, %v4287
    %v4304 = vpack.c.bf16 %v4290, %v4289
    %v4305 = vpack.c.bf16 %v4292, %v4291
    %v4306 = vpack.c.bf16 %v4294, %v4293
    %v4307 = vpack.c.bf16 %v4296, %v4295
    %v4308 = vpack.c.bf16 %v4298, %v4297
    %v4309 = vpack.c.bf16 %v4300, %v4299
    %v4310 = vpack.c.bf16 %v4302, %v4301
    %4311 = vrot.lane.b32.xlu0 %v1968, 32
    %v4312 = vpop.permute.xlu0 %4311
    %4313 = vrot.lane.b32.xlu0 %v1969, 32
    %v4314 = vpop.permute.xlu0 %4313
    %4315 = vrot.lane.b32.xlu0 %v1970, 32
    %v4316 = vpop.permute.xlu0 %4315
    %4317 = vrot.lane.b32.xlu0 %v1971, 32
    %v4318 = vpop.permute.xlu0 %4317
    %4319 = vrot.lane.b32.xlu0 %v1972, 32
    %v4320 = vpop.permute.xlu0 %4319
    %4321 = vrot.lane.b32.xlu0 %v1973, 32
    %v4322 = vpop.permute.xlu0 %4321
    %4323 = vrot.lane.b32.xlu0 %v1974, 32
    %v4324 = vpop.permute.xlu0 %4323
    %4325 = vrot.lane.b32.xlu0 %v1975, 32
    %v4326 = vpop.permute.xlu0 %4325
    %v4329 = vsel %vm726, %v4303, %v4312
    %v4332 = vsel %vm726, %v4304, %v4314
    %v4335 = vsel %vm726, %v4305, %v4316
    %v4338 = vsel %vm726, %v4306, %v4318
    %v4341 = vsel %vm726, %v4307, %v4320
    %v4344 = vsel %vm726, %v4308, %v4322
    %v4347 = vsel %vm726, %v4309, %v4324
    %v4350 = vsel %vm726, %v4310, %v4326
    %v4351 = vld [vmem:[%s6] sm:$0xf]
    %v4352 = vld [vmem:[%s6 + $0x4] sm:$0xf]
    %v4353 = vld [vmem:[%s6 + $0x8] sm:$0xf]
    %v4354 = vld [vmem:[%s6 + $0xc] sm:$0xf]
    %v4355 = vld [vmem:[%s6 + $0x10] sm:$0xf]
    %v4356 = vld [vmem:[%s6 + $0x14] sm:$0xf]
    %v4357 = vld [vmem:[%s6 + $0x18] sm:$0xf]
    %v4358 = vld [vmem:[%s6 + $0x1c] sm:$0xf]
    %v4359 = vld [vmem:[%s6 + $0x20] sm:$0xf]
    %v4360 = vld [vmem:[%s6 + $0x24] sm:$0xf]
    %v4361 = vld [vmem:[%s6 + $0x28] sm:$0xf]
    %v4362 = vld [vmem:[%s6 + $0x2c] sm:$0xf]
    %v4363 = vld [vmem:[%s7] sm:$0x1]
    %v4365 = vlaneseq
    %v4366 = vshrl.u32 %v4365, 7
    %v4367 = vsub.s32 0, %v4366
    %v4368 = vrot.slane %v4363, %v4367
    %v4382 = vunpack.c.l.b16 %v4351
    %v4383 = vunpack.c.l.b16 %v4352
    %v4384 = vunpack.c.l.b16 %v4353
    %v4385 = vunpack.c.l.b16 %v4354
    %v4386 = vunpack.c.l.b16 %v4355
    %v4387 = vunpack.c.l.b16 %v4356
    %v4388 = vunpack.c.l.b16 %v4357
    %v4389 = vunpack.c.l.b16 %v4358
    %v4390 = vunpack.c.l.b16 %v4359
    %v4391 = vunpack.c.l.b16 %v4360
    %v4392 = vunpack.c.l.b16 %v4361
    %v4393 = vunpack.c.l.b16 %v4362
    %v4394 = vpack.c.b16 %v4383, %v4382
    %v4395 = vpack.c.b16 %v4385, %v4384
    %v4396 = vpack.c.b16 %v4387, %v4386
    %v4397 = vpack.c.b16 %v4389, %v4388
    %v4398 = vpack.c.b16 %v4391, %v4390
    %v4399 = vpack.c.b16 %v4393, %v4392
    %vm4406 = vcmask 785408
    %v4407 = vsel %vm4406, %v4329, 0
    %v4409 = vsel %vm4406, %v4332, 0
    %v4411 = vsel %vm4406, %v4335, 0
    %v4413 = vsel %vm4406, %v4338, 0
    %v4415 = vsel %vm4406, %v4341, 0
    %v4417 = vsel %vm4406, %v4344, 0
    %v4419 = vsel %vm4406, %v4347, 0
    %v4421 = vsel %vm4406, %v4350, 0
    %4423 = vmatprep.subr.bf16.mxu0 0
    %4424 = vmatpush1.bf16.msra.mxu0 0
    %4425 = vmatprep.subr.bf16.mxu0 0
    %4426 = vmatpush1.bf16.msra.mxu0 0
    %4427 = vmatprep.subr.bf16.mxu0 0
    %4428 = vmatpush1.bf16.msra.mxu0 %v4399
    %4429 = vmatprep.subr.bf16.mxu0 0
    %4430 = vmatpush1.bf16.msra.mxu0 %v4398
    %4431 = vmatprep.subr.bf16.mxu0 0
    %4432 = vmatpush1.bf16.msra.mxu0 %v4397
    %4433 = vmatprep.subr.bf16.mxu0 0
    %4434 = vmatpush1.bf16.msra.mxu0 %v4396
    %4435 = vmatprep.subr.bf16.mxu0 0
    %4436 = vmatpush1.bf16.msra.mxu0 %v4395
    %4437 = vmatprep.subr.bf16.mxu0 0
    %4438 = vmatpush1.bf16.msra.mxu0 %v4394
    %4439 = vmatprep.subr.bf16.mxu0 0
    %4440 = vmatpush2.bf16.msra.mxu0 0
    %4441 = vmatprep.subr.bf16.mxu0 0
    %4442 = vmatpush2.bf16.msra.mxu0 0
    %4443 = vmatprep.subr.bf16.mxu0 0
    %4444 = vmatpush2.bf16.msra.mxu0 0
    %4445 = vmatprep.subr.bf16.mxu0 0
    %4446 = vmatpush2.bf16.msra.mxu0 0
    %4447 = vmatprep.subr.bf16.mxu0 0
    %4448 = vmatpush2.bf16.msra.mxu0 0
    %4449 = vmatprep.subr.bf16.mxu0 0
    %4450 = vmatpush2.bf16.msra.mxu0 0
    %4451 = vmatprep.subr.bf16.mxu0 0
    %4452 = vmatpush2.bf16.msra.mxu0 0
    %4453 = vmatprep.subr.bf16.mxu0 0
    %4454 = vmatpush2.bf16.msra.mxu0 0
    %4455 = vmatprep.mubr.bf16.mxu0 0
    %4456 = vmatmul.mubr.bf16.gmra.mxu0 %v4407
    %v4457 = vpop.f32.mrf.mxu0
    %v4458 = vadd.f32 %v4368, %v4457
    %v4459 = vpop.f32.mrf.mxu0
    %v4460 = vpop.f32.mrf.mxu0
    %v4461 = vadd.f32 %v4368, %v4460
    %v4462 = vpop.f32.mrf.mxu0
    %4463 = vmatprep.mubr.bf16.mxu0 0
    %4464 = vmatmul.mubr.bf16.gmra.mxu0 %v4409
    %v4465 = vpop.f32.mrf.mxu0
    %v4466 = vadd.f32 %v4368, %v4465
    %v4467 = vpop.f32.mrf.mxu0
    %v4468 = vpop.f32.mrf.mxu0
    %v4469 = vadd.f32 %v4368, %v4468
    %v4470 = vpop.f32.mrf.mxu0
    %4471 = vmatprep.mubr.bf16.mxu0 0
    %4472 = vmatmul.mubr.bf16.gmra.mxu0 %v4411
    %v4473 = vpop.f32.mrf.mxu0
    %v4474 = vadd.f32 %v4368, %v4473
    %v4475 = vpop.f32.mrf.mxu0
    %v4476 = vpop.f32.mrf.mxu0
    %v4477 = vadd.f32 %v4368, %v4476
    %v4478 = vpop.f32.mrf.mxu0
    %4479 = vmatprep.mubr.bf16.mxu0 0
    %4480 = vmatmul.mubr.bf16.gmra.mxu0 %v4413
    %v4481 = vpop.f32.mrf.mxu0
    %v4482 = vadd.f32 %v4368, %v4481
    %v4483 = vpop.f32.mrf.mxu0
    %v4484 = vpop.f32.mrf.mxu0
    %v4485 = vadd.f32 %v4368, %v4484
    %v4486 = vpop.f32.mrf.mxu0
    %4487 = vmatprep.mubr.bf16.mxu0 0
    %4488 = vmatmul.mubr.bf16.gmra.mxu0 %v4415
    %v4489 = vpop.f32.mrf.mxu0
    %v4490 = vadd.f32 %v4368, %v4489
    %v4491 = vpop.f32.mrf.mxu0
    %v4492 = vpop.f32.mrf.mxu0
    %v4493 = vadd.f32 %v4368, %v4492
    %v4494 = vpop.f32.mrf.mxu0
    %4495 = vmatprep.mubr.bf16.mxu0 0
    %4496 = vmatmul.mubr.bf16.gmra.mxu0 %v4417
    %v4497 = vpop.f32.mrf.mxu0
    %v4498 = vadd.f32 %v4368, %v4497
    %v4499 = vpop.f32.mrf.mxu0
    %v4500 = vpop.f32.mrf.mxu0
    %v4501 = vadd.f32 %v4368, %v4500
    %v4502 = vpop.f32.mrf.mxu0
    %4503 = vmatprep.mubr.bf16.mxu0 0
    %4504 = vmatmul.mubr.bf16.gmra.mxu0 %v4419
    %v4505 = vpop.f32.mrf.mxu0
    %v4506 = vadd.f32 %v4368, %v4505
    %v4507 = vpop.f32.mrf.mxu0
    %v4508 = vpop.f32.mrf.mxu0
    %v4509 = vadd.f32 %v4368, %v4508
    %v4510 = vpop.f32.mrf.mxu0
    %4511 = vmatprep.mubr.bf16.mxu0 0
    %4512 = vmatmul.mubr.bf16.gmra.mxu0 %v4421
    %v4513 = vpop.f32.mrf.mxu0
    %v4514 = vadd.f32 %v4368, %v4513
    %v4515 = vpop.f32.mrf.mxu0
    %v4516 = vpop.f32.mrf.mxu0
    %v4517 = vadd.f32 %v4368, %v4516
    %v4518 = vpop.f32.mrf.mxu0
    %4519 = vdwg.mxu0
    %v4520 = vmax.f32 %v4458, 0.0
    %v4521 = vmax.f32 %v4461, 0.0
    %v4522 = vmax.f32 %v4466, 0.0
    %v4523 = vmax.f32 %v4469, 0.0
    %v4524 = vmax.f32 %v4474, 0.0
    %v4525 = vmax.f32 %v4477, 0.0
    %v4526 = vmax.f32 %v4482, 0.0
    %v4527 = vmax.f32 %v4485, 0.0
    %v4528 = vmax.f32 %v4490, 0.0
    %v4529 = vmax.f32 %v4493, 0.0
    %v4530 = vmax.f32 %v4498, 0.0
    %v4531 = vmax.f32 %v4501, 0.0
    %v4532 = vmax.f32 %v4506, 0.0
    %v4533 = vmax.f32 %v4509, 0.0
    %v4534 = vmax.f32 %v4514, 0.0
    %v4535 = vmax.f32 %v4517, 0.0
    %v4536 = vld [vmem:[%s8] sm:$0xff]
    %v4537 = vld [vmem:[%s8 + $0x8] sm:$0xff]
    %v4538 = vld [vmem:[%s8 + $0x10] sm:$0xff]
    %v4539 = vld [vmem:[%s8 + $0x18] sm:$0xff]
    %v4540 = vld [vmem:[%s8 + $0x20] sm:$0xff]
    %v4541 = vld [vmem:[%s8 + $0x28] sm:$0xff]
    %v4542 = vld [vmem:[%s8 + $0x30] sm:$0xff]
    %v4543 = vld [vmem:[%s8 + $0x38] sm:$0xff]
    %v4544 = vld [vmem:[%s8 + $0x40] sm:$0xff]
    %v4545 = vld [vmem:[%s8 + $0x48] sm:$0xff]
    %v4546 = vld [vmem:[%s8 + $0x50] sm:$0xff]
    %v4547 = vld [vmem:[%s8 + $0x58] sm:$0xff]
    %v4548 = vld [vmem:[%s8 + $0x60] sm:$0xff]
    %v4549 = vld [vmem:[%s8 + $0x68] sm:$0xff]
    %v4550 = vld [vmem:[%s8 + $0x70] sm:$0xff]
    %v4551 = vld [vmem:[%s8 + $0x78] sm:$0xff]
    %4552 = vmatprep.subr.mxu0 0.0
    %4553 = vmatpush1.msra.mxu0 %v4551
    %4554 = vmatprep.subr.mxu0 0.0
    %4555 = vmatpush1.msra.mxu0 %v4550
    %4556 = vmatprep.subr.mxu0 0.0
    %4557 = vmatpush1.msra.mxu0 %v4549
    %4558 = vmatprep.subr.mxu0 0.0
    %4559 = vmatpush1.msra.mxu0 %v4548
    %4560 = vmatprep.subr.mxu0 0.0
    %4561 = vmatpush1.msra.mxu0 %v4547
    %4562 = vmatprep.subr.mxu0 0.0
    %4563 = vmatpush1.msra.mxu0 %v4546
    %4564 = vmatprep.subr.mxu0 0.0
    %4565 = vmatpush1.msra.mxu0 %v4545
    %4566 = vmatprep.subr.mxu0 0.0
    %4567 = vmatpush1.msra.mxu0 %v4544
    %4568 = vmatprep.subr.mxu0 0.0
    %4569 = vmatpush1.msra.mxu0 %v4543
    %4570 = vmatprep.subr.mxu0 0.0
    %4571 = vmatpush1.msra.mxu0 %v4542
    %4572 = vmatprep.subr.mxu0 0.0
    %4573 = vmatpush1.msra.mxu0 %v4541
    %4574 = vmatprep.subr.mxu0 0.0
    %4575 = vmatpush1.msra.mxu0 %v4540
    %4576 = vmatprep.subr.mxu0 0.0
    %4577 = vmatpush1.msra.mxu0 %v4539
    %4578 = vmatprep.subr.mxu0 0.0
    %4579 = vmatpush1.msra.mxu0 %v4538
    %4580 = vmatprep.subr.mxu0 0.0
    %4581 = vmatpush1.msra.mxu0 %v4537
    %4582 = vmatprep.subr.mxu0 0.0
    %4583 = vmatpush1.msra.mxu0 %v4536
    %4584 = vmatprep.subr.mxu0 0.0
    %4585 = vmatpush2.msra.mxu0 0.0
    %4586 = vmatprep.subr.mxu0 0.0
    %4587 = vmatpush2.msra.mxu0 0.0
    %4588 = vmatprep.subr.mxu0 0.0
    %4589 = vmatpush2.msra.mxu0 0.0
    %4590 = vmatprep.subr.mxu0 0.0
    %4591 = vmatpush2.msra.mxu0 0.0
    %4592 = vmatprep.subr.mxu0 0.0
    %4593 = vmatpush2.msra.mxu0 0.0
    %4594 = vmatprep.subr.mxu0 0.0
    %4595 = vmatpush2.msra.mxu0 0.0
    %4596 = vmatprep.subr.mxu0 0.0
    %4597 = vmatpush2.msra.mxu0 0.0
    %4598 = vmatprep.subr.mxu0 0.0
    %4599 = vmatpush2.msra.mxu0 0.0
    %4600 = vmatprep.subr.mxu0 0.0
    %4601 = vmatpush2.msra.mxu0 0.0
    %4602 = vmatprep.subr.mxu0 0.0
    %4603 = vmatpush2.msra.mxu0 0.0
    %4604 = vmatprep.subr.mxu0 0.0
    %4605 = vmatpush2.msra.mxu0 0.0
    %4606 = vmatprep.subr.mxu0 0.0
    %4607 = vmatpush2.msra.mxu0 0.0
    %4608 = vmatprep.subr.mxu0 0.0
    %4609 = vmatpush2.msra.mxu0 0.0
    %4610 = vmatprep.subr.mxu0 0.0
    %4611 = vmatpush2.msra.mxu0 0.0
    %4612 = vmatprep.subr.mxu0 0.0
    %4613 = vmatpush2.msra.mxu0 0.0
    %4614 = vmatprep.subr.mxu0 0.0
    %4615 = vmatpush2.msra.mxu0 0.0
    %4616 = vmatprep.mubr.f32.mxu0 0.0
    %4617 = vmatmul.mubr.f32.gmra.mxu0 %v4520
    %v4618 = vpop.f32.mrf.mxu0
    %v4619 = vadd.f32 0.0, %v4618
    %v4620 = vpop.f32.mrf.mxu0
    %4621 = vmatprep.mubr.f32.mxu0 0.0
    %4622 = vmatmul.mubr.f32.gmra.mxu0 %v4521
    %v4623 = vpop.f32.mrf.mxu0
    %v4624 = vadd.f32 0.0, %v4623
    %v4625 = vpop.f32.mrf.mxu0
    %4626 = vmatprep.mubr.f32.mxu0 0.0
    %4627 = vmatmul.mubr.f32.gmra.mxu0 %v4522
    %v4628 = vpop.f32.mrf.mxu0
    %v4629 = vadd.f32 0.0, %v4628
    %v4630 = vpop.f32.mrf.mxu0
    %4631 = vmatprep.mubr.f32.mxu0 0.0
    %4632 = vmatmul.mubr.f32.gmra.mxu0 %v4523
    %v4633 = vpop.f32.mrf.mxu0
    %v4634 = vadd.f32 0.0, %v4633
    %v4635 = vpop.f32.mrf.mxu0
    %4636 = vmatprep.mubr.f32.mxu0 0.0
    %4637 = vmatmul.mubr.f32.gmra.mxu0 %v4524
    %v4638 = vpop.f32.mrf.mxu0
    %v4639 = vadd.f32 0.0, %v4638
    %v4640 = vpop.f32.mrf.mxu0
    %4641 = vmatprep.mubr.f32.mxu0 0.0
    %4642 = vmatmul.mubr.f32.gmra.mxu0 %v4525
    %v4643 = vpop.f32.mrf.mxu0
    %v4644 = vadd.f32 0.0, %v4643
    %v4645 = vpop.f32.mrf.mxu0
    %4646 = vmatprep.mubr.f32.mxu0 0.0
    %4647 = vmatmul.mubr.f32.gmra.mxu0 %v4526
    %v4648 = vpop.f32.mrf.mxu0
    %v4649 = vadd.f32 0.0, %v4648
    %v4650 = vpop.f32.mrf.mxu0
    %4651 = vmatprep.mubr.f32.mxu0 0.0
    %4652 = vmatmul.mubr.f32.gmra.mxu0 %v4527
    %v4653 = vpop.f32.mrf.mxu0
    %v4654 = vadd.f32 0.0, %v4653
    %v4655 = vpop.f32.mrf.mxu0
    %4656 = vmatprep.mubr.f32.mxu0 0.0
    %4657 = vmatmul.mubr.f32.gmra.mxu0 %v4528
    %v4658 = vpop.f32.mrf.mxu0
    %v4659 = vadd.f32 0.0, %v4658
    %v4660 = vpop.f32.mrf.mxu0
    %4661 = vmatprep.mubr.f32.mxu0 0.0
    %4662 = vmatmul.mubr.f32.gmra.mxu0 %v4529
    %v4663 = vpop.f32.mrf.mxu0
    %v4664 = vadd.f32 0.0, %v4663
    %v4665 = vpop.f32.mrf.mxu0
    %4666 = vmatprep.mubr.f32.mxu0 0.0
    %4667 = vmatmul.mubr.f32.gmra.mxu0 %v4530
    %v4668 = vpop.f32.mrf.mxu0
    %v4669 = vadd.f32 0.0, %v4668
    %v4670 = vpop.f32.mrf.mxu0
    %4671 = vmatprep.mubr.f32.mxu0 0.0
    %4672 = vmatmul.mubr.f32.gmra.mxu0 %v4531
    %v4673 = vpop.f32.mrf.mxu0
    %v4674 = vadd.f32 0.0, %v4673
    %v4675 = vpop.f32.mrf.mxu0
    %4676 = vmatprep.mubr.f32.mxu0 0.0
    %4677 = vmatmul.mubr.f32.gmra.mxu0 %v4532
    %v4678 = vpop.f32.mrf.mxu0
    %v4679 = vadd.f32 0.0, %v4678
    %v4680 = vpop.f32.mrf.mxu0
    %4681 = vmatprep.mubr.f32.mxu0 0.0
    %4682 = vmatmul.mubr.f32.gmra.mxu0 %v4533
    %v4683 = vpop.f32.mrf.mxu0
    %v4684 = vadd.f32 0.0, %v4683
    %v4685 = vpop.f32.mrf.mxu0
    %4686 = vmatprep.mubr.f32.mxu0 0.0
    %4687 = vmatmul.mubr.f32.gmra.mxu0 %v4534
    %v4688 = vpop.f32.mrf.mxu0
    %v4689 = vadd.f32 0.0, %v4688
    %v4690 = vpop.f32.mrf.mxu0
    %4691 = vmatprep.mubr.f32.mxu0 0.0
    %4692 = vmatmul.mubr.f32.gmra.mxu0 %v4535
    %v4693 = vpop.f32.mrf.mxu0
    %v4694 = vadd.f32 0.0, %v4693
    %v4695 = vpop.f32.mrf.mxu0
    %4696 = vdwg.mxu0
    %vm4697 = vcmask 80896
    %v4698 = vsel %vm4697, %v4619, 0.0
    %v4699 = vsel %vm4697, %v4624, 0.0
    %v4700 = vadd.f32 %v4698, %v4699
    %v4701 = vsel %vm4697, %v4629, 0.0
    %v4702 = vadd.f32 %v4700, %v4701
    %v4703 = vsel %vm4697, %v4634, 0.0
    %v4704 = vadd.f32 %v4702, %v4703
    %v4705 = vsel %vm4697, %v4639, 0.0
    %v4706 = vadd.f32 %v4704, %v4705
    %v4707 = vsel %vm4697, %v4644, 0.0
    %v4708 = vadd.f32 %v4706, %v4707
    %v4709 = vsel %vm4697, %v4649, 0.0
    %v4710 = vadd.f32 %v4708, %v4709
    %v4711 = vsel %vm4697, %v4654, 0.0
    %v4712 = vadd.f32 %v4710, %v4711
    %v4713 = vrot.slane %v4712, 4
    %v4714 = vadd.f32 %v4712, %v4713
    %v4715 = vrot.slane %v4714, 2
    %v4716 = vadd.f32 %v4714, %v4715
    %v4717 = vrot.slane %v4716, 1
    %v4718 = vadd.f32 %v4716, %v4717
    %v4719 = vmul.f32 %v4718, 0.015625
    %v4720 = vld [vmem:[%s9] sm:$0x1]
    %v4721 = vadd.f32 %v4719, %v4720
    %vm4722 = vcmask 73728
    %4723 = vst.msk [vmem:[#allocation2] sm:$0x1] %vm4722, %v4721
    %v4724 = vsel %vm4697, %v4659, 0.0
    %v4725 = vsel %vm4697, %v4664, 0.0
    %v4726 = vadd.f32 %v4724, %v4725
    %v4727 = vsel %vm4697, %v4669, 0.0
    %v4728 = vadd.f32 %v4726, %v4727
    %v4729 = vsel %vm4697, %v4674, 0.0
    %v4730 = vadd.f32 %v4728, %v4729
    %v4731 = vsel %vm4697, %v4679, 0.0
    %v4732 = vadd.f32 %v4730, %v4731
    %v4733 = vsel %vm4697, %v4684, 0.0
    %v4734 = vadd.f32 %v4732, %v4733
    %v4735 = vsel %vm4697, %v4689, 0.0
    %v4736 = vadd.f32 %v4734, %v4735
    %v4737 = vsel %vm4697, %v4694, 0.0
    %v4738 = vadd.f32 %v4736, %v4737
    %v4739 = vrot.slane %v4738, 4
    %v4740 = vadd.f32 %v4738, %v4739
    %v4741 = vrot.slane %v4740, 2
    %v4742 = vadd.f32 %v4740, %v4741
    %v4743 = vrot.slane %v4742, 1
    %v4744 = vadd.f32 %v4742, %v4743
    %v4745 = vmul.f32 %v4744, 0.015625
    %v4746 = vld [vmem:[%s9] sm:$0x1]
    %v4747 = vadd.f32 %v4745, %v4746
    %4748 = vst.msk [vmem:[#allocation2 + $0x1] sm:$0x1] %vm4722, %v4747
    // Predicated region
    $region42: #{resnext_forward.3} parent=1 // pred_check
      _
    $region43: #{resnext_forward.3} parent=1 // pred_check_branch
      %4750 = sbr.rel (0) target = $region45
    $region44: #{resnext_forward.3} parent=1 // pred_region
      %s4752 = ssub.s32 32, 32
      %4753 = vsyncadd [#allocation3], %s4752
      %s4755 = sshll.u32 [#allocation2], 4
      %s4756 = int_to_ptr.vmem [resolvable:$true] %s4755
      %4758 = dma.vmem_to_hbm [thread:$0]  %s4756, 32, %s10, [#allocation3]
    $region45: #{resnext_forward.3} parent=1 // pred_fallthru
      _
    // Predicated region
    $region46: #{resnext_forward.3} parent=1 // pred_check
      _
    $region47: #{resnext_forward.3} parent=1 // pred_check_branch
      %4760 = sbr.rel (0) target = $region49
    $region48: #{resnext_forward.3} parent=1 // pred_region
      %4761 = dma.done [#allocation3], 32
    $region49: #{resnext_forward.3} parent=1 // pred_fallthru
      _
    %4762 = vsyncpa [#allocation3], 1

</llo_original>
